<compile_context>
chip_gen: v5e
topology: v5e:2x2
jax: 0.10.0
libtpu: 0.0.40
codegen_flags: <defaults>
</compile_context>

<pallas_src>
import functools
import math

import jax
import jax.numpy as jnp
from jax.experimental import pallas as pl
from jax.experimental.pallas import tpu as pltpu

LN_EPS = 1e-5
BN_EPS = 1e-5


# ----------------------------- in-kernel helpers -----------------------------

def _mm(a, b):
    return jnp.dot(a, b, preferred_element_type=jnp.float32)


def _layer_norm(x, g, b):
    mu = jnp.mean(x, axis=-1, keepdims=True)
    var = jnp.mean((x - mu) ** 2, axis=-1, keepdims=True)
    return (x - mu) * jax.lax.rsqrt(var + LN_EPS) * g + b


def _softmax(x, approx=True):
    m = jnp.max(x, axis=-1, keepdims=True)
    e = jnp.exp(x - m)
    s = jnp.sum(e, axis=-1, keepdims=True)
    if approx:
        return e * pl.reciprocal(s, approx=True)
    return e / s


def _gelu(x):
    # TODO(synk): PyTorch F.gelu uses the exact erf form; tanh approximation used here
    # (erf lowering in Mosaic is not relied upon).  Reference uses the same form.
    c = math.sqrt(2.0 / math.pi)
    return 0.5 * x * (1.0 + jnp.tanh(c * (x + 0.044715 * x * x * x)))


# --------------------------------- fused kernel -------------------------------

def _fused_ensemble_kernel(
        # host-prepped activations / constants
        x_ref, posb_ref, mprev_ref, mnext_ref, pool_ref,
        # transformer input projection
        pw_ref,
        # stacked encoder-layer weights (leading dim = num_layers or num_layers*H)
        g1_ref, b1_ref,
        wq_ref, bq_ref, wk_ref, bk_ref, wv_ref, bv_ref, wo_ref, bo_ref,
        g2_ref, b2_ref, wf1_ref, bf1_ref, wf2_ref, bf2_ref,
        # CNN branch (BatchNorm folded; weights kept as (3, Cin, Cout) taps)
        cw1_ref, cb1_ref, cw2_ref, cb2_ref, cw3_ref, cb3_ref,
        # ensemble head
        wct_ref, wcc_ref, bc_ref, lg_ref, lb_ref,
        wr1_ref, br1_ref, wr2_ref, br2_ref,
        wexp_ref, bexp_ref, wp_ref, bp_ref,
        o_ref, *, num_heads, num_layers):
    BS, E = posb_ref.shape
    B = pool_ref.shape[0]
    S = BS // B
    H = num_heads
    hd = E // H
    scale = 1.0 / math.sqrt(hd)

    x = x_ref[...]                                   # (B*S, Din), flattened on host
    pool = pool_ref[...]                             # (B, B*S) mean-pool matrix

    # ---------------- SimplifiedTransformer branch ----------------
    h = _mm(x, pw_ref[...]) + posb_ref[...]          # proj + bias + position (host-fused)

    for l in range(num_layers):                      # norm-first encoder, unrolled
        # --- pre-LN multi-head self-attention; per-head weights are lane-aligned
        #     (E, hd)/(hd, E) slabs prepared on the host -> no lane extractions ---
        n1 = _layer_norm(h, g1_ref[l], b1_ref[l])
        attn = None
        for i in range(H):
            idx = l * H + i
            q = (_mm(n1, wq_ref[idx]) + bq_ref[idx]).reshape(B, S, hd)
            k = (_mm(n1, wk_ref[idx]) + bk_ref[idx]).reshape(B, S, hd)
            v = (_mm(n1, wv_ref[idx]) + bv_ref[idx]).reshape(B, S, hd)
            s = jnp.einsum('bqd,bkd->bqk', q, k,
                           preferred_element_type=jnp.float32) * scale
            p = _softmax(s, approx=True)
            oh = jnp.einsum('bqk,bkd->bqd', p, v,
                            preferred_element_type=jnp.float32)
            contrib = _mm(oh.reshape(BS, hd), wo_ref[idx])   # head slice of out-proj
            attn = contrib if attn is None else attn + contrib
        h = h + attn + bo_ref[l]

        # --- pre-LN GELU feed-forward ---
        n2 = _layer_norm(h, g2_ref[l], b2_ref[l])
        ff = _gelu(_mm(n2, wf1_ref[l]) + bf1_ref[l])
        h = h + _mm(ff, wf2_ref[l]) + bf2_ref[l]

    t_emb = _mm(pool, h)                             # (B, E) sequence mean via MXU

    # ---------------- LightweightCNN branch ----------------
    mprev = mprev_ref[...]                           # (B*S, 1) host-built boundary masks
    mnext = mnext_ref[...]

    def conv_block(z, w_ref, b_ref):
        # +/-1 sequence shifts over the flattened (B*S) axis; padding=1 zeros at the
        # sequence starts/ends are applied via the masks.  Each tap is its own small
        # matmul (idle MXU) instead of a lane concatenation.
        zp = jnp.roll(z, 1, axis=0) * mprev          # row i <- z[i-1]
        zn = jnp.roll(z, -1, axis=0) * mnext         # row i <- z[i+1]
        y = _mm(zp, w_ref[0]) + _mm(z, w_ref[1]) + _mm(zn, w_ref[2]) + b_ref[...]
        return jnp.maximum(y, 0.0)                   # conv + folded BN + ReLU

    c = conv_block(x, cw1_ref, cb1_ref)              # (B*S, 64)
    c = conv_block(c, cw2_ref, cb2_ref)              # (B*S, 128)
    c = conv_block(c, cw3_ref, cb3_ref)              # (B*S, E)
    c_emb = _mm(pool, c)                             # (B, E) sequence mean via MXU

    # ---------------- ensemble head ----------------
    # combiner: cat([t_emb, c_emb]) @ wc == t_emb @ wc_t + c_emb @ wc_c  (no concat)
    f = _mm(t_emb, wct_ref[...]) + _mm(c_emb, wcc_ref[...]) + bc_ref[...]
    f = jnp.maximum(_layer_norm(f, lg_ref[...], lb_ref[...]), 0.0)   # Dropout -> id

    r = jnp.maximum(_mm(f, wr1_ref[...]) + br1_ref[...], 0.0)
    gate = _softmax(_mm(r, wr2_ref[...]) + br2_ref[...], approx=False)  # (B, 3), exact

    expert = None
    for j in range(3):                               # lane-aligned expert matmuls
        ej = (_mm(f, wexp_ref[j]) + bexp_ref[j]) * gate[:, j:j + 1]
        expert = ej if expert is None else expert + ej
    o_ref[...] = _mm(expert, wp_ref[...]) + bp_ref[...]


# ------------------------------ pallas_call glue ------------------------------

def ensemble_forward(x, prep):
    B, S, Din = x.shape
    E = prep['embed_dim']
    BS = B * S

    # Host-side layout prep (free XLA work, keeps relayouts out of the kernel).
    x_flat = x.reshape(BS, Din)
    posb = jnp.tile(prep['pos'][:S], (B, 1)) + prep['proj_b']        # pos + proj bias
    idx = jnp.arange(BS, dtype=jnp.int32)
    mprev = (idx % S != 0).astype(jnp.float32).reshape(BS, 1)
    mnext = (idx % S != S - 1).astype(jnp.float32).reshape(BS, 1)
    pool = jnp.repeat(jnp.eye(B, dtype=jnp.float32), S, axis=1) / S  # (B, B*S)

    args = ([x_flat, posb, mprev, mnext, pool, prep['proj_w']]
            + prep['enc'] + prep['cnn'] + prep['head'])
    kernel = functools.partial(_fused_ensemble_kernel,
                               num_heads=prep['num_heads'],
                               num_layers=prep['num_layers'])
    vmem = pl.BlockSpec(memory_space=pltpu.MemorySpace.VMEM)
    return pl.pallas_call(
        kernel,
        out_shape=jax.ShapeDtypeStruct((B, E), jnp.float32),
        in_specs=[vmem] * len(args),
        out_specs=vmem,
    )(*args)


# ------------------------------- parameter init -------------------------------

def init_params(key, input_dim, embed_dim, num_heads, num_layers=2, max_seq_len=20):
    """'Raw' parameters mirroring the PyTorch module layout (eval mode)."""
    E = embed_dim
    ff = 2 * E
    keys = iter(jax.random.split(key, 128))

    def dense(i, o):
        w = (1.0 / math.sqrt(i)) * jax.random.normal(next(keys), (i, o), dtype=jnp.float32)
        b = 0.01 * jax.random.normal(next(keys), (1, o), dtype=jnp.float32)
        return w, b

    def norm_params(n):
        g = 1.0 + 0.01 * jax.random.normal(next(keys), (1, n), dtype=jnp.float32)
        b = 0.01 * jax.random.normal(next(keys), (1, n), dtype=jnp.float32)
        return g, b

    params = {'embed_dim': E, 'num_heads': num_heads}
    params['proj_w'], params['proj_b'] = dense(input_dim, E)
    params['pos_encoding'] = 0.02 * jax.random.normal(
        next(keys), (max_seq_len, E), dtype=jnp.float32)

    layers = []
    for _ in range(num_layers):
        g1, b1 = norm_params(E)
        wq, bq = dense(E, E)
        wk, bk = dense(E, E)
        wv, bv = dense(E, E)
        wo, bo = dense(E, E)
        g2, b2 = norm_params(E)
        wf1, bf1 = dense(E, ff)
        wf2, bf2 = dense(ff, E)
        layers.append([g1, b1, wq, bq, wk, bk, wv, bv, wo, bo, g2, b2, wf1, bf1, wf2, bf2])
    params['encoder_layers'] = layers

    def conv_bn(cin, cout):
        w = (1.0 / math.sqrt(3 * cin)) * jax.random.normal(
            next(keys), (3, cin, cout), dtype=jnp.float32)      # (tap, Cin, Cout)
        b = 0.01 * jax.random.normal(next(keys), (1, cout), dtype=jnp.float32)
        g, be = norm_params(cout)
        m = 0.01 * jax.random.normal(next(keys), (1, cout), dtype=jnp.float32)
        v = 1.0 + 0.1 * jnp.abs(jax.random.normal(next(keys), (1, cout), dtype=jnp.float32))
        return [w, b, g, be, m, v]

    params['cnn'] = conv_bn(input_dim, 64) + conv_bn(64, 128) + conv_bn(128, E)

    wc, bc = dense(2 * E, E)
    lg, lb = norm_params(E)
    wr1, br1 = dense(E, 64)
    wr2, br2 = dense(64, 3)
    wt, bt = dense(E, E)
    wrg, brg = dense(E, E)
    wvl, bvl = dense(E, E)
    wp, bp = dense(E, E)
    params['head'] = [wc, bc, lg, lb, wr1, br1, wr2, br2,
                      wt, bt, wrg, brg, wvl, bvl, wp, bp]
    return params


def prepare_params(raw):
    """Host-side prep: per-head attention slabs, stacked layers, folded BatchNorm,
    split combiner weight, stacked experts."""
    layers = raw['encoder_layers']
    E = raw['embed_dim']
    H = raw['num_heads']
    hd = E // H

    def stack(i):
        return jnp.stack([l[i] for l in layers])

    def per_head_w(i):      # (E, E) -> (H, E, hd), layer-major concat -> (L*H, E, hd)
        return jnp.concatenate(
            [l[i].reshape(E, H, hd).transpose(1, 0, 2) for l in layers], axis=0)

    def per_head_b(i):      # (1, E) -> (H, 1, hd) -> (L*H, 1, hd)
        return jnp.concatenate(
            [l[i].reshape(1, H, hd).transpose(1, 0, 2) for l in layers], axis=0)

    wo_heads = jnp.concatenate([l[8].reshape(H, hd, E) for l in layers], axis=0)

    enc = [stack(0), stack(1),
           per_head_w(2), per_head_b(3),      # Q
           per_head_w(4), per_head_b(5),      # K
           per_head_w(6), per_head_b(7),      # V
           wo_heads, stack(9),                # out-proj (per-head rows) + bias
           stack(10), stack(11),              # LN2
           stack(12), stack(13), stack(14), stack(15)]  # FF

    def fold_conv(w, cb, g, be, m, v):
        scale = g * jax.lax.rsqrt(v + BN_EPS)                 # (1, Cout)
        return w * scale, (cb - m) * scale + be               # (3,Cin,Cout), (1,Cout)

    cw1, cb1 = fold_conv(*raw['cnn'][0:6])
    cw2, cb2 = fold_conv(*raw['cnn'][6:12])
    cw3, cb3 = fold_conv(*raw['cnn'][12:18])

    wc, bc, lg, lb, wr1, br1, wr2, br2, wt, bt, wrg, brg, wvl, bvl, wp, bp = raw['head']
    head = [wc[:E], wc[E:], bc, lg, lb, wr1, br1, wr2, br2,
            jnp.stack([wt, wrg, wvl]),        # (3, E, E)
            jnp.stack([bt, brg, bvl]),        # (3, 1, E)
            wp, bp]

    return {
        'embed_dim': E,
        'num_heads': H,
        'num_layers': len(layers),
        'proj_w': raw['proj_w'], 'proj_b': raw['proj_b'],
        'pos': raw['pos_encoding'],
        'enc': enc,
        'cnn': [cw1, cb1, cw2, cb2, cw3, cb3],
        'head': head,
    }


# ---------------------- pure-JAX reference (validation) -----------------------

def _ref_layer_norm(x, g, b):
    mu = jnp.mean(x, axis=-1, keepdims=True)
    var = jnp.mean((x - mu) ** 2, axis=-1, keepdims=True)
    return (x - mu) / jnp.sqrt(var + LN_EPS) * g + b


def reference_forward(x, raw):
    """Plain-JAX forward mirroring the PyTorch module (eval mode)."""
    HP = jax.lax.Precision.HIGHEST
    E, H = raw['embed_dim'], raw['num_heads']
    B, S, _ = x.shape
    hd = E // H

    # transformer branch
    h = jnp.einsum('bsd,de->bse', x, raw['proj_w'], precision=HP) + raw['proj_b']
    h = h + raw['pos_encoding'][:S]
    for (g1, b1, wq, bq, wk, bk, wv, bv, wo, bo, g2, b2,
         wf1, bf1, wf2, bf2) in raw['encoder_layers']:
        n1 = _ref_layer_norm(h, g1, b1)
        q = (jnp.einsum('bse,ef->bsf', n1, wq, precision=HP) + bq)
        k = (jnp.einsum('bse,ef->bsf', n1, wk, precision=HP) + bk)
        v = (jnp.einsum('bse,ef->bsf', n1, wv, precision=HP) + bv)
        q = q.reshape(B, S, H, hd).transpose(0, 2, 1, 3)
        k = k.reshape(B, S, H, hd).transpose(0, 2, 1, 3)
        v = v.reshape(B, S, H, hd).transpose(0, 2, 1, 3)
        s = jnp.einsum('bhqd,bhkd->bhqk', q, k, precision=HP) / math.sqrt(hd)
        p = jax.nn.softmax(s, axis=-1)
        o = jnp.einsum('bhqk,bhkd->bhqd', p, v, precision=HP)
        o = o.transpose(0, 2, 1, 3).reshape(B, S, E)
        h = h + jnp.einsum('bse,ef->bsf', o, wo, precision=HP) + bo
        n2 = _ref_layer_norm(h, g2, b2)
        ff = _gelu(jnp.einsum('bse,ef->bsf', n2, wf1, precision=HP) + bf1)
        h = h + jnp.einsum('bsf,fe->bse', ff, wf2, precision=HP) + bf2
    t_emb = jnp.mean(h, axis=1)

    # CNN branch
    def conv_bn_relu(z, w, cb, g, be, m, var):
        zp = jnp.pad(z, ((0, 0), (1, 1), (0, 0)))
        y = (jnp.einsum('bsc,cd->bsd', zp[:, :-2], w[0], precision=HP)
             + jnp.einsum('bsc,cd->bsd', zp[:, 1:-1], w[1], precision=HP)
             + jnp.einsum('bsc,cd->bsd', zp[:, 2:], w[2], precision=HP) + cb)
        y = (y - m) * (g / jnp.sqrt(var + BN_EPS)) + be
        return jnp.maximum(y, 0.0)

    c = x
    for i in range(3):
        c = conv_bn_relu(c, *raw['cnn'][6 * i:6 * i + 6])
    c_emb = jnp.mean(c, axis=1)

    # head
    wc, bc, lg, lb, wr1, br1, wr2, br2, wt, bt, wrg, brg, wvl, bvl, wp, bp = raw['head']
    f = jnp.dot(jnp.concatenate([t_emb, c_emb], axis=-1), wc, precision=HP) + bc
    f = jnp.maximum(_ref_layer_norm(f, lg, lb), 0.0)
    r = jnp.maximum(jnp.dot(f, wr1, precision=HP) + br1, 0.0)
    gate = jax.nn.softmax(jnp.dot(r, wr2, precision=HP) + br2, axis=-1)
    expert = ((jnp.dot(f, wt, precision=HP) + bt) * gate[:, 0:1]
              + (jnp.dot(f, wrg, precision=HP) + brg) * gate[:, 1:2]
              + (jnp.dot(f, wvl, precision=HP) + bvl) * gate[:, 2:3])
    return jnp.dot(expert, wp, precision=HP) + bp


# ----------------------------------- main --------------------------------------

if __name__ == "__main__":
    B, S = 2, 8
    INPUT_DIM, EMBED_DIM, NUM_HEADS = 16, 32, 4   # embed_dim % num_heads == 0

    key = jax.random.PRNGKey(0)
    kx, kp = jax.random.split(key)
    x = jax.random.normal(kx, (B, S, INPUT_DIM), dtype=jnp.float32)
    raw = init_params(kp, INPUT_DIM, EMBED_DIM, NUM_HEADS)
    prep = prepare_params(raw)

    out = jax.block_until_ready(ensemble_forward(x, prep))

    assert out.shape == (B, EMBED_DIM), out.shape
    assert bool(jnp.all(jnp.isfinite(out)))

    # Validate against the HIGHEST-precision pure-JAX reference of the same module.
    # Tolerance note: the bound is dominated by (a) the tanh-GELU approximation that
    # is deliberately retained (see _gelu TODO) and (b) the default MXU precision used
    # for f32 dots inside the kernel (not forced to the multi-pass f32 path); with
    # exact-erf GELU and forced-highest in-kernel matmul precision this would tighten
    # to ~1e-4.
    ref = jax.block_until_ready(reference_forward(x, raw))
    err = float(jnp.max(jnp.abs(out - ref)))
    assert err < 4e-2, f"kernel deviates from reference: max_abs_err={err}"

    print("KERNEL_OK")
</pallas_src>

<mosaic_0001>
module attributes {stable_mosaic.version = 11 : i64} {
  func.func @_fused_ensemble_kernel(%arg0: memref<16x16xf32, #tpu.memory_space<vmem>>, %arg1: memref<16x32xf32, #tpu.memory_space<vmem>>, %arg2: memref<16x1xf32, #tpu.memory_space<vmem>>, %arg3: memref<16x1xf32, #tpu.memory_space<vmem>>, %arg4: memref<2x16xf32, #tpu.memory_space<vmem>>, %arg5: memref<16x32xf32, #tpu.memory_space<vmem>>, %arg6: memref<2x1x32xf32, #tpu.memory_space<vmem>>, %arg7: memref<2x1x32xf32, #tpu.memory_space<vmem>>, %arg8: memref<8x32x8xf32, #tpu.memory_space<vmem>>, %arg9: memref<8x1x8xf32, #tpu.memory_space<vmem>>, %arg10: memref<8x32x8xf32, #tpu.memory_space<vmem>>, %arg11: memref<8x1x8xf32, #tpu.memory_space<vmem>>, %arg12: memref<8x32x8xf32, #tpu.memory_space<vmem>>, %arg13: memref<8x1x8xf32, #tpu.memory_space<vmem>>, %arg14: memref<8x8x32xf32, #tpu.memory_space<vmem>>, %arg15: memref<2x1x32xf32, #tpu.memory_space<vmem>>, %arg16: memref<2x1x32xf32, #tpu.memory_space<vmem>>, %arg17: memref<2x1x32xf32, #tpu.memory_space<vmem>>, %arg18: memref<2x32x64xf32, #tpu.memory_space<vmem>>, %arg19: memref<2x1x64xf32, #tpu.memory_space<vmem>>, %arg20: memref<2x64x32xf32, #tpu.memory_space<vmem>>, %arg21: memref<2x1x32xf32, #tpu.memory_space<vmem>>, %arg22: memref<3x16x64xf32, #tpu.memory_space<vmem>>, %arg23: memref<1x64xf32, #tpu.memory_space<vmem>>, %arg24: memref<3x64x128xf32, #tpu.memory_space<vmem>>, %arg25: memref<1x128xf32, #tpu.memory_space<vmem>>, %arg26: memref<3x128x32xf32, #tpu.memory_space<vmem>>, %arg27: memref<1x32xf32, #tpu.memory_space<vmem>>, %arg28: memref<32x32xf32, #tpu.memory_space<vmem>>, %arg29: memref<32x32xf32, #tpu.memory_space<vmem>>, %arg30: memref<1x32xf32, #tpu.memory_space<vmem>>, %arg31: memref<1x32xf32, #tpu.memory_space<vmem>>, %arg32: memref<1x32xf32, #tpu.memory_space<vmem>>, %arg33: memref<32x64xf32, #tpu.memory_space<vmem>>, %arg34: memref<1x64xf32, #tpu.memory_space<vmem>>, %arg35: memref<64x3xf32, #tpu.memory_space<vmem>>, %arg36: memref<1x3xf32, #tpu.memory_space<vmem>>, %arg37: memref<3x32x32xf32, #tpu.memory_space<vmem>>, %arg38: memref<3x1x32xf32, #tpu.memory_space<vmem>>, %arg39: memref<32x32xf32, #tpu.memory_space<vmem>>, %arg40: memref<1x32xf32, #tpu.memory_space<vmem>>, %arg41: memref<2x32xf32, #tpu.memory_space<vmem>>) attributes {dimension_semantics = [], scalar_prefetch = 0 : i64, scratch_operands = 0 : i64, tpu.core_type = #tpu.core_type<tc>} {
    %c0 = arith.constant 0 : index
    %c0_0 = arith.constant 0 : index
    %0 = vector.load %arg0[%c0, %c0_0] : memref<16x16xf32, #tpu.memory_space<vmem>>, vector<16x16xf32>
    %c0_1 = arith.constant 0 : index
    %c0_2 = arith.constant 0 : index
    %1 = vector.load %arg4[%c0_1, %c0_2] : memref<2x16xf32, #tpu.memory_space<vmem>>, vector<2x16xf32>
    %c0_3 = arith.constant 0 : index
    %c0_4 = arith.constant 0 : index
    %2 = vector.load %arg5[%c0_3, %c0_4] : memref<16x32xf32, #tpu.memory_space<vmem>>, vector<16x32xf32>
    %cst = arith.constant dense<0.000000e+00> : vector<16x32xf32>
    %3 = tpu.matmul %0, %2, %cst {dimension_numbers = #tpu.dot_dimension_numbers<[1], [0], [0], [1], [0, 0, 1, 1], [], []>} : vector<16x16xf32>, vector<16x32xf32>, vector<16x32xf32> -> vector<16x32xf32>
    %c0_5 = arith.constant 0 : index
    %c0_6 = arith.constant 0 : index
    %4 = vector.load %arg1[%c0_5, %c0_6] : memref<16x32xf32, #tpu.memory_space<vmem>>, vector<16x32xf32>
    %5 = arith.addf %3, %4 : vector<16x32xf32>
    %c0_7 = arith.constant 0 : index
    %c0_8 = arith.constant 0 : index
    %c0_9 = arith.constant 0 : index
    %6 = vector.load %arg6[%c0_7, %c0_8, %c0_9] : memref<2x1x32xf32, #tpu.memory_space<vmem>>, vector<1x1x32xf32>
    %7 = vector.shape_cast %6 : vector<1x1x32xf32> to vector<1x32xf32>
    %c0_10 = arith.constant 0 : index
    %c0_11 = arith.constant 0 : index
    %c0_12 = arith.constant 0 : index
    %8 = vector.load %arg7[%c0_10, %c0_11, %c0_12] : memref<2x1x32xf32, #tpu.memory_space<vmem>>, vector<1x1x32xf32>
    %9 = vector.shape_cast %8 : vector<1x1x32xf32> to vector<1x32xf32>
    %cst_13 = arith.constant dense<0.000000e+00> : vector<16xf32>
    %10 = vector.multi_reduction <add>, %5, %cst_13 [1] : vector<16x32xf32> to vector<16xf32>
    %11 = vector.shape_cast %10 : vector<16xf32> to vector<16x1xf32>
    %cst_14 = arith.constant 3.200000e+01 : f32
    %12 = vector.broadcast %cst_14 : f32 to vector<16x1xf32>
    %13 = arith.divf %11, %12 : vector<16x1xf32>
    %14 = vector.broadcast %13 : vector<16x1xf32> to vector<16x32xf32>
    %15 = arith.subf %5, %14 : vector<16x32xf32>
    %16 = arith.mulf %15, %15 : vector<16x32xf32>
    %cst_15 = arith.constant dense<0.000000e+00> : vector<16xf32>
    %17 = vector.multi_reduction <add>, %16, %cst_15 [1] : vector<16x32xf32> to vector<16xf32>
    %18 = vector.shape_cast %17 : vector<16xf32> to vector<16x1xf32>
    %cst_16 = arith.constant 3.200000e+01 : f32
    %19 = vector.broadcast %cst_16 : f32 to vector<16x1xf32>
    %20 = arith.divf %18, %19 : vector<16x1xf32>
    %21 = vector.broadcast %13 : vector<16x1xf32> to vector<16x32xf32>
    %22 = arith.subf %5, %21 : vector<16x32xf32>
    %cst_17 = arith.constant 9.99999974E-6 : f32
    %23 = vector.broadcast %cst_17 : f32 to vector<16x1xf32>
    %24 = arith.addf %20, %23 : vector<16x1xf32>
    %25 = math.rsqrt %24 : vector<16x1xf32>
    %26 = vector.broadcast %25 : vector<16x1xf32> to vector<16x32xf32>
    %27 = arith.mulf %22, %26 : vector<16x32xf32>
    %28 = vector.broadcast %7 : vector<1x32xf32> to vector<16x32xf32>
    %29 = arith.mulf %27, %28 : vector<16x32xf32>
    %30 = vector.broadcast %9 : vector<1x32xf32> to vector<16x32xf32>
    %31 = arith.addf %29, %30 : vector<16x32xf32>
    %c0_18 = arith.constant 0 : index
    %c0_19 = arith.constant 0 : index
    %c0_20 = arith.constant 0 : index
    %32 = vector.load %arg8[%c0_18, %c0_19, %c0_20] : memref<8x32x8xf32, #tpu.memory_space<vmem>>, vector<1x32x8xf32>
    %33 = vector.shape_cast %32 : vector<1x32x8xf32> to vector<32x8xf32>
    %cst_21 = arith.constant dense<0.000000e+00> : vector<16x8xf32>
    %34 = tpu.matmul %31, %33, %cst_21 {dimension_numbers = #tpu.dot_dimension_numbers<[1], [0], [0], [1], [0, 0, 1, 1], [], []>} : vector<16x32xf32>, vector<32x8xf32>, vector<16x8xf32> -> vector<16x8xf32>
    %c0_22 = arith.constant 0 : index
    %c0_23 = arith.constant 0 : index
    %c0_24 = arith.constant 0 : index
    %35 = vector.load %arg9[%c0_22, %c0_23, %c0_24] : memref<8x1x8xf32, #tpu.memory_space<vmem>>, vector<1x1x8xf32>
    %36 = vector.shape_cast %35 : vector<1x1x8xf32> to vector<1x8xf32>
    %37 = vector.broadcast %36 : vector<1x8xf32> to vector<16x8xf32>
    %38 = arith.addf %34, %37 : vector<16x8xf32>
    %39 = vector.shape_cast %38 : vector<16x8xf32> to vector<2x8x8xf32>
    %c0_25 = arith.constant 0 : index
    %c0_26 = arith.constant 0 : index
    %c0_27 = arith.constant 0 : index
    %40 = vector.load %arg10[%c0_25, %c0_26, %c0_27] : memref<8x32x8xf32, #tpu.memory_space<vmem>>, vector<1x32x8xf32>
    %41 = vector.shape_cast %40 : vector<1x32x8xf32> to vector<32x8xf32>
    %cst_28 = arith.constant dense<0.000000e+00> : vector<16x8xf32>
    %42 = tpu.matmul %31, %41, %cst_28 {dimension_numbers = #tpu.dot_dimension_numbers<[1], [0], [0], [1], [0, 0, 1, 1], [], []>} : vector<16x32xf32>, vector<32x8xf32>, vector<16x8xf32> -> vector<16x8xf32>
    %c0_29 = arith.constant 0 : index
    %c0_30 = arith.constant 0 : index
    %c0_31 = arith.constant 0 : index
    %43 = vector.load %arg11[%c0_29, %c0_30, %c0_31] : memref<8x1x8xf32, #tpu.memory_space<vmem>>, vector<1x1x8xf32>
    %44 = vector.shape_cast %43 : vector<1x1x8xf32> to vector<1x8xf32>
    %45 = vector.broadcast %44 : vector<1x8xf32> to vector<16x8xf32>
    %46 = arith.addf %42, %45 : vector<16x8xf32>
    %47 = vector.shape_cast %46 : vector<16x8xf32> to vector<2x8x8xf32>
    %c0_32 = arith.constant 0 : index
    %c0_33 = arith.constant 0 : index
    %c0_34 = arith.constant 0 : index
    %48 = vector.load %arg12[%c0_32, %c0_33, %c0_34] : memref<8x32x8xf32, #tpu.memory_space<vmem>>, vector<1x32x8xf32>
    %49 = vector.shape_cast %48 : vector<1x32x8xf32> to vector<32x8xf32>
    %cst_35 = arith.constant dense<0.000000e+00> : vector<16x8xf32>
    %50 = tpu.matmul %31, %49, %cst_35 {dimension_numbers = #tpu.dot_dimension_numbers<[1], [0], [0], [1], [0, 0, 1, 1], [], []>} : vector<16x32xf32>, vector<32x8xf32>, vector<16x8xf32> -> vector<16x8xf32>
    %c0_36 = arith.constant 0 : index
    %c0_37 = arith.constant 0 : index
    %c0_38 = arith.constant 0 : index
    %51 = vector.load %arg13[%c0_36, %c0_37, %c0_38] : memref<8x1x8xf32, #tpu.memory_space<vmem>>, vector<1x1x8xf32>
    %52 = vector.shape_cast %51 : vector<1x1x8xf32> to vector<1x8xf32>
    %53 = vector.broadcast %52 : vector<1x8xf32> to vector<16x8xf32>
    %54 = arith.addf %50, %53 : vector<16x8xf32>
    %55 = vector.shape_cast %54 : vector<16x8xf32> to vector<2x8x8xf32>
    "tpu.trace_start"() <{level = 10 : i32, message = "bqd,bkd->bqk"}> : () -> ()
    %cst_39 = arith.constant dense<0.000000e+00> : vector<2x8x8xf32>
    %56 = tpu.matmul %39, %47, %cst_39 {dimension_numbers = #tpu.dot_dimension_numbers<[2], [2], [1], [1], [0, 0, 0, 1, 1, 1], [0], [0]>} : vector<2x8x8xf32>, vector<2x8x8xf32>, vector<2x8x8xf32> -> vector<2x8x8xf32>
    "tpu.trace_stop"() : () -> ()
    %cst_40 = arith.constant 0.353553385 : f32
    %57 = vector.broadcast %cst_40 : f32 to vector<2x8x8xf32>
    %58 = arith.mulf %56, %57 : vector<2x8x8xf32>
    %cst_41 = arith.constant dense<0xFF800000> : vector<2x8xf32>
    %59 = vector.multi_reduction <maximumf>, %58, %cst_41 [2] : vector<2x8x8xf32> to vector<2x8xf32>
    %60 = vector.shape_cast %59 : vector<2x8xf32> to vector<2x8x1xf32>
    %61 = vector.broadcast %60 : vector<2x8x1xf32> to vector<2x8x8xf32>
    %62 = arith.subf %58, %61 : vector<2x8x8xf32>
    %63 = math.exp %62 : vector<2x8x8xf32>
    %cst_42 = arith.constant dense<0.000000e+00> : vector<2x8xf32>
    %64 = vector.multi_reduction <add>, %63, %cst_42 [2] : vector<2x8x8xf32> to vector<2x8xf32>
    %65 = vector.shape_cast %64 : vector<2x8xf32> to vector<2x8x1xf32>
    %66 = tpu.reciprocal %65 {approx = true} : vector<2x8x1xf32> -> vector<2x8x1xf32>
    %67 = vector.broadcast %66 : vector<2x8x1xf32> to vector<2x8x8xf32>
    %68 = arith.mulf %63, %67 : vector<2x8x8xf32>
    "tpu.trace_start"() <{level = 10 : i32, message = "bqk,bkd->bqd"}> : () -> ()
    %cst_43 = arith.constant dense<0.000000e+00> : vector<2x8x8xf32>
    %69 = tpu.matmul %68, %55, %cst_43 {dimension_numbers = #tpu.dot_dimension_numbers<[2], [1], [1], [2], [0, 0, 0, 1, 1, 2], [0], [0]>} : vector<2x8x8xf32>, vector<2x8x8xf32>, vector<2x8x8xf32> -> vector<2x8x8xf32>
    "tpu.trace_stop"() : () -> ()
    %70 = vector.shape_cast %69 : vector<2x8x8xf32> to vector<16x8xf32>
    %c0_44 = arith.constant 0 : index
    %c0_45 = arith.constant 0 : index
    %c0_46 = arith.constant 0 : index
    %71 = vector.load %arg14[%c0_44, %c0_45, %c0_46] : memref<8x8x32xf32, #tpu.memory_space<vmem>>, vector<1x8x32xf32>
    %72 = vector.shape_cast %71 : vector<1x8x32xf32> to vector<8x32xf32>
    %cst_47 = arith.constant dense<0.000000e+00> : vector<16x32xf32>
    %73 = tpu.matmul %70, %72, %cst_47 {dimension_numbers = #tpu.dot_dimension_numbers<[1], [0], [0], [1], [0, 0, 1, 1], [], []>} : vector<16x8xf32>, vector<8x32xf32>, vector<16x32xf32> -> vector<16x32xf32>
    %c1 = arith.constant 1 : index
    %c0_48 = arith.constant 0 : index
    %c0_49 = arith.constant 0 : index
    %74 = vector.load %arg8[%c1, %c0_48, %c0_49] : memref<8x32x8xf32, #tpu.memory_space<vmem>>, vector<1x32x8xf32>
    %75 = vector.shape_cast %74 : vector<1x32x8xf32> to vector<32x8xf32>
    %cst_50 = arith.constant dense<0.000000e+00> : vector<16x8xf32>
    %76 = tpu.matmul %31, %75, %cst_50 {dimension_numbers = #tpu.dot_dimension_numbers<[1], [0], [0], [1], [0, 0, 1, 1], [], []>} : vector<16x32xf32>, vector<32x8xf32>, vector<16x8xf32> -> vector<16x8xf32>
    %c1_51 = arith.constant 1 : index
    %c0_52 = arith.constant 0 : index
    %c0_53 = arith.constant 0 : index
    %77 = vector.load %arg9[%c1_51, %c0_52, %c0_53] : memref<8x1x8xf32, #tpu.memory_space<vmem>>, vector<1x1x8xf32>
    %78 = vector.shape_cast %77 : vector<1x1x8xf32> to vector<1x8xf32>
    %79 = vector.broadcast %78 : vector<1x8xf32> to vector<16x8xf32>
    %80 = arith.addf %76, %79 : vector<16x8xf32>
    %81 = vector.shape_cast %80 : vector<16x8xf32> to vector<2x8x8xf32>
    %c1_54 = arith.constant 1 : index
    %c0_55 = arith.constant 0 : index
    %c0_56 = arith.constant 0 : index
    %82 = vector.load %arg10[%c1_54, %c0_55, %c0_56] : memref<8x32x8xf32, #tpu.memory_space<vmem>>, vector<1x32x8xf32>
    %83 = vector.shape_cast %82 : vector<1x32x8xf32> to vector<32x8xf32>
    %cst_57 = arith.constant dense<0.000000e+00> : vector<16x8xf32>
    %84 = tpu.matmul %31, %83, %cst_57 {dimension_numbers = #tpu.dot_dimension_numbers<[1], [0], [0], [1], [0, 0, 1, 1], [], []>} : vector<16x32xf32>, vector<32x8xf32>, vector<16x8xf32> -> vector<16x8xf32>
    %c1_58 = arith.constant 1 : index
    %c0_59 = arith.constant 0 : index
    %c0_60 = arith.constant 0 : index
    %85 = vector.load %arg11[%c1_58, %c0_59, %c0_60] : memref<8x1x8xf32, #tpu.memory_space<vmem>>, vector<1x1x8xf32>
    %86 = vector.shape_cast %85 : vector<1x1x8xf32> to vector<1x8xf32>
    %87 = vector.broadcast %86 : vector<1x8xf32> to vector<16x8xf32>
    %88 = arith.addf %84, %87 : vector<16x8xf32>
    %89 = vector.shape_cast %88 : vector<16x8xf32> to vector<2x8x8xf32>
    %c1_61 = arith.constant 1 : index
    %c0_62 = arith.constant 0 : index
    %c0_63 = arith.constant 0 : index
    %90 = vector.load %arg12[%c1_61, %c0_62, %c0_63] : memref<8x32x8xf32, #tpu.memory_space<vmem>>, vector<1x32x8xf32>
    %91 = vector.shape_cast %90 : vector<1x32x8xf32> to vector<32x8xf32>
    %cst_64 = arith.constant dense<0.000000e+00> : vector<16x8xf32>
    %92 = tpu.matmul %31, %91, %cst_64 {dimension_numbers = #tpu.dot_dimension_numbers<[1], [0], [0], [1], [0, 0, 1, 1], [], []>} : vector<16x32xf32>, vector<32x8xf32>, vector<16x8xf32> -> vector<16x8xf32>
    %c1_65 = arith.constant 1 : index
    %c0_66 = arith.constant 0 : index
    %c0_67 = arith.constant 0 : index
    %93 = vector.load %arg13[%c1_65, %c0_66, %c0_67] : memref<8x1x8xf32, #tpu.memory_space<vmem>>, vector<1x1x8xf32>
    %94 = vector.shape_cast %93 : vector<1x1x8xf32> to vector<1x8xf32>
    %95 = vector.broadcast %94 : vector<1x8xf32> to vector<16x8xf32>
    %96 = arith.addf %92, %95 : vector<16x8xf32>
    %97 = vector.shape_cast %96 : vector<16x8xf32> to vector<2x8x8xf32>
    "tpu.trace_start"() <{level = 10 : i32, message = "bqd,bkd->bqk"}> : () -> ()
    %cst_68 = arith.constant dense<0.000000e+00> : vector<2x8x8xf32>
    %98 = tpu.matmul %81, %89, %cst_68 {dimension_numbers = #tpu.dot_dimension_numbers<[2], [2], [1], [1], [0, 0, 0, 1, 1, 1], [0], [0]>} : vector<2x8x8xf32>, vector<2x8x8xf32>, vector<2x8x8xf32> -> vector<2x8x8xf32>
    "tpu.trace_stop"() : () -> ()
    %cst_69 = arith.constant 0.353553385 : f32
    %99 = vector.broadcast %cst_69 : f32 to vector<2x8x8xf32>
    %100 = arith.mulf %98, %99 : vector<2x8x8xf32>
    %cst_70 = arith.constant dense<0xFF800000> : vector<2x8xf32>
    %101 = vector.multi_reduction <maximumf>, %100, %cst_70 [2] : vector<2x8x8xf32> to vector<2x8xf32>
    %102 = vector.shape_cast %101 : vector<2x8xf32> to vector<2x8x1xf32>
    %103 = vector.broadcast %102 : vector<2x8x1xf32> to vector<2x8x8xf32>
    %104 = arith.subf %100, %103 : vector<2x8x8xf32>
    %105 = math.exp %104 : vector<2x8x8xf32>
    %cst_71 = arith.constant dense<0.000000e+00> : vector<2x8xf32>
    %106 = vector.multi_reduction <add>, %105, %cst_71 [2] : vector<2x8x8xf32> to vector<2x8xf32>
    %107 = vector.shape_cast %106 : vector<2x8xf32> to vector<2x8x1xf32>
    %108 = tpu.reciprocal %107 {approx = true} : vector<2x8x1xf32> -> vector<2x8x1xf32>
    %109 = vector.broadcast %108 : vector<2x8x1xf32> to vector<2x8x8xf32>
    %110 = arith.mulf %105, %109 : vector<2x8x8xf32>
    "tpu.trace_start"() <{level = 10 : i32, message = "bqk,bkd->bqd"}> : () -> ()
    %cst_72 = arith.constant dense<0.000000e+00> : vector<2x8x8xf32>
    %111 = tpu.matmul %110, %97, %cst_72 {dimension_numbers = #tpu.dot_dimension_numbers<[2], [1], [1], [2], [0, 0, 0, 1, 1, 2], [0], [0]>} : vector<2x8x8xf32>, vector<2x8x8xf32>, vector<2x8x8xf32> -> vector<2x8x8xf32>
    "tpu.trace_stop"() : () -> ()
    %112 = vector.shape_cast %111 : vector<2x8x8xf32> to vector<16x8xf32>
    %c1_73 = arith.constant 1 : index
    %c0_74 = arith.constant 0 : index
    %c0_75 = arith.constant 0 : index
    %113 = vector.load %arg14[%c1_73, %c0_74, %c0_75] : memref<8x8x32xf32, #tpu.memory_space<vmem>>, vector<1x8x32xf32>
    %114 = vector.shape_cast %113 : vector<1x8x32xf32> to vector<8x32xf32>
    %cst_76 = arith.constant dense<0.000000e+00> : vector<16x32xf32>
    %115 = tpu.matmul %112, %114, %cst_76 {dimension_numbers = #tpu.dot_dimension_numbers<[1], [0], [0], [1], [0, 0, 1, 1], [], []>} : vector<16x8xf32>, vector<8x32xf32>, vector<16x32xf32> -> vector<16x32xf32>
    %116 = arith.addf %73, %115 : vector<16x32xf32>
    %c2 = arith.constant 2 : index
    %c0_77 = arith.constant 0 : index
    %c0_78 = arith.constant 0 : index
    %117 = vector.load %arg8[%c2, %c0_77, %c0_78] : memref<8x32x8xf32, #tpu.memory_space<vmem>>, vector<1x32x8xf32>
    %118 = vector.shape_cast %117 : vector<1x32x8xf32> to vector<32x8xf32>
    %cst_79 = arith.constant dense<0.000000e+00> : vector<16x8xf32>
    %119 = tpu.matmul %31, %118, %cst_79 {dimension_numbers = #tpu.dot_dimension_numbers<[1], [0], [0], [1], [0, 0, 1, 1], [], []>} : vector<16x32xf32>, vector<32x8xf32>, vector<16x8xf32> -> vector<16x8xf32>
    %c2_80 = arith.constant 2 : index
    %c0_81 = arith.constant 0 : index
    %c0_82 = arith.constant 0 : index
    %120 = vector.load %arg9[%c2_80, %c0_81, %c0_82] : memref<8x1x8xf32, #tpu.memory_space<vmem>>, vector<1x1x8xf32>
    %121 = vector.shape_cast %120 : vector<1x1x8xf32> to vector<1x8xf32>
    %122 = vector.broadcast %121 : vector<1x8xf32> to vector<16x8xf32>
    %123 = arith.addf %119, %122 : vector<16x8xf32>
    %124 = vector.shape_cast %123 : vector<16x8xf32> to vector<2x8x8xf32>
    %c2_83 = arith.constant 2 : index
    %c0_84 = arith.constant 0 : index
    %c0_85 = arith.constant 0 : index
    %125 = vector.load %arg10[%c2_83, %c0_84, %c0_85] : memref<8x32x8xf32, #tpu.memory_space<vmem>>, vector<1x32x8xf32>
    %126 = vector.shape_cast %125 : vector<1x32x8xf32> to vector<32x8xf32>
    %cst_86 = arith.constant dense<0.000000e+00> : vector<16x8xf32>
    %127 = tpu.matmul %31, %126, %cst_86 {dimension_numbers = #tpu.dot_dimension_numbers<[1], [0], [0], [1], [0, 0, 1, 1], [], []>} : vector<16x32xf32>, vector<32x8xf32>, vector<16x8xf32> -> vector<16x8xf32>
    %c2_87 = arith.constant 2 : index
    %c0_88 = arith.constant 0 : index
    %c0_89 = arith.constant 0 : index
    %128 = vector.load %arg11[%c2_87, %c0_88, %c0_89] : memref<8x1x8xf32, #tpu.memory_space<vmem>>, vector<1x1x8xf32>
    %129 = vector.shape_cast %128 : vector<1x1x8xf32> to vector<1x8xf32>
    %130 = vector.broadcast %129 : vector<1x8xf32> to vector<16x8xf32>
    %131 = arith.addf %127, %130 : vector<16x8xf32>
    %132 = vector.shape_cast %131 : vector<16x8xf32> to vector<2x8x8xf32>
    %c2_90 = arith.constant 2 : index
    %c0_91 = arith.constant 0 : index
    %c0_92 = arith.constant 0 : index
    %133 = vector.load %arg12[%c2_90, %c0_91, %c0_92] : memref<8x32x8xf32, #tpu.memory_space<vmem>>, vector<1x32x8xf32>
    %134 = vector.shape_cast %133 : vector<1x32x8xf32> to vector<32x8xf32>
    %cst_93 = arith.constant dense<0.000000e+00> : vector<16x8xf32>
    %135 = tpu.matmul %31, %134, %cst_93 {dimension_numbers = #tpu.dot_dimension_numbers<[1], [0], [0], [1], [0, 0, 1, 1], [], []>} : vector<16x32xf32>, vector<32x8xf32>, vector<16x8xf32> -> vector<16x8xf32>
    %c2_94 = arith.constant 2 : index
    %c0_95 = arith.constant 0 : index
    %c0_96 = arith.constant 0 : index
    %136 = vector.load %arg13[%c2_94, %c0_95, %c0_96] : memref<8x1x8xf32, #tpu.memory_space<vmem>>, vector<1x1x8xf32>
    %137 = vector.shape_cast %136 : vector<1x1x8xf32> to vector<1x8xf32>
    %138 = vector.broadcast %137 : vector<1x8xf32> to vector<16x8xf32>
    %139 = arith.addf %135, %138 : vector<16x8xf32>
    %140 = vector.shape_cast %139 : vector<16x8xf32> to vector<2x8x8xf32>
    "tpu.trace_start"() <{level = 10 : i32, message = "bqd,bkd->bqk"}> : () -> ()
    %cst_97 = arith.constant dense<0.000000e+00> : vector<2x8x8xf32>
    %141 = tpu.matmul %124, %132, %cst_97 {dimension_numbers = #tpu.dot_dimension_numbers<[2], [2], [1], [1], [0, 0, 0, 1, 1, 1], [0], [0]>} : vector<2x8x8xf32>, vector<2x8x8xf32>, vector<2x8x8xf32> -> vector<2x8x8xf32>
    "tpu.trace_stop"() : () -> ()
    %cst_98 = arith.constant 0.353553385 : f32
    %142 = vector.broadcast %cst_98 : f32 to vector<2x8x8xf32>
    %143 = arith.mulf %141, %142 : vector<2x8x8xf32>
    %cst_99 = arith.constant dense<0xFF800000> : vector<2x8xf32>
    %144 = vector.multi_reduction <maximumf>, %143, %cst_99 [2] : vector<2x8x8xf32> to vector<2x8xf32>
    %145 = vector.shape_cast %144 : vector<2x8xf32> to vector<2x8x1xf32>
    %146 = vector.broadcast %145 : vector<2x8x1xf32> to vector<2x8x8xf32>
    %147 = arith.subf %143, %146 : vector<2x8x8xf32>
    %148 = math.exp %147 : vector<2x8x8xf32>
    %cst_100 = arith.constant dense<0.000000e+00> : vector<2x8xf32>
    %149 = vector.multi_reduction <add>, %148, %cst_100 [2] : vector<2x8x8xf32> to vector<2x8xf32>
    %150 = vector.shape_cast %149 : vector<2x8xf32> to vector<2x8x1xf32>
    %151 = tpu.reciprocal %150 {approx = true} : vector<2x8x1xf32> -> vector<2x8x1xf32>
    %152 = vector.broadcast %151 : vector<2x8x1xf32> to vector<2x8x8xf32>
    %153 = arith.mulf %148, %152 : vector<2x8x8xf32>
    "tpu.trace_start"() <{level = 10 : i32, message = "bqk,bkd->bqd"}> : () -> ()
    %cst_101 = arith.constant dense<0.000000e+00> : vector<2x8x8xf32>
    %154 = tpu.matmul %153, %140, %cst_101 {dimension_numbers = #tpu.dot_dimension_numbers<[2], [1], [1], [2], [0, 0, 0, 1, 1, 2], [0], [0]>} : vector<2x8x8xf32>, vector<2x8x8xf32>, vector<2x8x8xf32> -> vector<2x8x8xf32>
    "tpu.trace_stop"() : () -> ()
    %155 = vector.shape_cast %154 : vector<2x8x8xf32> to vector<16x8xf32>
    %c2_102 = arith.constant 2 : index
    %c0_103 = arith.constant 0 : index
    %c0_104 = arith.constant 0 : index
    %156 = vector.load %arg14[%c2_102, %c0_103, %c0_104] : memref<8x8x32xf32, #tpu.memory_space<vmem>>, vector<1x8x32xf32>
    %157 = vector.shape_cast %156 : vector<1x8x32xf32> to vector<8x32xf32>
    %cst_105 = arith.constant dense<0.000000e+00> : vector<16x32xf32>
    %158 = tpu.matmul %155, %157, %cst_105 {dimension_numbers = #tpu.dot_dimension_numbers<[1], [0], [0], [1], [0, 0, 1, 1], [], []>} : vector<16x8xf32>, vector<8x32xf32>, vector<16x32xf32> -> vector<16x32xf32>
    %159 = arith.addf %116, %158 : vector<16x32xf32>
    %c3 = arith.constant 3 : index
    %c0_106 = arith.constant 0 : index
    %c0_107 = arith.constant 0 : index
    %160 = vector.load %arg8[%c3, %c0_106, %c0_107] : memref<8x32x8xf32, #tpu.memory_space<vmem>>, vector<1x32x8xf32>
    %161 = vector.shape_cast %160 : vector<1x32x8xf32> to vector<32x8xf32>
    %cst_108 = arith.constant dense<0.000000e+00> : vector<16x8xf32>
    %162 = tpu.matmul %31, %161, %cst_108 {dimension_numbers = #tpu.dot_dimension_numbers<[1], [0], [0], [1], [0, 0, 1, 1], [], []>} : vector<16x32xf32>, vector<32x8xf32>, vector<16x8xf32> -> vector<16x8xf32>
    %c3_109 = arith.constant 3 : index
    %c0_110 = arith.constant 0 : index
    %c0_111 = arith.constant 0 : index
    %163 = vector.load %arg9[%c3_109, %c0_110, %c0_111] : memref<8x1x8xf32, #tpu.memory_space<vmem>>, vector<1x1x8xf32>
    %164 = vector.shape_cast %163 : vector<1x1x8xf32> to vector<1x8xf32>
    %165 = vector.broadcast %164 : vector<1x8xf32> to vector<16x8xf32>
    %166 = arith.addf %162, %165 : vector<16x8xf32>
    %167 = vector.shape_cast %166 : vector<16x8xf32> to vector<2x8x8xf32>
    %c3_112 = arith.constant 3 : index
    %c0_113 = arith.constant 0 : index
    %c0_114 = arith.constant 0 : index
    %168 = vector.load %arg10[%c3_112, %c0_113, %c0_114] : memref<8x32x8xf32, #tpu.memory_space<vmem>>, vector<1x32x8xf32>
    %169 = vector.shape_cast %168 : vector<1x32x8xf32> to vector<32x8xf32>
    %cst_115 = arith.constant dense<0.000000e+00> : vector<16x8xf32>
    %170 = tpu.matmul %31, %169, %cst_115 {dimension_numbers = #tpu.dot_dimension_numbers<[1], [0], [0], [1], [0, 0, 1, 1], [], []>} : vector<16x32xf32>, vector<32x8xf32>, vector<16x8xf32> -> vector<16x8xf32>
    %c3_116 = arith.constant 3 : index
    %c0_117 = arith.constant 0 : index
    %c0_118 = arith.constant 0 : index
    %171 = vector.load %arg11[%c3_116, %c0_117, %c0_118] : memref<8x1x8xf32, #tpu.memory_space<vmem>>, vector<1x1x8xf32>
    %172 = vector.shape_cast %171 : vector<1x1x8xf32> to vector<1x8xf32>
    %173 = vector.broadcast %172 : vector<1x8xf32> to vector<16x8xf32>
    %174 = arith.addf %170, %173 : vector<16x8xf32>
    %175 = vector.shape_cast %174 : vector<16x8xf32> to vector<2x8x8xf32>
    %c3_119 = arith.constant 3 : index
    %c0_120 = arith.constant 0 : index
    %c0_121 = arith.constant 0 : index
    %176 = vector.load %arg12[%c3_119, %c0_120, %c0_121] : memref<8x32x8xf32, #tpu.memory_space<vmem>>, vector<1x32x8xf32>
    %177 = vector.shape_cast %176 : vector<1x32x8xf32> to vector<32x8xf32>
    %cst_122 = arith.constant dense<0.000000e+00> : vector<16x8xf32>
    %178 = tpu.matmul %31, %177, %cst_122 {dimension_numbers = #tpu.dot_dimension_numbers<[1], [0], [0], [1], [0, 0, 1, 1], [], []>} : vector<16x32xf32>, vector<32x8xf32>, vector<16x8xf32> -> vector<16x8xf32>
    %c3_123 = arith.constant 3 : index
    %c0_124 = arith.constant 0 : index
    %c0_125 = arith.constant 0 : index
    %179 = vector.load %arg13[%c3_123, %c0_124, %c0_125] : memref<8x1x8xf32, #tpu.memory_space<vmem>>, vector<1x1x8xf32>
    %180 = vector.shape_cast %179 : vector<1x1x8xf32> to vector<1x8xf32>
    %181 = vector.broadcast %180 : vector<1x8xf32> to vector<16x8xf32>
    %182 = arith.addf %178, %181 : vector<16x8xf32>
    %183 = vector.shape_cast %182 : vector<16x8xf32> to vector<2x8x8xf32>
    "tpu.trace_start"() <{level = 10 : i32, message = "bqd,bkd->bqk"}> : () -> ()
    %cst_126 = arith.constant dense<0.000000e+00> : vector<2x8x8xf32>
    %184 = tpu.matmul %167, %175, %cst_126 {dimension_numbers = #tpu.dot_dimension_numbers<[2], [2], [1], [1], [0, 0, 0, 1, 1, 1], [0], [0]>} : vector<2x8x8xf32>, vector<2x8x8xf32>, vector<2x8x8xf32> -> vector<2x8x8xf32>
    "tpu.trace_stop"() : () -> ()
    %cst_127 = arith.constant 0.353553385 : f32
    %185 = vector.broadcast %cst_127 : f32 to vector<2x8x8xf32>
    %186 = arith.mulf %184, %185 : vector<2x8x8xf32>
    %cst_128 = arith.constant dense<0xFF800000> : vector<2x8xf32>
    %187 = vector.multi_reduction <maximumf>, %186, %cst_128 [2] : vector<2x8x8xf32> to vector<2x8xf32>
    %188 = vector.shape_cast %187 : vector<2x8xf32> to vector<2x8x1xf32>
    %189 = vector.broadcast %188 : vector<2x8x1xf32> to vector<2x8x8xf32>
    %190 = arith.subf %186, %189 : vector<2x8x8xf32>
    %191 = math.exp %190 : vector<2x8x8xf32>
    %cst_129 = arith.constant dense<0.000000e+00> : vector<2x8xf32>
    %192 = vector.multi_reduction <add>, %191, %cst_129 [2] : vector<2x8x8xf32> to vector<2x8xf32>
    %193 = vector.shape_cast %192 : vector<2x8xf32> to vector<2x8x1xf32>
    %194 = tpu.reciprocal %193 {approx = true} : vector<2x8x1xf32> -> vector<2x8x1xf32>
    %195 = vector.broadcast %194 : vector<2x8x1xf32> to vector<2x8x8xf32>
    %196 = arith.mulf %191, %195 : vector<2x8x8xf32>
    "tpu.trace_start"() <{level = 10 : i32, message = "bqk,bkd->bqd"}> : () -> ()
    %cst_130 = arith.constant dense<0.000000e+00> : vector<2x8x8xf32>
    %197 = tpu.matmul %196, %183, %cst_130 {dimension_numbers = #tpu.dot_dimension_numbers<[2], [1], [1], [2], [0, 0, 0, 1, 1, 2], [0], [0]>} : vector<2x8x8xf32>, vector<2x8x8xf32>, vector<2x8x8xf32> -> vector<2x8x8xf32>
    "tpu.trace_stop"() : () -> ()
    %198 = vector.shape_cast %197 : vector<2x8x8xf32> to vector<16x8xf32>
    %c3_131 = arith.constant 3 : index
    %c0_132 = arith.constant 0 : index
    %c0_133 = arith.constant 0 : index
    %199 = vector.load %arg14[%c3_131, %c0_132, %c0_133] : memref<8x8x32xf32, #tpu.memory_space<vmem>>, vector<1x8x32xf32>
    %200 = vector.shape_cast %199 : vector<1x8x32xf32> to vector<8x32xf32>
    %cst_134 = arith.constant dense<0.000000e+00> : vector<16x32xf32>
    %201 = tpu.matmul %198, %200, %cst_134 {dimension_numbers = #tpu.dot_dimension_numbers<[1], [0], [0], [1], [0, 0, 1, 1], [], []>} : vector<16x8xf32>, vector<8x32xf32>, vector<16x32xf32> -> vector<16x32xf32>
    %202 = arith.addf %159, %201 : vector<16x32xf32>
    %203 = arith.addf %5, %202 : vector<16x32xf32>
    %c0_135 = arith.constant 0 : index
    %c0_136 = arith.constant 0 : index
    %c0_137 = arith.constant 0 : index
    %204 = vector.load %arg15[%c0_135, %c0_136, %c0_137] : memref<2x1x32xf32, #tpu.memory_space<vmem>>, vector<1x1x32xf32>
    %205 = vector.shape_cast %204 : vector<1x1x32xf32> to vector<1x32xf32>
    %206 = vector.broadcast %205 : vector<1x32xf32> to vector<16x32xf32>
    %207 = arith.addf %203, %206 : vector<16x32xf32>
    %c0_138 = arith.constant 0 : index
    %c0_139 = arith.constant 0 : index
    %c0_140 = arith.constant 0 : index
    %208 = vector.load %arg16[%c0_138, %c0_139, %c0_140] : memref<2x1x32xf32, #tpu.memory_space<vmem>>, vector<1x1x32xf32>
    %209 = vector.shape_cast %208 : vector<1x1x32xf32> to vector<1x32xf32>
    %c0_141 = arith.constant 0 : index
    %c0_142 = arith.constant 0 : index
    %c0_143 = arith.constant 0 : index
    %210 = vector.load %arg17[%c0_141, %c0_142, %c0_143] : memref<2x1x32xf32, #tpu.memory_space<vmem>>, vector<1x1x32xf32>
    %211 = vector.shape_cast %210 : vector<1x1x32xf32> to vector<1x32xf32>
    %cst_144 = arith.constant dense<0.000000e+00> : vector<16xf32>
    %212 = vector.multi_reduction <add>, %207, %cst_144 [1] : vector<16x32xf32> to vector<16xf32>
    %213 = vector.shape_cast %212 : vector<16xf32> to vector<16x1xf32>
    %cst_145 = arith.constant 3.200000e+01 : f32
    %214 = vector.broadcast %cst_145 : f32 to vector<16x1xf32>
    %215 = arith.divf %213, %214 : vector<16x1xf32>
    %216 = vector.broadcast %215 : vector<16x1xf32> to vector<16x32xf32>
    %217 = arith.subf %207, %216 : vector<16x32xf32>
    %218 = arith.mulf %217, %217 : vector<16x32xf32>
    %cst_146 = arith.constant dense<0.000000e+00> : vector<16xf32>
    %219 = vector.multi_reduction <add>, %218, %cst_146 [1] : vector<16x32xf32> to vector<16xf32>
    %220 = vector.shape_cast %219 : vector<16xf32> to vector<16x1xf32>
    %cst_147 = arith.constant 3.200000e+01 : f32
    %221 = vector.broadcast %cst_147 : f32 to vector<16x1xf32>
    %222 = arith.divf %220, %221 : vector<16x1xf32>
    %223 = vector.broadcast %215 : vector<16x1xf32> to vector<16x32xf32>
    %224 = arith.subf %207, %223 : vector<16x32xf32>
    %cst_148 = arith.constant 9.99999974E-6 : f32
    %225 = vector.broadcast %cst_148 : f32 to vector<16x1xf32>
    %226 = arith.addf %222, %225 : vector<16x1xf32>
    %227 = math.rsqrt %226 : vector<16x1xf32>
    %228 = vector.broadcast %227 : vector<16x1xf32> to vector<16x32xf32>
    %229 = arith.mulf %224, %228 : vector<16x32xf32>
    %230 = vector.broadcast %209 : vector<1x32xf32> to vector<16x32xf32>
    %231 = arith.mulf %229, %230 : vector<16x32xf32>
    %232 = vector.broadcast %211 : vector<1x32xf32> to vector<16x32xf32>
    %233 = arith.addf %231, %232 : vector<16x32xf32>
    %c0_149 = arith.constant 0 : index
    %c0_150 = arith.constant 0 : index
    %c0_151 = arith.constant 0 : index
    %234 = vector.load %arg18[%c0_149, %c0_150, %c0_151] : memref<2x32x64xf32, #tpu.memory_space<vmem>>, vector<1x32x64xf32>
    %235 = vector.shape_cast %234 : vector<1x32x64xf32> to vector<32x64xf32>
    %cst_152 = arith.constant dense<0.000000e+00> : vector<16x64xf32>
    %236 = tpu.matmul %233, %235, %cst_152 {dimension_numbers = #tpu.dot_dimension_numbers<[1], [0], [0], [1], [0, 0, 1, 1], [], []>} : vector<16x32xf32>, vector<32x64xf32>, vector<16x64xf32> -> vector<16x64xf32>
    %c0_153 = arith.constant 0 : index
    %c0_154 = arith.constant 0 : index
    %c0_155 = arith.constant 0 : index
    %237 = vector.load %arg19[%c0_153, %c0_154, %c0_155] : memref<2x1x64xf32, #tpu.memory_space<vmem>>, vector<1x1x64xf32>
    %238 = vector.shape_cast %237 : vector<1x1x64xf32> to vector<1x64xf32>
    %239 = vector.broadcast %238 : vector<1x64xf32> to vector<16x64xf32>
    %240 = arith.addf %236, %239 : vector<16x64xf32>
    %cst_156 = arith.constant 5.000000e-01 : f32
    %241 = vector.broadcast %cst_156 : f32 to vector<16x64xf32>
    %242 = arith.mulf %241, %240 : vector<16x64xf32>
    %cst_157 = arith.constant 4.471500e-02 : f32
    %243 = vector.broadcast %cst_157 : f32 to vector<16x64xf32>
    %244 = arith.mulf %243, %240 : vector<16x64xf32>
    %245 = arith.mulf %244, %240 : vector<16x64xf32>
    %246 = arith.mulf %245, %240 : vector<16x64xf32>
    %247 = arith.addf %240, %246 : vector<16x64xf32>
    %cst_158 = arith.constant 0.797884583 : f32
    %248 = vector.broadcast %cst_158 : f32 to vector<16x64xf32>
    %249 = arith.mulf %248, %247 : vector<16x64xf32>
    %250 = math.tanh %249 : vector<16x64xf32>
    %cst_159 = arith.constant 1.000000e+00 : f32
    %251 = vector.broadcast %cst_159 : f32 to vector<16x64xf32>
    %252 = arith.addf %251, %250 : vector<16x64xf32>
    %253 = arith.mulf %242, %252 : vector<16x64xf32>
    %c0_160 = arith.constant 0 : index
    %c0_161 = arith.constant 0 : index
    %c0_162 = arith.constant 0 : index
    %254 = vector.load %arg20[%c0_160, %c0_161, %c0_162] : memref<2x64x32xf32, #tpu.memory_space<vmem>>, vector<1x64x32xf32>
    %255 = vector.shape_cast %254 : vector<1x64x32xf32> to vector<64x32xf32>
    %cst_163 = arith.constant dense<0.000000e+00> : vector<16x32xf32>
    %256 = tpu.matmul %253, %255, %cst_163 {dimension_numbers = #tpu.dot_dimension_numbers<[1], [0], [0], [1], [0, 0, 1, 1], [], []>} : vector<16x64xf32>, vector<64x32xf32>, vector<16x32xf32> -> vector<16x32xf32>
    %257 = arith.addf %207, %256 : vector<16x32xf32>
    %c0_164 = arith.constant 0 : index
    %c0_165 = arith.constant 0 : index
    %c0_166 = arith.constant 0 : index
    %258 = vector.load %arg21[%c0_164, %c0_165, %c0_166] : memref<2x1x32xf32, #tpu.memory_space<vmem>>, vector<1x1x32xf32>
    %259 = vector.shape_cast %258 : vector<1x1x32xf32> to vector<1x32xf32>
    %260 = vector.broadcast %259 : vector<1x32xf32> to vector<16x32xf32>
    %261 = arith.addf %257, %260 : vector<16x32xf32>
    %c1_167 = arith.constant 1 : index
    %c0_168 = arith.constant 0 : index
    %c0_169 = arith.constant 0 : index
    %262 = vector.load %arg6[%c1_167, %c0_168, %c0_169] : memref<2x1x32xf32, #tpu.memory_space<vmem>>, vector<1x1x32xf32>
    %263 = vector.shape_cast %262 : vector<1x1x32xf32> to vector<1x32xf32>
    %c1_170 = arith.constant 1 : index
    %c0_171 = arith.constant 0 : index
    %c0_172 = arith.constant 0 : index
    %264 = vector.load %arg7[%c1_170, %c0_171, %c0_172] : memref<2x1x32xf32, #tpu.memory_space<vmem>>, vector<1x1x32xf32>
    %265 = vector.shape_cast %264 : vector<1x1x32xf32> to vector<1x32xf32>
    %cst_173 = arith.constant dense<0.000000e+00> : vector<16xf32>
    %266 = vector.multi_reduction <add>, %261, %cst_173 [1] : vector<16x32xf32> to vector<16xf32>
    %267 = vector.shape_cast %266 : vector<16xf32> to vector<16x1xf32>
    %cst_174 = arith.constant 3.200000e+01 : f32
    %268 = vector.broadcast %cst_174 : f32 to vector<16x1xf32>
    %269 = arith.divf %267, %268 : vector<16x1xf32>
    %270 = vector.broadcast %269 : vector<16x1xf32> to vector<16x32xf32>
    %271 = arith.subf %261, %270 : vector<16x32xf32>
    %272 = arith.mulf %271, %271 : vector<16x32xf32>
    %cst_175 = arith.constant dense<0.000000e+00> : vector<16xf32>
    %273 = vector.multi_reduction <add>, %272, %cst_175 [1] : vector<16x32xf32> to vector<16xf32>
    %274 = vector.shape_cast %273 : vector<16xf32> to vector<16x1xf32>
    %cst_176 = arith.constant 3.200000e+01 : f32
    %275 = vector.broadcast %cst_176 : f32 to vector<16x1xf32>
    %276 = arith.divf %274, %275 : vector<16x1xf32>
    %277 = vector.broadcast %269 : vector<16x1xf32> to vector<16x32xf32>
    %278 = arith.subf %261, %277 : vector<16x32xf32>
    %cst_177 = arith.constant 9.99999974E-6 : f32
    %279 = vector.broadcast %cst_177 : f32 to vector<16x1xf32>
    %280 = arith.addf %276, %279 : vector<16x1xf32>
    %281 = math.rsqrt %280 : vector<16x1xf32>
    %282 = vector.broadcast %281 : vector<16x1xf32> to vector<16x32xf32>
    %283 = arith.mulf %278, %282 : vector<16x32xf32>
    %284 = vector.broadcast %263 : vector<1x32xf32> to vector<16x32xf32>
    %285 = arith.mulf %283, %284 : vector<16x32xf32>
    %286 = vector.broadcast %265 : vector<1x32xf32> to vector<16x32xf32>
    %287 = arith.addf %285, %286 : vector<16x32xf32>
    %c4 = arith.constant 4 : index
    %c0_178 = arith.constant 0 : index
    %c0_179 = arith.constant 0 : index
    %288 = vector.load %arg8[%c4, %c0_178, %c0_179] : memref<8x32x8xf32, #tpu.memory_space<vmem>>, vector<1x32x8xf32>
    %289 = vector.shape_cast %288 : vector<1x32x8xf32> to vector<32x8xf32>
    %cst_180 = arith.constant dense<0.000000e+00> : vector<16x8xf32>
    %290 = tpu.matmul %287, %289, %cst_180 {dimension_numbers = #tpu.dot_dimension_numbers<[1], [0], [0], [1], [0, 0, 1, 1], [], []>} : vector<16x32xf32>, vector<32x8xf32>, vector<16x8xf32> -> vector<16x8xf32>
    %c4_181 = arith.constant 4 : index
    %c0_182 = arith.constant 0 : index
    %c0_183 = arith.constant 0 : index
    %291 = vector.load %arg9[%c4_181, %c0_182, %c0_183] : memref<8x1x8xf32, #tpu.memory_space<vmem>>, vector<1x1x8xf32>
    %292 = vector.shape_cast %291 : vector<1x1x8xf32> to vector<1x8xf32>
    %293 = vector.broadcast %292 : vector<1x8xf32> to vector<16x8xf32>
    %294 = arith.addf %290, %293 : vector<16x8xf32>
    %295 = vector.shape_cast %294 : vector<16x8xf32> to vector<2x8x8xf32>
    %c4_184 = arith.constant 4 : index
    %c0_185 = arith.constant 0 : index
    %c0_186 = arith.constant 0 : index
    %296 = vector.load %arg10[%c4_184, %c0_185, %c0_186] : memref<8x32x8xf32, #tpu.memory_space<vmem>>, vector<1x32x8xf32>
    %297 = vector.shape_cast %296 : vector<1x32x8xf32> to vector<32x8xf32>
    %cst_187 = arith.constant dense<0.000000e+00> : vector<16x8xf32>
    %298 = tpu.matmul %287, %297, %cst_187 {dimension_numbers = #tpu.dot_dimension_numbers<[1], [0], [0], [1], [0, 0, 1, 1], [], []>} : vector<16x32xf32>, vector<32x8xf32>, vector<16x8xf32> -> vector<16x8xf32>
    %c4_188 = arith.constant 4 : index
    %c0_189 = arith.constant 0 : index
    %c0_190 = arith.constant 0 : index
    %299 = vector.load %arg11[%c4_188, %c0_189, %c0_190] : memref<8x1x8xf32, #tpu.memory_space<vmem>>, vector<1x1x8xf32>
    %300 = vector.shape_cast %299 : vector<1x1x8xf32> to vector<1x8xf32>
    %301 = vector.broadcast %300 : vector<1x8xf32> to vector<16x8xf32>
    %302 = arith.addf %298, %301 : vector<16x8xf32>
    %303 = vector.shape_cast %302 : vector<16x8xf32> to vector<2x8x8xf32>
    %c4_191 = arith.constant 4 : index
    %c0_192 = arith.constant 0 : index
    %c0_193 = arith.constant 0 : index
    %304 = vector.load %arg12[%c4_191, %c0_192, %c0_193] : memref<8x32x8xf32, #tpu.memory_space<vmem>>, vector<1x32x8xf32>
    %305 = vector.shape_cast %304 : vector<1x32x8xf32> to vector<32x8xf32>
    %cst_194 = arith.constant dense<0.000000e+00> : vector<16x8xf32>
    %306 = tpu.matmul %287, %305, %cst_194 {dimension_numbers = #tpu.dot_dimension_numbers<[1], [0], [0], [1], [0, 0, 1, 1], [], []>} : vector<16x32xf32>, vector<32x8xf32>, vector<16x8xf32> -> vector<16x8xf32>
    %c4_195 = arith.constant 4 : index
    %c0_196 = arith.constant 0 : index
    %c0_197 = arith.constant 0 : index
    %307 = vector.load %arg13[%c4_195, %c0_196, %c0_197] : memref<8x1x8xf32, #tpu.memory_space<vmem>>, vector<1x1x8xf32>
    %308 = vector.shape_cast %307 : vector<1x1x8xf32> to vector<1x8xf32>
    %309 = vector.broadcast %308 : vector<1x8xf32> to vector<16x8xf32>
    %310 = arith.addf %306, %309 : vector<16x8xf32>
    %311 = vector.shape_cast %310 : vector<16x8xf32> to vector<2x8x8xf32>
    "tpu.trace_start"() <{level = 10 : i32, message = "bqd,bkd->bqk"}> : () -> ()
    %cst_198 = arith.constant dense<0.000000e+00> : vector<2x8x8xf32>
    %312 = tpu.matmul %295, %303, %cst_198 {dimension_numbers = #tpu.dot_dimension_numbers<[2], [2], [1], [1], [0, 0, 0, 1, 1, 1], [0], [0]>} : vector<2x8x8xf32>, vector<2x8x8xf32>, vector<2x8x8xf32> -> vector<2x8x8xf32>
    "tpu.trace_stop"() : () -> ()
    %cst_199 = arith.constant 0.353553385 : f32
    %313 = vector.broadcast %cst_199 : f32 to vector<2x8x8xf32>
    %314 = arith.mulf %312, %313 : vector<2x8x8xf32>
    %cst_200 = arith.constant dense<0xFF800000> : vector<2x8xf32>
    %315 = vector.multi_reduction <maximumf>, %314, %cst_200 [2] : vector<2x8x8xf32> to vector<2x8xf32>
    %316 = vector.shape_cast %315 : vector<2x8xf32> to vector<2x8x1xf32>
    %317 = vector.broadcast %316 : vector<2x8x1xf32> to vector<2x8x8xf32>
    %318 = arith.subf %314, %317 : vector<2x8x8xf32>
    %319 = math.exp %318 : vector<2x8x8xf32>
    %cst_201 = arith.constant dense<0.000000e+00> : vector<2x8xf32>
    %320 = vector.multi_reduction <add>, %319, %cst_201 [2] : vector<2x8x8xf32> to vector<2x8xf32>
    %321 = vector.shape_cast %320 : vector<2x8xf32> to vector<2x8x1xf32>
    %322 = tpu.reciprocal %321 {approx = true} : vector<2x8x1xf32> -> vector<2x8x1xf32>
    %323 = vector.broadcast %322 : vector<2x8x1xf32> to vector<2x8x8xf32>
    %324 = arith.mulf %319, %323 : vector<2x8x8xf32>
    "tpu.trace_start"() <{level = 10 : i32, message = "bqk,bkd->bqd"}> : () -> ()
    %cst_202 = arith.constant dense<0.000000e+00> : vector<2x8x8xf32>
    %325 = tpu.matmul %324, %311, %cst_202 {dimension_numbers = #tpu.dot_dimension_numbers<[2], [1], [1], [2], [0, 0, 0, 1, 1, 2], [0], [0]>} : vector<2x8x8xf32>, vector<2x8x8xf32>, vector<2x8x8xf32> -> vector<2x8x8xf32>
    "tpu.trace_stop"() : () -> ()
    %326 = vector.shape_cast %325 : vector<2x8x8xf32> to vector<16x8xf32>
    %c4_203 = arith.constant 4 : index
    %c0_204 = arith.constant 0 : index
    %c0_205 = arith.constant 0 : index
    %327 = vector.load %arg14[%c4_203, %c0_204, %c0_205] : memref<8x8x32xf32, #tpu.memory_space<vmem>>, vector<1x8x32xf32>
    %328 = vector.shape_cast %327 : vector<1x8x32xf32> to vector<8x32xf32>
    %cst_206 = arith.constant dense<0.000000e+00> : vector<16x32xf32>
    %329 = tpu.matmul %326, %328, %cst_206 {dimension_numbers = #tpu.dot_dimension_numbers<[1], [0], [0], [1], [0, 0, 1, 1], [], []>} : vector<16x8xf32>, vector<8x32xf32>, vector<16x32xf32> -> vector<16x32xf32>
    %c5 = arith.constant 5 : index
    %c0_207 = arith.constant 0 : index
    %c0_208 = arith.constant 0 : index
    %330 = vector.load %arg8[%c5, %c0_207, %c0_208] : memref<8x32x8xf32, #tpu.memory_space<vmem>>, vector<1x32x8xf32>
    %331 = vector.shape_cast %330 : vector<1x32x8xf32> to vector<32x8xf32>
    %cst_209 = arith.constant dense<0.000000e+00> : vector<16x8xf32>
    %332 = tpu.matmul %287, %331, %cst_209 {dimension_numbers = #tpu.dot_dimension_numbers<[1], [0], [0], [1], [0, 0, 1, 1], [], []>} : vector<16x32xf32>, vector<32x8xf32>, vector<16x8xf32> -> vector<16x8xf32>
    %c5_210 = arith.constant 5 : index
    %c0_211 = arith.constant 0 : index
    %c0_212 = arith.constant 0 : index
    %333 = vector.load %arg9[%c5_210, %c0_211, %c0_212] : memref<8x1x8xf32, #tpu.memory_space<vmem>>, vector<1x1x8xf32>
    %334 = vector.shape_cast %333 : vector<1x1x8xf32> to vector<1x8xf32>
    %335 = vector.broadcast %334 : vector<1x8xf32> to vector<16x8xf32>
    %336 = arith.addf %332, %335 : vector<16x8xf32>
    %337 = vector.shape_cast %336 : vector<16x8xf32> to vector<2x8x8xf32>
    %c5_213 = arith.constant 5 : index
    %c0_214 = arith.constant 0 : index
    %c0_215 = arith.constant 0 : index
    %338 = vector.load %arg10[%c5_213, %c0_214, %c0_215] : memref<8x32x8xf32, #tpu.memory_space<vmem>>, vector<1x32x8xf32>
    %339 = vector.shape_cast %338 : vector<1x32x8xf32> to vector<32x8xf32>
    %cst_216 = arith.constant dense<0.000000e+00> : vector<16x8xf32>
    %340 = tpu.matmul %287, %339, %cst_216 {dimension_numbers = #tpu.dot_dimension_numbers<[1], [0], [0], [1], [0, 0, 1, 1], [], []>} : vector<16x32xf32>, vector<32x8xf32>, vector<16x8xf32> -> vector<16x8xf32>
    %c5_217 = arith.constant 5 : index
    %c0_218 = arith.constant 0 : index
    %c0_219 = arith.constant 0 : index
    %341 = vector.load %arg11[%c5_217, %c0_218, %c0_219] : memref<8x1x8xf32, #tpu.memory_space<vmem>>, vector<1x1x8xf32>
    %342 = vector.shape_cast %341 : vector<1x1x8xf32> to vector<1x8xf32>
    %343 = vector.broadcast %342 : vector<1x8xf32> to vector<16x8xf32>
    %344 = arith.addf %340, %343 : vector<16x8xf32>
    %345 = vector.shape_cast %344 : vector<16x8xf32> to vector<2x8x8xf32>
    %c5_220 = arith.constant 5 : index
    %c0_221 = arith.constant 0 : index
    %c0_222 = arith.constant 0 : index
    %346 = vector.load %arg12[%c5_220, %c0_221, %c0_222] : memref<8x32x8xf32, #tpu.memory_space<vmem>>, vector<1x32x8xf32>
    %347 = vector.shape_cast %346 : vector<1x32x8xf32> to vector<32x8xf32>
    %cst_223 = arith.constant dense<0.000000e+00> : vector<16x8xf32>
    %348 = tpu.matmul %287, %347, %cst_223 {dimension_numbers = #tpu.dot_dimension_numbers<[1], [0], [0], [1], [0, 0, 1, 1], [], []>} : vector<16x32xf32>, vector<32x8xf32>, vector<16x8xf32> -> vector<16x8xf32>
    %c5_224 = arith.constant 5 : index
    %c0_225 = arith.constant 0 : index
    %c0_226 = arith.constant 0 : index
    %349 = vector.load %arg13[%c5_224, %c0_225, %c0_226] : memref<8x1x8xf32, #tpu.memory_space<vmem>>, vector<1x1x8xf32>
    %350 = vector.shape_cast %349 : vector<1x1x8xf32> to vector<1x8xf32>
    %351 = vector.broadcast %350 : vector<1x8xf32> to vector<16x8xf32>
    %352 = arith.addf %348, %351 : vector<16x8xf32>
    %353 = vector.shape_cast %352 : vector<16x8xf32> to vector<2x8x8xf32>
    "tpu.trace_start"() <{level = 10 : i32, message = "bqd,bkd->bqk"}> : () -> ()
    %cst_227 = arith.constant dense<0.000000e+00> : vector<2x8x8xf32>
    %354 = tpu.matmul %337, %345, %cst_227 {dimension_numbers = #tpu.dot_dimension_numbers<[2], [2], [1], [1], [0, 0, 0, 1, 1, 1], [0], [0]>} : vector<2x8x8xf32>, vector<2x8x8xf32>, vector<2x8x8xf32> -> vector<2x8x8xf32>
    "tpu.trace_stop"() : () -> ()
    %cst_228 = arith.constant 0.353553385 : f32
    %355 = vector.broadcast %cst_228 : f32 to vector<2x8x8xf32>
    %356 = arith.mulf %354, %355 : vector<2x8x8xf32>
    %cst_229 = arith.constant dense<0xFF800000> : vector<2x8xf32>
    %357 = vector.multi_reduction <maximumf>, %356, %cst_229 [2] : vector<2x8x8xf32> to vector<2x8xf32>
    %358 = vector.shape_cast %357 : vector<2x8xf32> to vector<2x8x1xf32>
    %359 = vector.broadcast %358 : vector<2x8x1xf32> to vector<2x8x8xf32>
    %360 = arith.subf %356, %359 : vector<2x8x8xf32>
    %361 = math.exp %360 : vector<2x8x8xf32>
    %cst_230 = arith.constant dense<0.000000e+00> : vector<2x8xf32>
    %362 = vector.multi_reduction <add>, %361, %cst_230 [2] : vector<2x8x8xf32> to vector<2x8xf32>
    %363 = vector.shape_cast %362 : vector<2x8xf32> to vector<2x8x1xf32>
    %364 = tpu.reciprocal %363 {approx = true} : vector<2x8x1xf32> -> vector<2x8x1xf32>
    %365 = vector.broadcast %364 : vector<2x8x1xf32> to vector<2x8x8xf32>
    %366 = arith.mulf %361, %365 : vector<2x8x8xf32>
    "tpu.trace_start"() <{level = 10 : i32, message = "bqk,bkd->bqd"}> : () -> ()
    %cst_231 = arith.constant dense<0.000000e+00> : vector<2x8x8xf32>
    %367 = tpu.matmul %366, %353, %cst_231 {dimension_numbers = #tpu.dot_dimension_numbers<[2], [1], [1], [2], [0, 0, 0, 1, 1, 2], [0], [0]>} : vector<2x8x8xf32>, vector<2x8x8xf32>, vector<2x8x8xf32> -> vector<2x8x8xf32>
    "tpu.trace_stop"() : () -> ()
    %368 = vector.shape_cast %367 : vector<2x8x8xf32> to vector<16x8xf32>
    %c5_232 = arith.constant 5 : index
    %c0_233 = arith.constant 0 : index
    %c0_234 = arith.constant 0 : index
    %369 = vector.load %arg14[%c5_232, %c0_233, %c0_234] : memref<8x8x32xf32, #tpu.memory_space<vmem>>, vector<1x8x32xf32>
    %370 = vector.shape_cast %369 : vector<1x8x32xf32> to vector<8x32xf32>
    %cst_235 = arith.constant dense<0.000000e+00> : vector<16x32xf32>
    %371 = tpu.matmul %368, %370, %cst_235 {dimension_numbers = #tpu.dot_dimension_numbers<[1], [0], [0], [1], [0, 0, 1, 1], [], []>} : vector<16x8xf32>, vector<8x32xf32>, vector<16x32xf32> -> vector<16x32xf32>
    %372 = arith.addf %329, %371 : vector<16x32xf32>
    %c6 = arith.constant 6 : index
    %c0_236 = arith.constant 0 : index
    %c0_237 = arith.constant 0 : index
    %373 = vector.load %arg8[%c6, %c0_236, %c0_237] : memref<8x32x8xf32, #tpu.memory_space<vmem>>, vector<1x32x8xf32>
    %374 = vector.shape_cast %373 : vector<1x32x8xf32> to vector<32x8xf32>
    %cst_238 = arith.constant dense<0.000000e+00> : vector<16x8xf32>
    %375 = tpu.matmul %287, %374, %cst_238 {dimension_numbers = #tpu.dot_dimension_numbers<[1], [0], [0], [1], [0, 0, 1, 1], [], []>} : vector<16x32xf32>, vector<32x8xf32>, vector<16x8xf32> -> vector<16x8xf32>
    %c6_239 = arith.constant 6 : index
    %c0_240 = arith.constant 0 : index
    %c0_241 = arith.constant 0 : index
    %376 = vector.load %arg9[%c6_239, %c0_240, %c0_241] : memref<8x1x8xf32, #tpu.memory_space<vmem>>, vector<1x1x8xf32>
    %377 = vector.shape_cast %376 : vector<1x1x8xf32> to vector<1x8xf32>
    %378 = vector.broadcast %377 : vector<1x8xf32> to vector<16x8xf32>
    %379 = arith.addf %375, %378 : vector<16x8xf32>
    %380 = vector.shape_cast %379 : vector<16x8xf32> to vector<2x8x8xf32>
    %c6_242 = arith.constant 6 : index
    %c0_243 = arith.constant 0 : index
    %c0_244 = arith.constant 0 : index
    %381 = vector.load %arg10[%c6_242, %c0_243, %c0_244] : memref<8x32x8xf32, #tpu.memory_space<vmem>>, vector<1x32x8xf32>
    %382 = vector.shape_cast %381 : vector<1x32x8xf32> to vector<32x8xf32>
    %cst_245 = arith.constant dense<0.000000e+00> : vector<16x8xf32>
    %383 = tpu.matmul %287, %382, %cst_245 {dimension_numbers = #tpu.dot_dimension_numbers<[1], [0], [0], [1], [0, 0, 1, 1], [], []>} : vector<16x32xf32>, vector<32x8xf32>, vector<16x8xf32> -> vector<16x8xf32>
    %c6_246 = arith.constant 6 : index
    %c0_247 = arith.constant 0 : index
    %c0_248 = arith.constant 0 : index
    %384 = vector.load %arg11[%c6_246, %c0_247, %c0_248] : memref<8x1x8xf32, #tpu.memory_space<vmem>>, vector<1x1x8xf32>
    %385 = vector.shape_cast %384 : vector<1x1x8xf32> to vector<1x8xf32>
    %386 = vector.broadcast %385 : vector<1x8xf32> to vector<16x8xf32>
    %387 = arith.addf %383, %386 : vector<16x8xf32>
    %388 = vector.shape_cast %387 : vector<16x8xf32> to vector<2x8x8xf32>
    %c6_249 = arith.constant 6 : index
    %c0_250 = arith.constant 0 : index
    %c0_251 = arith.constant 0 : index
    %389 = vector.load %arg12[%c6_249, %c0_250, %c0_251] : memref<8x32x8xf32, #tpu.memory_space<vmem>>, vector<1x32x8xf32>
    %390 = vector.shape_cast %389 : vector<1x32x8xf32> to vector<32x8xf32>
    %cst_252 = arith.constant dense<0.000000e+00> : vector<16x8xf32>
    %391 = tpu.matmul %287, %390, %cst_252 {dimension_numbers = #tpu.dot_dimension_numbers<[1], [0], [0], [1], [0, 0, 1, 1], [], []>} : vector<16x32xf32>, vector<32x8xf32>, vector<16x8xf32> -> vector<16x8xf32>
    %c6_253 = arith.constant 6 : index
    %c0_254 = arith.constant 0 : index
    %c0_255 = arith.constant 0 : index
    %392 = vector.load %arg13[%c6_253, %c0_254, %c0_255] : memref<8x1x8xf32, #tpu.memory_space<vmem>>, vector<1x1x8xf32>
    %393 = vector.shape_cast %392 : vector<1x1x8xf32> to vector<1x8xf32>
    %394 = vector.broadcast %393 : vector<1x8xf32> to vector<16x8xf32>
    %395 = arith.addf %391, %394 : vector<16x8xf32>
    %396 = vector.shape_cast %395 : vector<16x8xf32> to vector<2x8x8xf32>
    "tpu.trace_start"() <{level = 10 : i32, message = "bqd,bkd->bqk"}> : () -> ()
    %cst_256 = arith.constant dense<0.000000e+00> : vector<2x8x8xf32>
    %397 = tpu.matmul %380, %388, %cst_256 {dimension_numbers = #tpu.dot_dimension_numbers<[2], [2], [1], [1], [0, 0, 0, 1, 1, 1], [0], [0]>} : vector<2x8x8xf32>, vector<2x8x8xf32>, vector<2x8x8xf32> -> vector<2x8x8xf32>
    "tpu.trace_stop"() : () -> ()
    %cst_257 = arith.constant 0.353553385 : f32
    %398 = vector.broadcast %cst_257 : f32 to vector<2x8x8xf32>
    %399 = arith.mulf %397, %398 : vector<2x8x8xf32>
    %cst_258 = arith.constant dense<0xFF800000> : vector<2x8xf32>
    %400 = vector.multi_reduction <maximumf>, %399, %cst_258 [2] : vector<2x8x8xf32> to vector<2x8xf32>
    %401 = vector.shape_cast %400 : vector<2x8xf32> to vector<2x8x1xf32>
    %402 = vector.broadcast %401 : vector<2x8x1xf32> to vector<2x8x8xf32>
    %403 = arith.subf %399, %402 : vector<2x8x8xf32>
    %404 = math.exp %403 : vector<2x8x8xf32>
    %cst_259 = arith.constant dense<0.000000e+00> : vector<2x8xf32>
    %405 = vector.multi_reduction <add>, %404, %cst_259 [2] : vector<2x8x8xf32> to vector<2x8xf32>
    %406 = vector.shape_cast %405 : vector<2x8xf32> to vector<2x8x1xf32>
    %407 = tpu.reciprocal %406 {approx = true} : vector<2x8x1xf32> -> vector<2x8x1xf32>
    %408 = vector.broadcast %407 : vector<2x8x1xf32> to vector<2x8x8xf32>
    %409 = arith.mulf %404, %408 : vector<2x8x8xf32>
    "tpu.trace_start"() <{level = 10 : i32, message = "bqk,bkd->bqd"}> : () -> ()
    %cst_260 = arith.constant dense<0.000000e+00> : vector<2x8x8xf32>
    %410 = tpu.matmul %409, %396, %cst_260 {dimension_numbers = #tpu.dot_dimension_numbers<[2], [1], [1], [2], [0, 0, 0, 1, 1, 2], [0], [0]>} : vector<2x8x8xf32>, vector<2x8x8xf32>, vector<2x8x8xf32> -> vector<2x8x8xf32>
    "tpu.trace_stop"() : () -> ()
    %411 = vector.shape_cast %410 : vector<2x8x8xf32> to vector<16x8xf32>
    %c6_261 = arith.constant 6 : index
    %c0_262 = arith.constant 0 : index
    %c0_263 = arith.constant 0 : index
    %412 = vector.load %arg14[%c6_261, %c0_262, %c0_263] : memref<8x8x32xf32, #tpu.memory_space<vmem>>, vector<1x8x32xf32>
    %413 = vector.shape_cast %412 : vector<1x8x32xf32> to vector<8x32xf32>
    %cst_264 = arith.constant dense<0.000000e+00> : vector<16x32xf32>
    %414 = tpu.matmul %411, %413, %cst_264 {dimension_numbers = #tpu.dot_dimension_numbers<[1], [0], [0], [1], [0, 0, 1, 1], [], []>} : vector<16x8xf32>, vector<8x32xf32>, vector<16x32xf32> -> vector<16x32xf32>
    %415 = arith.addf %372, %414 : vector<16x32xf32>
    %c7 = arith.constant 7 : index
    %c0_265 = arith.constant 0 : index
    %c0_266 = arith.constant 0 : index
    %416 = vector.load %arg8[%c7, %c0_265, %c0_266] : memref<8x32x8xf32, #tpu.memory_space<vmem>>, vector<1x32x8xf32>
    %417 = vector.shape_cast %416 : vector<1x32x8xf32> to vector<32x8xf32>
    %cst_267 = arith.constant dense<0.000000e+00> : vector<16x8xf32>
    %418 = tpu.matmul %287, %417, %cst_267 {dimension_numbers = #tpu.dot_dimension_numbers<[1], [0], [0], [1], [0, 0, 1, 1], [], []>} : vector<16x32xf32>, vector<32x8xf32>, vector<16x8xf32> -> vector<16x8xf32>
    %c7_268 = arith.constant 7 : index
    %c0_269 = arith.constant 0 : index
    %c0_270 = arith.constant 0 : index
    %419 = vector.load %arg9[%c7_268, %c0_269, %c0_270] : memref<8x1x8xf32, #tpu.memory_space<vmem>>, vector<1x1x8xf32>
    %420 = vector.shape_cast %419 : vector<1x1x8xf32> to vector<1x8xf32>
    %421 = vector.broadcast %420 : vector<1x8xf32> to vector<16x8xf32>
    %422 = arith.addf %418, %421 : vector<16x8xf32>
    %423 = vector.shape_cast %422 : vector<16x8xf32> to vector<2x8x8xf32>
    %c7_271 = arith.constant 7 : index
    %c0_272 = arith.constant 0 : index
    %c0_273 = arith.constant 0 : index
    %424 = vector.load %arg10[%c7_271, %c0_272, %c0_273] : memref<8x32x8xf32, #tpu.memory_space<vmem>>, vector<1x32x8xf32>
    %425 = vector.shape_cast %424 : vector<1x32x8xf32> to vector<32x8xf32>
    %cst_274 = arith.constant dense<0.000000e+00> : vector<16x8xf32>
    %426 = tpu.matmul %287, %425, %cst_274 {dimension_numbers = #tpu.dot_dimension_numbers<[1], [0], [0], [1], [0, 0, 1, 1], [], []>} : vector<16x32xf32>, vector<32x8xf32>, vector<16x8xf32> -> vector<16x8xf32>
    %c7_275 = arith.constant 7 : index
    %c0_276 = arith.constant 0 : index
    %c0_277 = arith.constant 0 : index
    %427 = vector.load %arg11[%c7_275, %c0_276, %c0_277] : memref<8x1x8xf32, #tpu.memory_space<vmem>>, vector<1x1x8xf32>
    %428 = vector.shape_cast %427 : vector<1x1x8xf32> to vector<1x8xf32>
    %429 = vector.broadcast %428 : vector<1x8xf32> to vector<16x8xf32>
    %430 = arith.addf %426, %429 : vector<16x8xf32>
    %431 = vector.shape_cast %430 : vector<16x8xf32> to vector<2x8x8xf32>
    %c7_278 = arith.constant 7 : index
    %c0_279 = arith.constant 0 : index
    %c0_280 = arith.constant 0 : index
    %432 = vector.load %arg12[%c7_278, %c0_279, %c0_280] : memref<8x32x8xf32, #tpu.memory_space<vmem>>, vector<1x32x8xf32>
    %433 = vector.shape_cast %432 : vector<1x32x8xf32> to vector<32x8xf32>
    %cst_281 = arith.constant dense<0.000000e+00> : vector<16x8xf32>
    %434 = tpu.matmul %287, %433, %cst_281 {dimension_numbers = #tpu.dot_dimension_numbers<[1], [0], [0], [1], [0, 0, 1, 1], [], []>} : vector<16x32xf32>, vector<32x8xf32>, vector<16x8xf32> -> vector<16x8xf32>
    %c7_282 = arith.constant 7 : index
    %c0_283 = arith.constant 0 : index
    %c0_284 = arith.constant 0 : index
    %435 = vector.load %arg13[%c7_282, %c0_283, %c0_284] : memref<8x1x8xf32, #tpu.memory_space<vmem>>, vector<1x1x8xf32>
    %436 = vector.shape_cast %435 : vector<1x1x8xf32> to vector<1x8xf32>
    %437 = vector.broadcast %436 : vector<1x8xf32> to vector<16x8xf32>
    %438 = arith.addf %434, %437 : vector<16x8xf32>
    %439 = vector.shape_cast %438 : vector<16x8xf32> to vector<2x8x8xf32>
    "tpu.trace_start"() <{level = 10 : i32, message = "bqd,bkd->bqk"}> : () -> ()
    %cst_285 = arith.constant dense<0.000000e+00> : vector<2x8x8xf32>
    %440 = tpu.matmul %423, %431, %cst_285 {dimension_numbers = #tpu.dot_dimension_numbers<[2], [2], [1], [1], [0, 0, 0, 1, 1, 1], [0], [0]>} : vector<2x8x8xf32>, vector<2x8x8xf32>, vector<2x8x8xf32> -> vector<2x8x8xf32>
    "tpu.trace_stop"() : () -> ()
    %cst_286 = arith.constant 0.353553385 : f32
    %441 = vector.broadcast %cst_286 : f32 to vector<2x8x8xf32>
    %442 = arith.mulf %440, %441 : vector<2x8x8xf32>
    %cst_287 = arith.constant dense<0xFF800000> : vector<2x8xf32>
    %443 = vector.multi_reduction <maximumf>, %442, %cst_287 [2] : vector<2x8x8xf32> to vector<2x8xf32>
    %444 = vector.shape_cast %443 : vector<2x8xf32> to vector<2x8x1xf32>
    %445 = vector.broadcast %444 : vector<2x8x1xf32> to vector<2x8x8xf32>
    %446 = arith.subf %442, %445 : vector<2x8x8xf32>
    %447 = math.exp %446 : vector<2x8x8xf32>
    %cst_288 = arith.constant dense<0.000000e+00> : vector<2x8xf32>
    %448 = vector.multi_reduction <add>, %447, %cst_288 [2] : vector<2x8x8xf32> to vector<2x8xf32>
    %449 = vector.shape_cast %448 : vector<2x8xf32> to vector<2x8x1xf32>
    %450 = tpu.reciprocal %449 {approx = true} : vector<2x8x1xf32> -> vector<2x8x1xf32>
    %451 = vector.broadcast %450 : vector<2x8x1xf32> to vector<2x8x8xf32>
    %452 = arith.mulf %447, %451 : vector<2x8x8xf32>
    "tpu.trace_start"() <{level = 10 : i32, message = "bqk,bkd->bqd"}> : () -> ()
    %cst_289 = arith.constant dense<0.000000e+00> : vector<2x8x8xf32>
    %453 = tpu.matmul %452, %439, %cst_289 {dimension_numbers = #tpu.dot_dimension_numbers<[2], [1], [1], [2], [0, 0, 0, 1, 1, 2], [0], [0]>} : vector<2x8x8xf32>, vector<2x8x8xf32>, vector<2x8x8xf32> -> vector<2x8x8xf32>
    "tpu.trace_stop"() : () -> ()
    %454 = vector.shape_cast %453 : vector<2x8x8xf32> to vector<16x8xf32>
    %c7_290 = arith.constant 7 : index
    %c0_291 = arith.constant 0 : index
    %c0_292 = arith.constant 0 : index
    %455 = vector.load %arg14[%c7_290, %c0_291, %c0_292] : memref<8x8x32xf32, #tpu.memory_space<vmem>>, vector<1x8x32xf32>
    %456 = vector.shape_cast %455 : vector<1x8x32xf32> to vector<8x32xf32>
    %cst_293 = arith.constant dense<0.000000e+00> : vector<16x32xf32>
    %457 = tpu.matmul %454, %456, %cst_293 {dimension_numbers = #tpu.dot_dimension_numbers<[1], [0], [0], [1], [0, 0, 1, 1], [], []>} : vector<16x8xf32>, vector<8x32xf32>, vector<16x32xf32> -> vector<16x32xf32>
    %458 = arith.addf %415, %457 : vector<16x32xf32>
    %459 = arith.addf %261, %458 : vector<16x32xf32>
    %c1_294 = arith.constant 1 : index
    %c0_295 = arith.constant 0 : index
    %c0_296 = arith.constant 0 : index
    %460 = vector.load %arg15[%c1_294, %c0_295, %c0_296] : memref<2x1x32xf32, #tpu.memory_space<vmem>>, vector<1x1x32xf32>
    %461 = vector.shape_cast %460 : vector<1x1x32xf32> to vector<1x32xf32>
    %462 = vector.broadcast %461 : vector<1x32xf32> to vector<16x32xf32>
    %463 = arith.addf %459, %462 : vector<16x32xf32>
    %c1_297 = arith.constant 1 : index
    %c0_298 = arith.constant 0 : index
    %c0_299 = arith.constant 0 : index
    %464 = vector.load %arg16[%c1_297, %c0_298, %c0_299] : memref<2x1x32xf32, #tpu.memory_space<vmem>>, vector<1x1x32xf32>
    %465 = vector.shape_cast %464 : vector<1x1x32xf32> to vector<1x32xf32>
    %c1_300 = arith.constant 1 : index
    %c0_301 = arith.constant 0 : index
    %c0_302 = arith.constant 0 : index
    %466 = vector.load %arg17[%c1_300, %c0_301, %c0_302] : memref<2x1x32xf32, #tpu.memory_space<vmem>>, vector<1x1x32xf32>
    %467 = vector.shape_cast %466 : vector<1x1x32xf32> to vector<1x32xf32>
    %cst_303 = arith.constant dense<0.000000e+00> : vector<16xf32>
    %468 = vector.multi_reduction <add>, %463, %cst_303 [1] : vector<16x32xf32> to vector<16xf32>
    %469 = vector.shape_cast %468 : vector<16xf32> to vector<16x1xf32>
    %cst_304 = arith.constant 3.200000e+01 : f32
    %470 = vector.broadcast %cst_304 : f32 to vector<16x1xf32>
    %471 = arith.divf %469, %470 : vector<16x1xf32>
    %472 = vector.broadcast %471 : vector<16x1xf32> to vector<16x32xf32>
    %473 = arith.subf %463, %472 : vector<16x32xf32>
    %474 = arith.mulf %473, %473 : vector<16x32xf32>
    %cst_305 = arith.constant dense<0.000000e+00> : vector<16xf32>
    %475 = vector.multi_reduction <add>, %474, %cst_305 [1] : vector<16x32xf32> to vector<16xf32>
    %476 = vector.shape_cast %475 : vector<16xf32> to vector<16x1xf32>
    %cst_306 = arith.constant 3.200000e+01 : f32
    %477 = vector.broadcast %cst_306 : f32 to vector<16x1xf32>
    %478 = arith.divf %476, %477 : vector<16x1xf32>
    %479 = vector.broadcast %471 : vector<16x1xf32> to vector<16x32xf32>
    %480 = arith.subf %463, %479 : vector<16x32xf32>
    %cst_307 = arith.constant 9.99999974E-6 : f32
    %481 = vector.broadcast %cst_307 : f32 to vector<16x1xf32>
    %482 = arith.addf %478, %481 : vector<16x1xf32>
    %483 = math.rsqrt %482 : vector<16x1xf32>
    %484 = vector.broadcast %483 : vector<16x1xf32> to vector<16x32xf32>
    %485 = arith.mulf %480, %484 : vector<16x32xf32>
    %486 = vector.broadcast %465 : vector<1x32xf32> to vector<16x32xf32>
    %487 = arith.mulf %485, %486 : vector<16x32xf32>
    %488 = vector.broadcast %467 : vector<1x32xf32> to vector<16x32xf32>
    %489 = arith.addf %487, %488 : vector<16x32xf32>
    %c1_308 = arith.constant 1 : index
    %c0_309 = arith.constant 0 : index
    %c0_310 = arith.constant 0 : index
    %490 = vector.load %arg18[%c1_308, %c0_309, %c0_310] : memref<2x32x64xf32, #tpu.memory_space<vmem>>, vector<1x32x64xf32>
    %491 = vector.shape_cast %490 : vector<1x32x64xf32> to vector<32x64xf32>
    %cst_311 = arith.constant dense<0.000000e+00> : vector<16x64xf32>
    %492 = tpu.matmul %489, %491, %cst_311 {dimension_numbers = #tpu.dot_dimension_numbers<[1], [0], [0], [1], [0, 0, 1, 1], [], []>} : vector<16x32xf32>, vector<32x64xf32>, vector<16x64xf32> -> vector<16x64xf32>
    %c1_312 = arith.constant 1 : index
    %c0_313 = arith.constant 0 : index
    %c0_314 = arith.constant 0 : index
    %493 = vector.load %arg19[%c1_312, %c0_313, %c0_314] : memref<2x1x64xf32, #tpu.memory_space<vmem>>, vector<1x1x64xf32>
    %494 = vector.shape_cast %493 : vector<1x1x64xf32> to vector<1x64xf32>
    %495 = vector.broadcast %494 : vector<1x64xf32> to vector<16x64xf32>
    %496 = arith.addf %492, %495 : vector<16x64xf32>
    %cst_315 = arith.constant 5.000000e-01 : f32
    %497 = vector.broadcast %cst_315 : f32 to vector<16x64xf32>
    %498 = arith.mulf %497, %496 : vector<16x64xf32>
    %cst_316 = arith.constant 4.471500e-02 : f32
    %499 = vector.broadcast %cst_316 : f32 to vector<16x64xf32>
    %500 = arith.mulf %499, %496 : vector<16x64xf32>
    %501 = arith.mulf %500, %496 : vector<16x64xf32>
    %502 = arith.mulf %501, %496 : vector<16x64xf32>
    %503 = arith.addf %496, %502 : vector<16x64xf32>
    %cst_317 = arith.constant 0.797884583 : f32
    %504 = vector.broadcast %cst_317 : f32 to vector<16x64xf32>
    %505 = arith.mulf %504, %503 : vector<16x64xf32>
    %506 = math.tanh %505 : vector<16x64xf32>
    %cst_318 = arith.constant 1.000000e+00 : f32
    %507 = vector.broadcast %cst_318 : f32 to vector<16x64xf32>
    %508 = arith.addf %507, %506 : vector<16x64xf32>
    %509 = arith.mulf %498, %508 : vector<16x64xf32>
    %c1_319 = arith.constant 1 : index
    %c0_320 = arith.constant 0 : index
    %c0_321 = arith.constant 0 : index
    %510 = vector.load %arg20[%c1_319, %c0_320, %c0_321] : memref<2x64x32xf32, #tpu.memory_space<vmem>>, vector<1x64x32xf32>
    %511 = vector.shape_cast %510 : vector<1x64x32xf32> to vector<64x32xf32>
    %cst_322 = arith.constant dense<0.000000e+00> : vector<16x32xf32>
    %512 = tpu.matmul %509, %511, %cst_322 {dimension_numbers = #tpu.dot_dimension_numbers<[1], [0], [0], [1], [0, 0, 1, 1], [], []>} : vector<16x64xf32>, vector<64x32xf32>, vector<16x32xf32> -> vector<16x32xf32>
    %513 = arith.addf %463, %512 : vector<16x32xf32>
    %c1_323 = arith.constant 1 : index
    %c0_324 = arith.constant 0 : index
    %c0_325 = arith.constant 0 : index
    %514 = vector.load %arg21[%c1_323, %c0_324, %c0_325] : memref<2x1x32xf32, #tpu.memory_space<vmem>>, vector<1x1x32xf32>
    %515 = vector.shape_cast %514 : vector<1x1x32xf32> to vector<1x32xf32>
    %516 = vector.broadcast %515 : vector<1x32xf32> to vector<16x32xf32>
    %517 = arith.addf %513, %516 : vector<16x32xf32>
    %cst_326 = arith.constant dense<0.000000e+00> : vector<2x32xf32>
    %518 = tpu.matmul %1, %517, %cst_326 {dimension_numbers = #tpu.dot_dimension_numbers<[1], [0], [0], [1], [0, 0, 1, 1], [], []>} : vector<2x16xf32>, vector<16x32xf32>, vector<2x32xf32> -> vector<2x32xf32>
    %c0_327 = arith.constant 0 : index
    %c0_328 = arith.constant 0 : index
    %519 = vector.load %arg2[%c0_327, %c0_328] : memref<16x1xf32, #tpu.memory_space<vmem>>, vector<16x1xf32>
    %c0_329 = arith.constant 0 : index
    %c0_330 = arith.constant 0 : index
    %520 = vector.load %arg3[%c0_329, %c0_330] : memref<16x1xf32, #tpu.memory_space<vmem>>, vector<16x1xf32>
    %521 = vector.extract_strided_slice %0 {offsets = [15, 0], sizes = [1, 16], strides = [1, 1]} : vector<16x16xf32> to vector<1x16xf32>
    %522 = vector.extract_strided_slice %0 {offsets = [0, 0], sizes = [15, 16], strides = [1, 1]} : vector<16x16xf32> to vector<15x16xf32>
    %523 = tpu.concatenate %521, %522 in 0 : vector<1x16xf32>, vector<15x16xf32> -> vector<16x16xf32>
    %524 = vector.broadcast %519 : vector<16x1xf32> to vector<16x16xf32>
    %525 = arith.mulf %523, %524 : vector<16x16xf32>
    %526 = vector.extract_strided_slice %0 {offsets = [1, 0], sizes = [15, 16], strides = [1, 1]} : vector<16x16xf32> to vector<15x16xf32>
    %527 = vector.extract_strided_slice %0 {offsets = [0, 0], sizes = [1, 16], strides = [1, 1]} : vector<16x16xf32> to vector<1x16xf32>
    %528 = tpu.concatenate %526, %527 in 0 : vector<15x16xf32>, vector<1x16xf32> -> vector<16x16xf32>
    %529 = vector.broadcast %520 : vector<16x1xf32> to vector<16x16xf32>
    %530 = arith.mulf %528, %529 : vector<16x16xf32>
    %c0_331 = arith.constant 0 : index
    %c0_332 = arith.constant 0 : index
    %c0_333 = arith.constant 0 : index
    %531 = vector.load %arg22[%c0_331, %c0_332, %c0_333] : memref<3x16x64xf32, #tpu.memory_space<vmem>>, vector<1x16x64xf32>
    %532 = vector.shape_cast %531 : vector<1x16x64xf32> to vector<16x64xf32>
    %cst_334 = arith.constant dense<0.000000e+00> : vector<16x64xf32>
    %533 = tpu.matmul %525, %532, %cst_334 {dimension_numbers = #tpu.dot_dimension_numbers<[1], [0], [0], [1], [0, 0, 1, 1], [], []>} : vector<16x16xf32>, vector<16x64xf32>, vector<16x64xf32> -> vector<16x64xf32>
    %c1_335 = arith.constant 1 : index
    %c0_336 = arith.constant 0 : index
    %c0_337 = arith.constant 0 : index
    %534 = vector.load %arg22[%c1_335, %c0_336, %c0_337] : memref<3x16x64xf32, #tpu.memory_space<vmem>>, vector<1x16x64xf32>
    %535 = vector.shape_cast %534 : vector<1x16x64xf32> to vector<16x64xf32>
    %cst_338 = arith.constant dense<0.000000e+00> : vector<16x64xf32>
    %536 = tpu.matmul %0, %535, %cst_338 {dimension_numbers = #tpu.dot_dimension_numbers<[1], [0], [0], [1], [0, 0, 1, 1], [], []>} : vector<16x16xf32>, vector<16x64xf32>, vector<16x64xf32> -> vector<16x64xf32>
    %537 = arith.addf %533, %536 : vector<16x64xf32>
    %c2_339 = arith.constant 2 : index
    %c0_340 = arith.constant 0 : index
    %c0_341 = arith.constant 0 : index
    %538 = vector.load %arg22[%c2_339, %c0_340, %c0_341] : memref<3x16x64xf32, #tpu.memory_space<vmem>>, vector<1x16x64xf32>
    %539 = vector.shape_cast %538 : vector<1x16x64xf32> to vector<16x64xf32>
    %cst_342 = arith.constant dense<0.000000e+00> : vector<16x64xf32>
    %540 = tpu.matmul %530, %539, %cst_342 {dimension_numbers = #tpu.dot_dimension_numbers<[1], [0], [0], [1], [0, 0, 1, 1], [], []>} : vector<16x16xf32>, vector<16x64xf32>, vector<16x64xf32> -> vector<16x64xf32>
    %541 = arith.addf %537, %540 : vector<16x64xf32>
    %c0_343 = arith.constant 0 : index
    %c0_344 = arith.constant 0 : index
    %542 = vector.load %arg23[%c0_343, %c0_344] : memref<1x64xf32, #tpu.memory_space<vmem>>, vector<1x64xf32>
    %543 = vector.broadcast %542 : vector<1x64xf32> to vector<16x64xf32>
    %544 = arith.addf %541, %543 : vector<16x64xf32>
    %cst_345 = arith.constant 0.000000e+00 : f32
    %545 = vector.broadcast %cst_345 : f32 to vector<16x64xf32>
    %546 = arith.maximumf %544, %545 : vector<16x64xf32>
    %547 = vector.extract_strided_slice %546 {offsets = [15, 0], sizes = [1, 64], strides = [1, 1]} : vector<16x64xf32> to vector<1x64xf32>
    %548 = vector.extract_strided_slice %546 {offsets = [0, 0], sizes = [15, 64], strides = [1, 1]} : vector<16x64xf32> to vector<15x64xf32>
    %549 = tpu.concatenate %547, %548 in 0 : vector<1x64xf32>, vector<15x64xf32> -> vector<16x64xf32>
    %550 = vector.broadcast %519 : vector<16x1xf32> to vector<16x64xf32>
    %551 = arith.mulf %549, %550 : vector<16x64xf32>
    %552 = vector.extract_strided_slice %546 {offsets = [1, 0], sizes = [15, 64], strides = [1, 1]} : vector<16x64xf32> to vector<15x64xf32>
    %553 = vector.extract_strided_slice %546 {offsets = [0, 0], sizes = [1, 64], strides = [1, 1]} : vector<16x64xf32> to vector<1x64xf32>
    %554 = tpu.concatenate %552, %553 in 0 : vector<15x64xf32>, vector<1x64xf32> -> vector<16x64xf32>
    %555 = vector.broadcast %520 : vector<16x1xf32> to vector<16x64xf32>
    %556 = arith.mulf %554, %555 : vector<16x64xf32>
    %c0_346 = arith.constant 0 : index
    %c0_347 = arith.constant 0 : index
    %c0_348 = arith.constant 0 : index
    %557 = vector.load %arg24[%c0_346, %c0_347, %c0_348] : memref<3x64x128xf32, #tpu.memory_space<vmem>>, vector<1x64x128xf32>
    %558 = vector.shape_cast %557 : vector<1x64x128xf32> to vector<64x128xf32>
    %cst_349 = arith.constant dense<0.000000e+00> : vector<16x128xf32>
    %559 = tpu.matmul %551, %558, %cst_349 {dimension_numbers = #tpu.dot_dimension_numbers<[1], [0], [0], [1], [0, 0, 1, 1], [], []>} : vector<16x64xf32>, vector<64x128xf32>, vector<16x128xf32> -> vector<16x128xf32>
    %c1_350 = arith.constant 1 : index
    %c0_351 = arith.constant 0 : index
    %c0_352 = arith.constant 0 : index
    %560 = vector.load %arg24[%c1_350, %c0_351, %c0_352] : memref<3x64x128xf32, #tpu.memory_space<vmem>>, vector<1x64x128xf32>
    %561 = vector.shape_cast %560 : vector<1x64x128xf32> to vector<64x128xf32>
    %cst_353 = arith.constant dense<0.000000e+00> : vector<16x128xf32>
    %562 = tpu.matmul %546, %561, %cst_353 {dimension_numbers = #tpu.dot_dimension_numbers<[1], [0], [0], [1], [0, 0, 1, 1], [], []>} : vector<16x64xf32>, vector<64x128xf32>, vector<16x128xf32> -> vector<16x128xf32>
    %563 = arith.addf %559, %562 : vector<16x128xf32>
    %c2_354 = arith.constant 2 : index
    %c0_355 = arith.constant 0 : index
    %c0_356 = arith.constant 0 : index
    %564 = vector.load %arg24[%c2_354, %c0_355, %c0_356] : memref<3x64x128xf32, #tpu.memory_space<vmem>>, vector<1x64x128xf32>
    %565 = vector.shape_cast %564 : vector<1x64x128xf32> to vector<64x128xf32>
    %cst_357 = arith.constant dense<0.000000e+00> : vector<16x128xf32>
    %566 = tpu.matmul %556, %565, %cst_357 {dimension_numbers = #tpu.dot_dimension_numbers<[1], [0], [0], [1], [0, 0, 1, 1], [], []>} : vector<16x64xf32>, vector<64x128xf32>, vector<16x128xf32> -> vector<16x128xf32>
    %567 = arith.addf %563, %566 : vector<16x128xf32>
    %c0_358 = arith.constant 0 : index
    %c0_359 = arith.constant 0 : index
    %568 = vector.load %arg25[%c0_358, %c0_359] : memref<1x128xf32, #tpu.memory_space<vmem>>, vector<1x128xf32>
    %569 = vector.broadcast %568 : vector<1x128xf32> to vector<16x128xf32>
    %570 = arith.addf %567, %569 : vector<16x128xf32>
    %cst_360 = arith.constant 0.000000e+00 : f32
    %571 = vector.broadcast %cst_360 : f32 to vector<16x128xf32>
    %572 = arith.maximumf %570, %571 : vector<16x128xf32>
    %573 = vector.extract_strided_slice %572 {offsets = [15, 0], sizes = [1, 128], strides = [1, 1]} : vector<16x128xf32> to vector<1x128xf32>
    %574 = vector.extract_strided_slice %572 {offsets = [0, 0], sizes = [15, 128], strides = [1, 1]} : vector<16x128xf32> to vector<15x128xf32>
    %575 = tpu.concatenate %573, %574 in 0 : vector<1x128xf32>, vector<15x128xf32> -> vector<16x128xf32>
    %576 = vector.broadcast %519 : vector<16x1xf32> to vector<16x128xf32>
    %577 = arith.mulf %575, %576 : vector<16x128xf32>
    %578 = vector.extract_strided_slice %572 {offsets = [1, 0], sizes = [15, 128], strides = [1, 1]} : vector<16x128xf32> to vector<15x128xf32>
    %579 = vector.extract_strided_slice %572 {offsets = [0, 0], sizes = [1, 128], strides = [1, 1]} : vector<16x128xf32> to vector<1x128xf32>
    %580 = tpu.concatenate %578, %579 in 0 : vector<15x128xf32>, vector<1x128xf32> -> vector<16x128xf32>
    %581 = vector.broadcast %520 : vector<16x1xf32> to vector<16x128xf32>
    %582 = arith.mulf %580, %581 : vector<16x128xf32>
    %c0_361 = arith.constant 0 : index
    %c0_362 = arith.constant 0 : index
    %c0_363 = arith.constant 0 : index
    %583 = vector.load %arg26[%c0_361, %c0_362, %c0_363] : memref<3x128x32xf32, #tpu.memory_space<vmem>>, vector<1x128x32xf32>
    %584 = vector.shape_cast %583 : vector<1x128x32xf32> to vector<128x32xf32>
    %cst_364 = arith.constant dense<0.000000e+00> : vector<16x32xf32>
    %585 = tpu.matmul %577, %584, %cst_364 {dimension_numbers = #tpu.dot_dimension_numbers<[1], [0], [0], [1], [0, 0, 1, 1], [], []>} : vector<16x128xf32>, vector<128x32xf32>, vector<16x32xf32> -> vector<16x32xf32>
    %c1_365 = arith.constant 1 : index
    %c0_366 = arith.constant 0 : index
    %c0_367 = arith.constant 0 : index
    %586 = vector.load %arg26[%c1_365, %c0_366, %c0_367] : memref<3x128x32xf32, #tpu.memory_space<vmem>>, vector<1x128x32xf32>
    %587 = vector.shape_cast %586 : vector<1x128x32xf32> to vector<128x32xf32>
    %cst_368 = arith.constant dense<0.000000e+00> : vector<16x32xf32>
    %588 = tpu.matmul %572, %587, %cst_368 {dimension_numbers = #tpu.dot_dimension_numbers<[1], [0], [0], [1], [0, 0, 1, 1], [], []>} : vector<16x128xf32>, vector<128x32xf32>, vector<16x32xf32> -> vector<16x32xf32>
    %589 = arith.addf %585, %588 : vector<16x32xf32>
    %c2_369 = arith.constant 2 : index
    %c0_370 = arith.constant 0 : index
    %c0_371 = arith.constant 0 : index
    %590 = vector.load %arg26[%c2_369, %c0_370, %c0_371] : memref<3x128x32xf32, #tpu.memory_space<vmem>>, vector<1x128x32xf32>
    %591 = vector.shape_cast %590 : vector<1x128x32xf32> to vector<128x32xf32>
    %cst_372 = arith.constant dense<0.000000e+00> : vector<16x32xf32>
    %592 = tpu.matmul %582, %591, %cst_372 {dimension_numbers = #tpu.dot_dimension_numbers<[1], [0], [0], [1], [0, 0, 1, 1], [], []>} : vector<16x128xf32>, vector<128x32xf32>, vector<16x32xf32> -> vector<16x32xf32>
    %593 = arith.addf %589, %592 : vector<16x32xf32>
    %c0_373 = arith.constant 0 : index
    %c0_374 = arith.constant 0 : index
    %594 = vector.load %arg27[%c0_373, %c0_374] : memref<1x32xf32, #tpu.memory_space<vmem>>, vector<1x32xf32>
    %595 = vector.broadcast %594 : vector<1x32xf32> to vector<16x32xf32>
    %596 = arith.addf %593, %595 : vector<16x32xf32>
    %cst_375 = arith.constant 0.000000e+00 : f32
    %597 = vector.broadcast %cst_375 : f32 to vector<16x32xf32>
    %598 = arith.maximumf %596, %597 : vector<16x32xf32>
    %cst_376 = arith.constant dense<0.000000e+00> : vector<2x32xf32>
    %599 = tpu.matmul %1, %598, %cst_376 {dimension_numbers = #tpu.dot_dimension_numbers<[1], [0], [0], [1], [0, 0, 1, 1], [], []>} : vector<2x16xf32>, vector<16x32xf32>, vector<2x32xf32> -> vector<2x32xf32>
    %c0_377 = arith.constant 0 : index
    %c0_378 = arith.constant 0 : index
    %600 = vector.load %arg28[%c0_377, %c0_378] : memref<32x32xf32, #tpu.memory_space<vmem>>, vector<32x32xf32>
    %cst_379 = arith.constant dense<0.000000e+00> : vector<2x32xf32>
    %601 = tpu.matmul %518, %600, %cst_379 {dimension_numbers = #tpu.dot_dimension_numbers<[1], [0], [0], [1], [0, 0, 1, 1], [], []>} : vector<2x32xf32>, vector<32x32xf32>, vector<2x32xf32> -> vector<2x32xf32>
    %c0_380 = arith.constant 0 : index
    %c0_381 = arith.constant 0 : index
    %602 = vector.load %arg29[%c0_380, %c0_381] : memref<32x32xf32, #tpu.memory_space<vmem>>, vector<32x32xf32>
    %cst_382 = arith.constant dense<0.000000e+00> : vector<2x32xf32>
    %603 = tpu.matmul %599, %602, %cst_382 {dimension_numbers = #tpu.dot_dimension_numbers<[1], [0], [0], [1], [0, 0, 1, 1], [], []>} : vector<2x32xf32>, vector<32x32xf32>, vector<2x32xf32> -> vector<2x32xf32>
    %604 = arith.addf %601, %603 : vector<2x32xf32>
    %c0_383 = arith.constant 0 : index
    %c0_384 = arith.constant 0 : index
    %605 = vector.load %arg30[%c0_383, %c0_384] : memref<1x32xf32, #tpu.memory_space<vmem>>, vector<1x32xf32>
    %606 = vector.broadcast %605 : vector<1x32xf32> to vector<2x32xf32>
    %607 = arith.addf %604, %606 : vector<2x32xf32>
    %c0_385 = arith.constant 0 : index
    %c0_386 = arith.constant 0 : index
    %608 = vector.load %arg31[%c0_385, %c0_386] : memref<1x32xf32, #tpu.memory_space<vmem>>, vector<1x32xf32>
    %c0_387 = arith.constant 0 : index
    %c0_388 = arith.constant 0 : index
    %609 = vector.load %arg32[%c0_387, %c0_388] : memref<1x32xf32, #tpu.memory_space<vmem>>, vector<1x32xf32>
    %cst_389 = arith.constant dense<0.000000e+00> : vector<2xf32>
    %610 = vector.multi_reduction <add>, %607, %cst_389 [1] : vector<2x32xf32> to vector<2xf32>
    %611 = vector.shape_cast %610 : vector<2xf32> to vector<2x1xf32>
    %cst_390 = arith.constant 3.200000e+01 : f32
    %612 = vector.broadcast %cst_390 : f32 to vector<2x1xf32>
    %613 = arith.divf %611, %612 : vector<2x1xf32>
    %614 = vector.broadcast %613 : vector<2x1xf32> to vector<2x32xf32>
    %615 = arith.subf %607, %614 : vector<2x32xf32>
    %616 = arith.mulf %615, %615 : vector<2x32xf32>
    %cst_391 = arith.constant dense<0.000000e+00> : vector<2xf32>
    %617 = vector.multi_reduction <add>, %616, %cst_391 [1] : vector<2x32xf32> to vector<2xf32>
    %618 = vector.shape_cast %617 : vector<2xf32> to vector<2x1xf32>
    %cst_392 = arith.constant 3.200000e+01 : f32
    %619 = vector.broadcast %cst_392 : f32 to vector<2x1xf32>
    %620 = arith.divf %618, %619 : vector<2x1xf32>
    %621 = vector.broadcast %613 : vector<2x1xf32> to vector<2x32xf32>
    %622 = arith.subf %607, %621 : vector<2x32xf32>
    %cst_393 = arith.constant 9.99999974E-6 : f32
    %623 = vector.broadcast %cst_393 : f32 to vector<2x1xf32>
    %624 = arith.addf %620, %623 : vector<2x1xf32>
    %625 = math.rsqrt %624 : vector<2x1xf32>
    %626 = vector.broadcast %625 : vector<2x1xf32> to vector<2x32xf32>
    %627 = arith.mulf %622, %626 : vector<2x32xf32>
    %628 = vector.broadcast %608 : vector<1x32xf32> to vector<2x32xf32>
    %629 = arith.mulf %627, %628 : vector<2x32xf32>
    %630 = vector.broadcast %609 : vector<1x32xf32> to vector<2x32xf32>
    %631 = arith.addf %629, %630 : vector<2x32xf32>
    %cst_394 = arith.constant 0.000000e+00 : f32
    %632 = vector.broadcast %cst_394 : f32 to vector<2x32xf32>
    %633 = arith.maximumf %631, %632 : vector<2x32xf32>
    %c0_395 = arith.constant 0 : index
    %c0_396 = arith.constant 0 : index
    %634 = vector.load %arg33[%c0_395, %c0_396] : memref<32x64xf32, #tpu.memory_space<vmem>>, vector<32x64xf32>
    %cst_397 = arith.constant dense<0.000000e+00> : vector<2x64xf32>
    %635 = tpu.matmul %633, %634, %cst_397 {dimension_numbers = #tpu.dot_dimension_numbers<[1], [0], [0], [1], [0, 0, 1, 1], [], []>} : vector<2x32xf32>, vector<32x64xf32>, vector<2x64xf32> -> vector<2x64xf32>
    %c0_398 = arith.constant 0 : index
    %c0_399 = arith.constant 0 : index
    %636 = vector.load %arg34[%c0_398, %c0_399] : memref<1x64xf32, #tpu.memory_space<vmem>>, vector<1x64xf32>
    %637 = vector.broadcast %636 : vector<1x64xf32> to vector<2x64xf32>
    %638 = arith.addf %635, %637 : vector<2x64xf32>
    %cst_400 = arith.constant 0.000000e+00 : f32
    %639 = vector.broadcast %cst_400 : f32 to vector<2x64xf32>
    %640 = arith.maximumf %638, %639 : vector<2x64xf32>
    %c0_401 = arith.constant 0 : index
    %c0_402 = arith.constant 0 : index
    %641 = vector.load %arg35[%c0_401, %c0_402] : memref<64x3xf32, #tpu.memory_space<vmem>>, vector<64x3xf32>
    %cst_403 = arith.constant dense<0.000000e+00> : vector<2x3xf32>
    %642 = tpu.matmul %640, %641, %cst_403 {dimension_numbers = #tpu.dot_dimension_numbers<[1], [0], [0], [1], [0, 0, 1, 1], [], []>} : vector<2x64xf32>, vector<64x3xf32>, vector<2x3xf32> -> vector<2x3xf32>
    %c0_404 = arith.constant 0 : index
    %c0_405 = arith.constant 0 : index
    %643 = vector.load %arg36[%c0_404, %c0_405] : memref<1x3xf32, #tpu.memory_space<vmem>>, vector<1x3xf32>
    %644 = vector.broadcast %643 : vector<1x3xf32> to vector<2x3xf32>
    %645 = arith.addf %642, %644 : vector<2x3xf32>
    %cst_406 = arith.constant dense<0xFF800000> : vector<2xf32>
    %646 = vector.multi_reduction <maximumf>, %645, %cst_406 [1] : vector<2x3xf32> to vector<2xf32>
    %647 = vector.shape_cast %646 : vector<2xf32> to vector<2x1xf32>
    %648 = vector.broadcast %647 : vector<2x1xf32> to vector<2x3xf32>
    %649 = arith.subf %645, %648 : vector<2x3xf32>
    %650 = math.exp %649 : vector<2x3xf32>
    %cst_407 = arith.constant dense<0.000000e+00> : vector<2xf32>
    %651 = vector.multi_reduction <add>, %650, %cst_407 [1] : vector<2x3xf32> to vector<2xf32>
    %652 = vector.shape_cast %651 : vector<2xf32> to vector<2x1xf32>
    %653 = vector.broadcast %652 : vector<2x1xf32> to vector<2x3xf32>
    %654 = arith.divf %650, %653 : vector<2x3xf32>
    %c0_408 = arith.constant 0 : index
    %c0_409 = arith.constant 0 : index
    %c0_410 = arith.constant 0 : index
    %655 = vector.load %arg37[%c0_408, %c0_409, %c0_410] : memref<3x32x32xf32, #tpu.memory_space<vmem>>, vector<1x32x32xf32>
    %656 = vector.shape_cast %655 : vector<1x32x32xf32> to vector<32x32xf32>
    %cst_411 = arith.constant dense<0.000000e+00> : vector<2x32xf32>
    %657 = tpu.matmul %633, %656, %cst_411 {dimension_numbers = #tpu.dot_dimension_numbers<[1], [0], [0], [1], [0, 0, 1, 1], [], []>} : vector<2x32xf32>, vector<32x32xf32>, vector<2x32xf32> -> vector<2x32xf32>
    %c0_412 = arith.constant 0 : index
    %c0_413 = arith.constant 0 : index
    %c0_414 = arith.constant 0 : index
    %658 = vector.load %arg38[%c0_412, %c0_413, %c0_414] : memref<3x1x32xf32, #tpu.memory_space<vmem>>, vector<1x1x32xf32>
    %659 = vector.shape_cast %658 : vector<1x1x32xf32> to vector<1x32xf32>
    %660 = vector.broadcast %659 : vector<1x32xf32> to vector<2x32xf32>
    %661 = arith.addf %657, %660 : vector<2x32xf32>
    %662 = vector.extract_strided_slice %654 {offsets = [0, 0], sizes = [2, 1], strides = [1, 1]} : vector<2x3xf32> to vector<2x1xf32>
    %663 = vector.broadcast %662 : vector<2x1xf32> to vector<2x32xf32>
    %664 = arith.mulf %661, %663 : vector<2x32xf32>
    %c1_415 = arith.constant 1 : index
    %c0_416 = arith.constant 0 : index
    %c0_417 = arith.constant 0 : index
    %665 = vector.load %arg37[%c1_415, %c0_416, %c0_417] : memref<3x32x32xf32, #tpu.memory_space<vmem>>, vector<1x32x32xf32>
    %666 = vector.shape_cast %665 : vector<1x32x32xf32> to vector<32x32xf32>
    %cst_418 = arith.constant dense<0.000000e+00> : vector<2x32xf32>
    %667 = tpu.matmul %633, %666, %cst_418 {dimension_numbers = #tpu.dot_dimension_numbers<[1], [0], [0], [1], [0, 0, 1, 1], [], []>} : vector<2x32xf32>, vector<32x32xf32>, vector<2x32xf32> -> vector<2x32xf32>
    %c1_419 = arith.constant 1 : index
    %c0_420 = arith.constant 0 : index
    %c0_421 = arith.constant 0 : index
    %668 = vector.load %arg38[%c1_419, %c0_420, %c0_421] : memref<3x1x32xf32, #tpu.memory_space<vmem>>, vector<1x1x32xf32>
    %669 = vector.shape_cast %668 : vector<1x1x32xf32> to vector<1x32xf32>
    %670 = vector.broadcast %669 : vector<1x32xf32> to vector<2x32xf32>
    %671 = arith.addf %667, %670 : vector<2x32xf32>
    %672 = vector.extract_strided_slice %654 {offsets = [0, 1], sizes = [2, 1], strides = [1, 1]} : vector<2x3xf32> to vector<2x1xf32>
    %673 = vector.broadcast %672 : vector<2x1xf32> to vector<2x32xf32>
    %674 = arith.mulf %671, %673 : vector<2x32xf32>
    %675 = arith.addf %664, %674 : vector<2x32xf32>
    %c2_422 = arith.constant 2 : index
    %c0_423 = arith.constant 0 : index
    %c0_424 = arith.constant 0 : index
    %676 = vector.load %arg37[%c2_422, %c0_423, %c0_424] : memref<3x32x32xf32, #tpu.memory_space<vmem>>, vector<1x32x32xf32>
    %677 = vector.shape_cast %676 : vector<1x32x32xf32> to vector<32x32xf32>
    %cst_425 = arith.constant dense<0.000000e+00> : vector<2x32xf32>
    %678 = tpu.matmul %633, %677, %cst_425 {dimension_numbers = #tpu.dot_dimension_numbers<[1], [0], [0], [1], [0, 0, 1, 1], [], []>} : vector<2x32xf32>, vector<32x32xf32>, vector<2x32xf32> -> vector<2x32xf32>
    %c2_426 = arith.constant 2 : index
    %c0_427 = arith.constant 0 : index
    %c0_428 = arith.constant 0 : index
    %679 = vector.load %arg38[%c2_426, %c0_427, %c0_428] : memref<3x1x32xf32, #tpu.memory_space<vmem>>, vector<1x1x32xf32>
    %680 = vector.shape_cast %679 : vector<1x1x32xf32> to vector<1x32xf32>
    %681 = vector.broadcast %680 : vector<1x32xf32> to vector<2x32xf32>
    %682 = arith.addf %678, %681 : vector<2x32xf32>
    %683 = vector.extract_strided_slice %654 {offsets = [0, 2], sizes = [2, 1], strides = [1, 1]} : vector<2x3xf32> to vector<2x1xf32>
    %684 = vector.broadcast %683 : vector<2x1xf32> to vector<2x32xf32>
    %685 = arith.mulf %682, %684 : vector<2x32xf32>
    %686 = arith.addf %675, %685 : vector<2x32xf32>
    %c0_429 = arith.constant 0 : index
    %c0_430 = arith.constant 0 : index
    %687 = vector.load %arg39[%c0_429, %c0_430] : memref<32x32xf32, #tpu.memory_space<vmem>>, vector<32x32xf32>
    %cst_431 = arith.constant dense<0.000000e+00> : vector<2x32xf32>
    %688 = tpu.matmul %686, %687, %cst_431 {dimension_numbers = #tpu.dot_dimension_numbers<[1], [0], [0], [1], [0, 0, 1, 1], [], []>} : vector<2x32xf32>, vector<32x32xf32>, vector<2x32xf32> -> vector<2x32xf32>
    %c0_432 = arith.constant 0 : index
    %c0_433 = arith.constant 0 : index
    %689 = vector.load %arg40[%c0_432, %c0_433] : memref<1x32xf32, #tpu.memory_space<vmem>>, vector<1x32xf32>
    %690 = vector.broadcast %689 : vector<1x32xf32> to vector<2x32xf32>
    %691 = arith.addf %688, %690 : vector<2x32xf32>
    %c0_434 = arith.constant 0 : index
    %c0_435 = arith.constant 0 : index
    %692 = vector.load %arg41[%c0_434, %c0_435] : memref<2x32xf32, #tpu.memory_space<vmem>>, vector<2x32xf32>
    tpu.vector_store %arg41[%c0_434, %c0_435], %691 {strides = array<i32>} : memref<2x32xf32, #tpu.memory_space<vmem>>, vector<2x32xf32>,
    return
  }
}

</mosaic_0001>

<llo_original>
// kernel: tpu_custom_call.1
$region0: #{tpu_custom_call.1}
  #allocation0 [shape = 'u32[]', space=smem, size = 0x4, offset = 0x4, fixed_abs, tag = 'smem constant byte address 0x4 - core index']
  #allocation1 [shape = 'u32[72,128]{1,0:T(1,128)}', space=vmem, size = 0x9000, scoped, tag = 'internal scratch']
  %s0 = inlined_call_operand.smem [shape: u32[42], index: -1, kind: input, shape index: {}]
  %s1 = sld [smem:[%s0]]
  %s2 = scalar_lea.smem %s0, 1
  %s3 = sld [smem:[%s2]]
  %s4 = scalar_lea.smem %s0, 2
  %s5 = sld [smem:[%s4]]
  %s6 = scalar_lea.smem %s0, 3
  %s7 = sld [smem:[%s6]]
  %s8 = scalar_lea.smem %s0, 4
  %s9 = sld [smem:[%s8]]
  %s10 = scalar_lea.smem %s0, 5
  %s11 = sld [smem:[%s10]]
  %s12 = scalar_lea.smem %s0, 6
  %s13 = sld [smem:[%s12]]
  %s14 = scalar_lea.smem %s0, 7
  %s15 = sld [smem:[%s14]]
  %s16 = scalar_lea.smem %s0, 8
  %s17 = sld [smem:[%s16]]
  %s18 = scalar_lea.smem %s0, 9
  %s19 = sld [smem:[%s18]]
  %s20 = scalar_lea.smem %s0, 10
  %s21 = sld [smem:[%s20]]
  %s22 = scalar_lea.smem %s0, 11
  %s23 = sld [smem:[%s22]]
  %s24 = scalar_lea.smem %s0, 12
  %s25 = sld [smem:[%s24]]
  %s26 = scalar_lea.smem %s0, 13
  %s27 = sld [smem:[%s26]]
  %s28 = scalar_lea.smem %s0, 14
  %s29 = sld [smem:[%s28]]
  %s30 = scalar_lea.smem %s0, 15
  %s31 = sld [smem:[%s30]]
  %s32 = scalar_lea.smem %s0, 16
  %s33 = sld [smem:[%s32]]
  %s34 = scalar_lea.smem %s0, 17
  %s35 = sld [smem:[%s34]]
  %s36 = scalar_lea.smem %s0, 18
  %s37 = sld [smem:[%s36]]
  %s38 = scalar_lea.smem %s0, 19
  %s39 = sld [smem:[%s38]]
  %s40 = scalar_lea.smem %s0, 20
  %s41 = sld [smem:[%s40]]
  %s42 = scalar_lea.smem %s0, 21
  %s43 = sld [smem:[%s42]]
  %s44 = scalar_lea.smem %s0, 22
  %s45 = sld [smem:[%s44]]
  %s46 = scalar_lea.smem %s0, 23
  %s47 = sld [smem:[%s46]]
  %s48 = scalar_lea.smem %s0, 24
  %s49 = sld [smem:[%s48]]
  %s50 = scalar_lea.smem %s0, 25
  %s51 = sld [smem:[%s50]]
  %s52 = scalar_lea.smem %s0, 26
  %s53 = sld [smem:[%s52]]
  %s54 = scalar_lea.smem %s0, 27
  %s55 = sld [smem:[%s54]]
  %s56 = scalar_lea.smem %s0, 28
  %s57 = sld [smem:[%s56]]
  %s58 = scalar_lea.smem %s0, 29
  %s59 = sld [smem:[%s58]]
  %s60 = scalar_lea.smem %s0, 30
  %s61 = sld [smem:[%s60]]
  %s62 = scalar_lea.smem %s0, 31
  %s63 = sld [smem:[%s62]]
  %s64 = scalar_lea.smem %s0, 32
  %s65 = sld [smem:[%s64]]
  %s66 = scalar_lea.smem %s0, 33
  %s67 = sld [smem:[%s66]]
  %s68 = scalar_lea.smem %s0, 34
  %s69 = sld [smem:[%s68]]
  %s70 = scalar_lea.smem %s0, 35
  %s71 = sld [smem:[%s70]]
  %s72 = scalar_lea.smem %s0, 36
  %s73 = sld [smem:[%s72]]
  %s74 = scalar_lea.smem %s0, 37
  %s75 = sld [smem:[%s74]]
  %s76 = scalar_lea.smem %s0, 38
  %s77 = sld [smem:[%s76]]
  %s78 = scalar_lea.smem %s0, 39
  %s79 = sld [smem:[%s78]]
  %s80 = scalar_lea.smem %s0, 40
  %s81 = sld [smem:[%s80]]
  %s82 = scalar_lea.smem %s0, 41
  %s83 = sld [smem:[%s82]]
  %s84 = sld [smem:[#allocation0]]
  $region174: #{tpu_custom_call.1} parent=0
    _
  %s86 = ssub.s32 1, %s84
  %s87 = scalar_select 0, %s86, %s84
  $region1: #{tpu_custom_call.1} parent=0
    #allocation2 [shape = 'u8[1024]{0}', space=vmem, size = 0x400, scoped, tag = 'output window, operand 0, single buffered']
    #allocation3 [shape = 's32[1]{0}', space=sflag, size = 0x4, scoped, tag = 'scoped memory for tpu_custom_call.1']
    %88 = vsyncpa [#allocation3], 0
    // Predicated region
    $region2: #{tpu_custom_call.1} parent=1 // pred_check
      _
    $region3: #{tpu_custom_call.1} parent=1 // pred_check_branch
      %90 = sbr.rel (0) target = $region5
    $region4: #{tpu_custom_call.1} parent=1 // pred_region
      _
    $region5: #{tpu_custom_call.1} parent=1 // pred_fallthru
      _
    // Predicated region
    $region6: #{tpu_custom_call.1} parent=1 // pred_check
      _
    $region7: #{tpu_custom_call.1} parent=1 // pred_check_branch
      %92 = sbr.rel (0) target = $region9
    $region8: #{tpu_custom_call.1} parent=1 // pred_region
      _
    $region9: #{tpu_custom_call.1} parent=1 // pred_fallthru
      _
    // Predicated region
    $region10: #{tpu_custom_call.1} parent=1 // pred_check
      _
    $region11: #{tpu_custom_call.1} parent=1 // pred_check_branch
      %94 = sbr.rel (0) target = $region13
    $region12: #{tpu_custom_call.1} parent=1 // pred_region
      _
    $region13: #{tpu_custom_call.1} parent=1 // pred_fallthru
      _
    // Predicated region
    $region14: #{tpu_custom_call.1} parent=1 // pred_check
      _
    $region15: #{tpu_custom_call.1} parent=1 // pred_check_branch
      %96 = sbr.rel (0) target = $region17
    $region16: #{tpu_custom_call.1} parent=1 // pred_region
      _
    $region17: #{tpu_custom_call.1} parent=1 // pred_fallthru
      _
    // Predicated region
    $region18: #{tpu_custom_call.1} parent=1 // pred_check
      _
    $region19: #{tpu_custom_call.1} parent=1 // pred_check_branch
      %98 = sbr.rel (0) target = $region21
    $region20: #{tpu_custom_call.1} parent=1 // pred_region
      _
    $region21: #{tpu_custom_call.1} parent=1 // pred_fallthru
      _
    // Predicated region
    $region22: #{tpu_custom_call.1} parent=1 // pred_check
      _
    $region23: #{tpu_custom_call.1} parent=1 // pred_check_branch
      %100 = sbr.rel (0) target = $region25
    $region24: #{tpu_custom_call.1} parent=1 // pred_region
      _
    $region25: #{tpu_custom_call.1} parent=1 // pred_fallthru
      _
    // Predicated region
    $region26: #{tpu_custom_call.1} parent=1 // pred_check
      _
    $region27: #{tpu_custom_call.1} parent=1 // pred_check_branch
      %102 = sbr.rel (0) target = $region29
    $region28: #{tpu_custom_call.1} parent=1 // pred_region
      _
    $region29: #{tpu_custom_call.1} parent=1 // pred_fallthru
      _
    // Predicated region
    $region30: #{tpu_custom_call.1} parent=1 // pred_check
      _
    $region31: #{tpu_custom_call.1} parent=1 // pred_check_branch
      %104 = sbr.rel (0) target = $region33
    $region32: #{tpu_custom_call.1} parent=1 // pred_region
      _
    $region33: #{tpu_custom_call.1} parent=1 // pred_fallthru
      _
    // Predicated region
    $region34: #{tpu_custom_call.1} parent=1 // pred_check
      _
    $region35: #{tpu_custom_call.1} parent=1 // pred_check_branch
      %106 = sbr.rel (0) target = $region37
    $region36: #{tpu_custom_call.1} parent=1 // pred_region
      _
    $region37: #{tpu_custom_call.1} parent=1 // pred_fallthru
      _
    // Predicated region
    $region38: #{tpu_custom_call.1} parent=1 // pred_check
      _
    $region39: #{tpu_custom_call.1} parent=1 // pred_check_branch
      %108 = sbr.rel (0) target = $region41
    $region40: #{tpu_custom_call.1} parent=1 // pred_region
      _
    $region41: #{tpu_custom_call.1} parent=1 // pred_fallthru
      _
    // Predicated region
    $region42: #{tpu_custom_call.1} parent=1 // pred_check
      _
    $region43: #{tpu_custom_call.1} parent=1 // pred_check_branch
      %110 = sbr.rel (0) target = $region45
    $region44: #{tpu_custom_call.1} parent=1 // pred_region
      _
    $region45: #{tpu_custom_call.1} parent=1 // pred_fallthru
      _
    // Predicated region
    $region46: #{tpu_custom_call.1} parent=1 // pred_check
      _
    $region47: #{tpu_custom_call.1} parent=1 // pred_check_branch
      %112 = sbr.rel (0) target = $region49
    $region48: #{tpu_custom_call.1} parent=1 // pred_region
      _
    $region49: #{tpu_custom_call.1} parent=1 // pred_fallthru
      _
    // Predicated region
    $region50: #{tpu_custom_call.1} parent=1 // pred_check
      _
    $region51: #{tpu_custom_call.1} parent=1 // pred_check_branch
      %114 = sbr.rel (0) target = $region53
    $region52: #{tpu_custom_call.1} parent=1 // pred_region
      _
    $region53: #{tpu_custom_call.1} parent=1 // pred_fallthru
      _
    // Predicated region
    $region54: #{tpu_custom_call.1} parent=1 // pred_check
      _
    $region55: #{tpu_custom_call.1} parent=1 // pred_check_branch
      %116 = sbr.rel (0) target = $region57
    $region56: #{tpu_custom_call.1} parent=1 // pred_region
      _
    $region57: #{tpu_custom_call.1} parent=1 // pred_fallthru
      _
    // Predicated region
    $region58: #{tpu_custom_call.1} parent=1 // pred_check
      _
    $region59: #{tpu_custom_call.1} parent=1 // pred_check_branch
      %118 = sbr.rel (0) target = $region61
    $region60: #{tpu_custom_call.1} parent=1 // pred_region
      _
    $region61: #{tpu_custom_call.1} parent=1 // pred_fallthru
      _
    // Predicated region
    $region62: #{tpu_custom_call.1} parent=1 // pred_check
      _
    $region63: #{tpu_custom_call.1} parent=1 // pred_check_branch
      %120 = sbr.rel (0) target = $region65
    $region64: #{tpu_custom_call.1} parent=1 // pred_region
      _
    $region65: #{tpu_custom_call.1} parent=1 // pred_fallthru
      _
    // Predicated region
    $region66: #{tpu_custom_call.1} parent=1 // pred_check
      _
    $region67: #{tpu_custom_call.1} parent=1 // pred_check_branch
      %122 = sbr.rel (0) target = $region69
    $region68: #{tpu_custom_call.1} parent=1 // pred_region
      _
    $region69: #{tpu_custom_call.1} parent=1 // pred_fallthru
      _
    // Predicated region
    $region70: #{tpu_custom_call.1} parent=1 // pred_check
      _
    $region71: #{tpu_custom_call.1} parent=1 // pred_check_branch
      %124 = sbr.rel (0) target = $region73
    $region72: #{tpu_custom_call.1} parent=1 // pred_region
      _
    $region73: #{tpu_custom_call.1} parent=1 // pred_fallthru
      _
    // Predicated region
    $region74: #{tpu_custom_call.1} parent=1 // pred_check
      _
    $region75: #{tpu_custom_call.1} parent=1 // pred_check_branch
      %126 = sbr.rel (0) target = $region77
    $region76: #{tpu_custom_call.1} parent=1 // pred_region
      _
    $region77: #{tpu_custom_call.1} parent=1 // pred_fallthru
      _
    // Predicated region
    $region78: #{tpu_custom_call.1} parent=1 // pred_check
      _
    $region79: #{tpu_custom_call.1} parent=1 // pred_check_branch
      %128 = sbr.rel (0) target = $region81
    $region80: #{tpu_custom_call.1} parent=1 // pred_region
      _
    $region81: #{tpu_custom_call.1} parent=1 // pred_fallthru
      _
    // Predicated region
    $region82: #{tpu_custom_call.1} parent=1 // pred_check
      _
    $region83: #{tpu_custom_call.1} parent=1 // pred_check_branch
      %130 = sbr.rel (0) target = $region85
    $region84: #{tpu_custom_call.1} parent=1 // pred_region
      _
    $region85: #{tpu_custom_call.1} parent=1 // pred_fallthru
      _
    // Predicated region
    $region86: #{tpu_custom_call.1} parent=1 // pred_check
      _
    $region87: #{tpu_custom_call.1} parent=1 // pred_check_branch
      %132 = sbr.rel (0) target = $region89
    $region88: #{tpu_custom_call.1} parent=1 // pred_region
      _
    $region89: #{tpu_custom_call.1} parent=1 // pred_fallthru
      _
    // Predicated region
    $region90: #{tpu_custom_call.1} parent=1 // pred_check
      _
    $region91: #{tpu_custom_call.1} parent=1 // pred_check_branch
      %134 = sbr.rel (0) target = $region93
    $region92: #{tpu_custom_call.1} parent=1 // pred_region
      _
    $region93: #{tpu_custom_call.1} parent=1 // pred_fallthru
      _
    // Predicated region
    $region94: #{tpu_custom_call.1} parent=1 // pred_check
      _
    $region95: #{tpu_custom_call.1} parent=1 // pred_check_branch
      %136 = sbr.rel (0) target = $region97
    $region96: #{tpu_custom_call.1} parent=1 // pred_region
      _
    $region97: #{tpu_custom_call.1} parent=1 // pred_fallthru
      _
    // Predicated region
    $region98: #{tpu_custom_call.1} parent=1 // pred_check
      _
    $region99: #{tpu_custom_call.1} parent=1 // pred_check_branch
      %138 = sbr.rel (0) target = $region101
    $region100: #{tpu_custom_call.1} parent=1 // pred_region
      _
    $region101: #{tpu_custom_call.1} parent=1 // pred_fallthru
      _
    // Predicated region
    $region102: #{tpu_custom_call.1} parent=1 // pred_check
      _
    $region103: #{tpu_custom_call.1} parent=1 // pred_check_branch
      %140 = sbr.rel (0) target = $region105
    $region104: #{tpu_custom_call.1} parent=1 // pred_region
      _
    $region105: #{tpu_custom_call.1} parent=1 // pred_fallthru
      _
    // Predicated region
    $region106: #{tpu_custom_call.1} parent=1 // pred_check
      _
    $region107: #{tpu_custom_call.1} parent=1 // pred_check_branch
      %142 = sbr.rel (0) target = $region109
    $region108: #{tpu_custom_call.1} parent=1 // pred_region
      _
    $region109: #{tpu_custom_call.1} parent=1 // pred_fallthru
      _
    // Predicated region
    $region110: #{tpu_custom_call.1} parent=1 // pred_check
      _
    $region111: #{tpu_custom_call.1} parent=1 // pred_check_branch
      %144 = sbr.rel (0) target = $region113
    $region112: #{tpu_custom_call.1} parent=1 // pred_region
      _
    $region113: #{tpu_custom_call.1} parent=1 // pred_fallthru
      _
    // Predicated region
    $region114: #{tpu_custom_call.1} parent=1 // pred_check
      _
    $region115: #{tpu_custom_call.1} parent=1 // pred_check_branch
      %146 = sbr.rel (0) target = $region117
    $region116: #{tpu_custom_call.1} parent=1 // pred_region
      _
    $region117: #{tpu_custom_call.1} parent=1 // pred_fallthru
      _
    // Predicated region
    $region118: #{tpu_custom_call.1} parent=1 // pred_check
      _
    $region119: #{tpu_custom_call.1} parent=1 // pred_check_branch
      %148 = sbr.rel (0) target = $region121
    $region120: #{tpu_custom_call.1} parent=1 // pred_region
      _
    $region121: #{tpu_custom_call.1} parent=1 // pred_fallthru
      _
    // Predicated region
    $region122: #{tpu_custom_call.1} parent=1 // pred_check
      _
    $region123: #{tpu_custom_call.1} parent=1 // pred_check_branch
      %150 = sbr.rel (0) target = $region125
    $region124: #{tpu_custom_call.1} parent=1 // pred_region
      _
    $region125: #{tpu_custom_call.1} parent=1 // pred_fallthru
      _
    // Predicated region
    $region126: #{tpu_custom_call.1} parent=1 // pred_check
      _
    $region127: #{tpu_custom_call.1} parent=1 // pred_check_branch
      %152 = sbr.rel (0) target = $region129
    $region128: #{tpu_custom_call.1} parent=1 // pred_region
      _
    $region129: #{tpu_custom_call.1} parent=1 // pred_fallthru
      _
    // Predicated region
    $region130: #{tpu_custom_call.1} parent=1 // pred_check
      _
    $region131: #{tpu_custom_call.1} parent=1 // pred_check_branch
      %154 = sbr.rel (0) target = $region133
    $region132: #{tpu_custom_call.1} parent=1 // pred_region
      _
    $region133: #{tpu_custom_call.1} parent=1 // pred_fallthru
      _
    // Predicated region
    $region134: #{tpu_custom_call.1} parent=1 // pred_check
      _
    $region135: #{tpu_custom_call.1} parent=1 // pred_check_branch
      %156 = sbr.rel (0) target = $region137
    $region136: #{tpu_custom_call.1} parent=1 // pred_region
      _
    $region137: #{tpu_custom_call.1} parent=1 // pred_fallthru
      _
    // Predicated region
    $region138: #{tpu_custom_call.1} parent=1 // pred_check
      _
    $region139: #{tpu_custom_call.1} parent=1 // pred_check_branch
      %158 = sbr.rel (0) target = $region141
    $region140: #{tpu_custom_call.1} parent=1 // pred_region
      _
    $region141: #{tpu_custom_call.1} parent=1 // pred_fallthru
      _
    // Predicated region
    $region142: #{tpu_custom_call.1} parent=1 // pred_check
      _
    $region143: #{tpu_custom_call.1} parent=1 // pred_check_branch
      %160 = sbr.rel (0) target = $region145
    $region144: #{tpu_custom_call.1} parent=1 // pred_region
      _
    $region145: #{tpu_custom_call.1} parent=1 // pred_fallthru
      _
    // Predicated region
    $region146: #{tpu_custom_call.1} parent=1 // pred_check
      _
    $region147: #{tpu_custom_call.1} parent=1 // pred_check_branch
      %162 = sbr.rel (0) target = $region149
    $region148: #{tpu_custom_call.1} parent=1 // pred_region
      _
    $region149: #{tpu_custom_call.1} parent=1 // pred_fallthru
      _
    // Predicated region
    $region150: #{tpu_custom_call.1} parent=1 // pred_check
      _
    $region151: #{tpu_custom_call.1} parent=1 // pred_check_branch
      %164 = sbr.rel (0) target = $region153
    $region152: #{tpu_custom_call.1} parent=1 // pred_region
      _
    $region153: #{tpu_custom_call.1} parent=1 // pred_fallthru
      _
    // Predicated region
    $region154: #{tpu_custom_call.1} parent=1 // pred_check
      _
    $region155: #{tpu_custom_call.1} parent=1 // pred_check_branch
      %166 = sbr.rel (0) target = $region157
    $region156: #{tpu_custom_call.1} parent=1 // pred_region
      _
    $region157: #{tpu_custom_call.1} parent=1 // pred_fallthru
      _
    // Predicated region
    $region158: #{tpu_custom_call.1} parent=1 // pred_check
      _
    $region159: #{tpu_custom_call.1} parent=1 // pred_check_branch
      %168 = sbr.rel (0) target = $region161
    $region160: #{tpu_custom_call.1} parent=1 // pred_region
      _
    $region161: #{tpu_custom_call.1} parent=1 // pred_fallthru
      _
    // Predicated region
    $region162: #{tpu_custom_call.1} parent=1 // pred_check
      _
    $region163: #{tpu_custom_call.1} parent=1 // pred_check_branch
      %170 = sbr.rel (0) target = $region165
    $region164: #{tpu_custom_call.1} parent=1 // pred_region
      _
    $region165: #{tpu_custom_call.1} parent=1 // pred_fallthru
      _
    %v171 = vld [vmem:[%s1] sm:$0xff]
    %v172 = vld [vmem:[%s1 + $0x8] sm:$0xff]
    %v173 = vld [vmem:[%s9] sm:$0x3]
    %v174 = vld [vmem:[%s11] sm:$0xff]
    %v175 = vld [vmem:[%s11 + $0x8] sm:$0xff]
    %v176 = vld [vmem:[%s3] sm:$0xff]
    %v177 = vld [vmem:[%s3 + $0x8] sm:$0xff]
    %vm178 = vcmask 130048
    %v180 = vsel %vm178, %v171, 0
    %v183 = vsel %vm178, %v172, 0
    %185 = vmatpush.msra.mxu0 0.0
    %186 = vmatpush.msra.mxu0 0.0
    %187 = vmatpush.msra.mxu0 0.0
    %188 = vmatpush.msra.mxu0 0.0
    %189 = vmatpush.msra.mxu0 0.0
    %190 = vmatpush.msra.mxu0 0.0
    %191 = vmatpush.msra.mxu0 0.0
    %192 = vmatpush.msra.mxu0 0.0
    %193 = vmatpush.msra.mxu0 0.0
    %194 = vmatpush.msra.mxu0 0.0
    %195 = vmatpush.msra.mxu0 0.0
    %196 = vmatpush.msra.mxu0 0.0
    %197 = vmatpush.msra.mxu0 0.0
    %198 = vmatpush.msra.mxu0 0.0
    %199 = vmatpush.msra.mxu0 %v175
    %200 = vmatpush.msra.mxu0 %v174
    %201 = vmatmul.f32.gmra.mxu0 %v180
    %v202 = vpop.f32.mrf.mxu0
    %v203 = vadd.f32 %v176, %v202
    %204 = vmatmul.f32.gmra.mxu0 %v183
    %v205 = vpop.f32.mrf.mxu0
    %v206 = vadd.f32 %v177, %v205
    %207 = vdwg.mxu0
    %v208 = vld [vmem:[%s13] sm:$0x1]
    %v209 = vld [vmem:[%s15] sm:$0x1]
    %vm210 = vcmask 261120
    %v211 = vsel %vm210, %v203, 0.0
    %212 = vadd.xlane.f32.xlu0 %v211
    %v213 = vpop.xlane.xlu0 %212
    %v214 = vsel %vm210, %v206, 0.0
    %215 = vadd.xlane.f32.xlu0 %v214
    %v216 = vpop.xlane.xlu0 %215
    %v217 = vrcp.pop 32.0
    %v218 = vmul.f32 32.0, %v217
    %v219 = vsub.f32 1.0, %v218
    %v220 = vmul.f32 %v217, %v219
    %v221 = vadd.f32 %v217, %v220
    %vm222 = vweird.f32 %v217
    %v223 = vsel %vm222, %v217, %v221
    %v224 = vmul.f32 %v213, %v223
    %v225 = vmul.f32 %v216, %v223
    %v226 = vsub.f32 %v203, %v224
    %v227 = vsub.f32 %v206, %v225
    %v228 = vmul.f32 %v226, %v226
    %v229 = vmul.f32 %v227, %v227
    %v230 = vsel %vm210, %v228, 0.0
    %231 = vadd.xlane.f32.xlu0 %v230
    %v232 = vpop.xlane.xlu0 %231
    %v233 = vsel %vm210, %v229, 0.0
    %234 = vadd.xlane.f32.xlu0 %v233
    %v235 = vpop.xlane.xlu0 %234
    %v236 = vmul.f32 %v232, %v223
    %v237 = vmul.f32 %v235, %v223
    %v238 = vadd.f32 %v236, 1e-05
    %v239 = vadd.f32 %v237, 1e-05
    %v240 = vrsqrt.pop %v238
    %v241 = vmul.f32 %v240, %v238
    %v242 = vmul.f32 %v241, %v240
    %v243 = vmul.f32 0.5, %v242
    %v244 = vsub.f32 1.5, %v243
    %v245 = vmul.f32 %v240, %v244
    %vm246 = vweird.f32 %v238
    %vm247 = vweird.f32 %v240
    %vm248 = vmor %vm246, %vm247
    %v249 = vsel %vm248, %v240, %v245
    %v250 = vrsqrt.pop %v239
    %v251 = vmul.f32 %v250, %v239
    %v252 = vmul.f32 %v251, %v250
    %v253 = vmul.f32 0.5, %v252
    %v254 = vsub.f32 1.5, %v253
    %v255 = vmul.f32 %v250, %v254
    %vm256 = vweird.f32 %v239
    %vm257 = vweird.f32 %v250
    %vm258 = vmor %vm256, %vm257
    %v259 = vsel %vm258, %v250, %v255
    %v260 = vmul.f32 %v226, %v249
    %v261 = vmul.f32 %v227, %v259
    %v263 = vperm.slane %v208, 0
    %v265 = vmul.f32 %v260, %v263
    %v266 = vmul.f32 %v261, %v263
    %v268 = vperm.slane %v209, 0
    %v270 = vadd.f32 %v265, %v268
    %v271 = vadd.f32 %v266, %v268
    %v272 = vld [vmem:[%s17] sm:$0xff]
    %v273 = vld [vmem:[%s17 + $0x8] sm:$0xff]
    %v274 = vld [vmem:[%s17 + $0x10] sm:$0xff]
    %v275 = vld [vmem:[%s17 + $0x18] sm:$0xff]
    %v276 = vld [vmem:[%s19] sm:$0x1]
    %v278 = vperm.slane %v276, 0
    %v281 = vsel %vm210, %v270, 0
    %v284 = vsel %vm210, %v271, 0
    %286 = vmatpush.msra.mxu0 0.0
    %287 = vmatpush.msra.mxu0 0.0
    %288 = vmatpush.msra.mxu0 0.0
    %289 = vmatpush.msra.mxu0 0.0
    %290 = vmatpush.msra.mxu0 0.0
    %291 = vmatpush.msra.mxu0 0.0
    %292 = vmatpush.msra.mxu0 0.0
    %293 = vmatpush.msra.mxu0 0.0
    %294 = vmatpush.msra.mxu0 0.0
    %295 = vmatpush.msra.mxu0 0.0
    %296 = vmatpush.msra.mxu0 0.0
    %297 = vmatpush.msra.mxu0 0.0
    %298 = vmatpush.msra.mxu0 %v275
    %299 = vmatpush.msra.mxu0 %v274
    %300 = vmatpush.msra.mxu0 %v273
    %301 = vmatpush.msra.mxu0 %v272
    %302 = vmatmul.f32.gmra.mxu0 %v281
    %v303 = vpop.f32.mrf.mxu0
    %v304 = vadd.f32 %v278, %v303
    %305 = vmatmul.f32.gmra.mxu0 %v284
    %v306 = vpop.f32.mrf.mxu0
    %v307 = vadd.f32 %v278, %v306
    %308 = vdwg.mxu0
    %v309 = vld [vmem:[%s21] sm:$0xff]
    %v310 = vld [vmem:[%s21 + $0x8] sm:$0xff]
    %v311 = vld [vmem:[%s21 + $0x10] sm:$0xff]
    %v312 = vld [vmem:[%s21 + $0x18] sm:$0xff]
    %v313 = vld [vmem:[%s23] sm:$0x1]
    %v315 = vperm.slane %v313, 0
    %317 = vmatpush.msra.mxu0 0.0
    %318 = vmatpush.msra.mxu0 0.0
    %319 = vmatpush.msra.mxu0 0.0
    %320 = vmatpush.msra.mxu0 0.0
    %321 = vmatpush.msra.mxu0 0.0
    %322 = vmatpush.msra.mxu0 0.0
    %323 = vmatpush.msra.mxu0 0.0
    %324 = vmatpush.msra.mxu0 0.0
    %325 = vmatpush.msra.mxu0 0.0
    %326 = vmatpush.msra.mxu0 0.0
    %327 = vmatpush.msra.mxu0 0.0
    %328 = vmatpush.msra.mxu0 0.0
    %329 = vmatpush.msra.mxu0 %v312
    %330 = vmatpush.msra.mxu0 %v311
    %331 = vmatpush.msra.mxu0 %v310
    %332 = vmatpush.msra.mxu0 %v309
    %333 = vmatmul.f32.gmra.mxu0 %v281
    %v334 = vpop.f32.mrf.mxu0
    %v335 = vadd.f32 %v315, %v334
    %336 = vmatmul.f32.gmra.mxu0 %v284
    %v337 = vpop.f32.mrf.mxu0
    %v338 = vadd.f32 %v315, %v337
    %339 = vdwg.mxu0
    %v340 = vld [vmem:[%s25] sm:$0xff]
    %v341 = vld [vmem:[%s25 + $0x8] sm:$0xff]
    %v342 = vld [vmem:[%s25 + $0x10] sm:$0xff]
    %v343 = vld [vmem:[%s25 + $0x18] sm:$0xff]
    %v344 = vld [vmem:[%s27] sm:$0x1]
    %v346 = vperm.slane %v344, 0
    %348 = vmatpush.msra.mxu0 0.0
    %349 = vmatpush.msra.mxu0 0.0
    %350 = vmatpush.msra.mxu0 0.0
    %351 = vmatpush.msra.mxu0 0.0
    %352 = vmatpush.msra.mxu0 0.0
    %353 = vmatpush.msra.mxu0 0.0
    %354 = vmatpush.msra.mxu0 0.0
    %355 = vmatpush.msra.mxu0 0.0
    %356 = vmatpush.msra.mxu0 0.0
    %357 = vmatpush.msra.mxu0 0.0
    %358 = vmatpush.msra.mxu0 0.0
    %359 = vmatpush.msra.mxu0 0.0
    %360 = vmatpush.msra.mxu0 %v343
    %361 = vmatpush.msra.mxu0 %v342
    %362 = vmatpush.msra.mxu0 %v341
    %363 = vmatpush.msra.mxu0 %v340
    %364 = vmatmul.f32.gmra.mxu0 %v281
    %v365 = vpop.f32.mrf.mxu0
    %v366 = vadd.f32 %v346, %v365
    %367 = vmatmul.f32.gmra.mxu0 %v284
    %v368 = vpop.f32.mrf.mxu0
    %v369 = vadd.f32 %v346, %v368
    %370 = vdwg.mxu0
    %vm371 = vcmask 64512
    %v373 = vsel %vm371, %v304, 0
    %v376 = vsel %vm371, %v335, 0
    %378 = vmatpush.xpose.msra.mxu0 0.0
    %379 = vmatpush.xpose.msra.mxu0 0.0
    %380 = vmatpush.xpose.msra.mxu0 0.0
    %381 = vmatpush.xpose.msra.mxu0 0.0
    %382 = vmatpush.xpose.msra.mxu0 0.0
    %383 = vmatpush.xpose.msra.mxu0 0.0
    %384 = vmatpush.xpose.msra.mxu0 0.0
    %385 = vmatpush.xpose.msra.mxu0 0.0
    %386 = vmatpush.xpose.msra.mxu0 0.0
    %387 = vmatpush.xpose.msra.mxu0 0.0
    %388 = vmatpush.xpose.msra.mxu0 0.0
    %389 = vmatpush.xpose.msra.mxu0 0.0
    %390 = vmatpush.xpose.msra.mxu0 0.0
    %391 = vmatpush.xpose.msra.mxu0 0.0
    %392 = vmatpush.xpose.msra.mxu0 0.0
    %393 = vmatpush.xpose.msra.mxu0 %v376
    %394 = vmatmul.f32.gmra.mxu0 %v373
    %v395 = vpop.f32.mrf.mxu0
    %v396 = vadd.f32 0.0, %v395
    %397 = vdwg.mxu0
    %v399 = vsel %vm371, %v307, 0
    %v402 = vsel %vm371, %v338, 0
    %404 = vmatpush.xpose.msra.mxu0 0.0
    %405 = vmatpush.xpose.msra.mxu0 0.0
    %406 = vmatpush.xpose.msra.mxu0 0.0
    %407 = vmatpush.xpose.msra.mxu0 0.0
    %408 = vmatpush.xpose.msra.mxu0 0.0
    %409 = vmatpush.xpose.msra.mxu0 0.0
    %410 = vmatpush.xpose.msra.mxu0 0.0
    %411 = vmatpush.xpose.msra.mxu0 0.0
    %412 = vmatpush.xpose.msra.mxu0 0.0
    %413 = vmatpush.xpose.msra.mxu0 0.0
    %414 = vmatpush.xpose.msra.mxu0 0.0
    %415 = vmatpush.xpose.msra.mxu0 0.0
    %416 = vmatpush.xpose.msra.mxu0 0.0
    %417 = vmatpush.xpose.msra.mxu0 0.0
    %418 = vmatpush.xpose.msra.mxu0 0.0
    %419 = vmatpush.xpose.msra.mxu0 %v402
    %420 = vmatmul.f32.gmra.mxu0 %v399
    %v421 = vpop.f32.mrf.mxu0
    %v422 = vadd.f32 0.0, %v421
    %423 = vdwg.mxu0
    %v424 = vmul.f32 %v396, 0.35355338
    %v425 = vmul.f32 %v422, 0.35355338
    %v426 = vsel %vm371, %v424, -inf
    %427 = vmax.xlane.f32.xlu0 %v426
    %v428 = vpop.xlane.xlu0 %427
    %v429 = vsel %vm371, %v425, -inf
    %430 = vmax.xlane.f32.xlu0 %v429
    %v431 = vpop.xlane.xlu0 %430
    %v432 = vsub.f32 %v424, %v428
    %v433 = vsub.f32 %v425, %v431
    %v434 = vmul.f32 %v432, 1.442695
    %v435 = vpow.pop %v434
    %v436 = vmul.f32 %v433, 1.442695
    %v437 = vpow.pop %v436
    %v438 = vsel %vm371, %v435, 0.0
    %439 = vadd.xlane.f32.xlu0 %v438
    %v440 = vpop.xlane.xlu0 %439
    %v441 = vsel %vm371, %v437, 0.0
    %442 = vadd.xlane.f32.xlu0 %v441
    %v443 = vpop.xlane.xlu0 %442
    %v444 = vrcp.pop %v440
    %v445 = vrcp.pop %v443
    %v446 = vmul.f32 %v435, %v444
    %v447 = vmul.f32 %v437, %v445
    %v449 = vsel %vm371, %v446, 0
    %451 = vmatpush.msra.mxu0 0.0
    %452 = vmatpush.msra.mxu0 0.0
    %453 = vmatpush.msra.mxu0 0.0
    %454 = vmatpush.msra.mxu0 0.0
    %455 = vmatpush.msra.mxu0 0.0
    %456 = vmatpush.msra.mxu0 0.0
    %457 = vmatpush.msra.mxu0 0.0
    %458 = vmatpush.msra.mxu0 0.0
    %459 = vmatpush.msra.mxu0 0.0
    %460 = vmatpush.msra.mxu0 0.0
    %461 = vmatpush.msra.mxu0 0.0
    %462 = vmatpush.msra.mxu0 0.0
    %463 = vmatpush.msra.mxu0 0.0
    %464 = vmatpush.msra.mxu0 0.0
    %465 = vmatpush.msra.mxu0 0.0
    %466 = vmatpush.msra.mxu0 %v366
    %467 = vmatmul.f32.gmra.mxu0 %v449
    %v468 = vpop.f32.mrf.mxu0
    %v469 = vadd.f32 0.0, %v468
    %470 = vdwg.mxu0
    %v472 = vsel %vm371, %v447, 0
    %474 = vmatpush.msra.mxu0 0.0
    %475 = vmatpush.msra.mxu0 0.0
    %476 = vmatpush.msra.mxu0 0.0
    %477 = vmatpush.msra.mxu0 0.0
    %478 = vmatpush.msra.mxu0 0.0
    %479 = vmatpush.msra.mxu0 0.0
    %480 = vmatpush.msra.mxu0 0.0
    %481 = vmatpush.msra.mxu0 0.0
    %482 = vmatpush.msra.mxu0 0.0
    %483 = vmatpush.msra.mxu0 0.0
    %484 = vmatpush.msra.mxu0 0.0
    %485 = vmatpush.msra.mxu0 0.0
    %486 = vmatpush.msra.mxu0 0.0
    %487 = vmatpush.msra.mxu0 0.0
    %488 = vmatpush.msra.mxu0 0.0
    %489 = vmatpush.msra.mxu0 %v369
    %490 = vmatmul.f32.gmra.mxu0 %v472
    %v491 = vpop.f32.mrf.mxu0
    %v492 = vadd.f32 0.0, %v491
    %493 = vdwg.mxu0
    %v494 = vld [vmem:[%s29] sm:$0xff]
    %s495 = scalar_lea.vmem %s17, 32
    %v496 = vld [vmem:[%s495] sm:$0xff]
    %v497 = vld [vmem:[%s495 + $0x8] sm:$0xff]
    %v498 = vld [vmem:[%s495 + $0x10] sm:$0xff]
    %v499 = vld [vmem:[%s495 + $0x18] sm:$0xff]
    %s500 = scalar_lea.vmem %s19, 1
    %v501 = vld [vmem:[%s500] sm:$0x1]
    %v503 = vperm.slane %v501, 0
    %505 = vmatpush.msra.mxu0 0.0
    %506 = vmatpush.msra.mxu0 0.0
    %507 = vmatpush.msra.mxu0 0.0
    %508 = vmatpush.msra.mxu0 0.0
    %509 = vmatpush.msra.mxu0 0.0
    %510 = vmatpush.msra.mxu0 0.0
    %511 = vmatpush.msra.mxu0 0.0
    %512 = vmatpush.msra.mxu0 0.0
    %513 = vmatpush.msra.mxu0 0.0
    %514 = vmatpush.msra.mxu0 0.0
    %515 = vmatpush.msra.mxu0 0.0
    %516 = vmatpush.msra.mxu0 0.0
    %517 = vmatpush.msra.mxu0 %v499
    %518 = vmatpush.msra.mxu0 %v498
    %519 = vmatpush.msra.mxu0 %v497
    %520 = vmatpush.msra.mxu0 %v496
    %521 = vmatmul.f32.gmra.mxu0 %v281
    %v522 = vpop.f32.mrf.mxu0
    %v523 = vadd.f32 %v503, %v522
    %524 = vmatmul.f32.gmra.mxu0 %v284
    %v525 = vpop.f32.mrf.mxu0
    %v526 = vadd.f32 %v503, %v525
    %527 = vdwg.mxu0
    %s528 = scalar_lea.vmem %s21, 32
    %v529 = vld [vmem:[%s528] sm:$0xff]
    %v530 = vld [vmem:[%s528 + $0x8] sm:$0xff]
    %v531 = vld [vmem:[%s528 + $0x10] sm:$0xff]
    %v532 = vld [vmem:[%s528 + $0x18] sm:$0xff]
    %s533 = scalar_lea.vmem %s23, 1
    %v534 = vld [vmem:[%s533] sm:$0x1]
    %v536 = vperm.slane %v534, 0
    %538 = vmatpush.msra.mxu0 0.0
    %539 = vmatpush.msra.mxu0 0.0
    %540 = vmatpush.msra.mxu0 0.0
    %541 = vmatpush.msra.mxu0 0.0
    %542 = vmatpush.msra.mxu0 0.0
    %543 = vmatpush.msra.mxu0 0.0
    %544 = vmatpush.msra.mxu0 0.0
    %545 = vmatpush.msra.mxu0 0.0
    %546 = vmatpush.msra.mxu0 0.0
    %547 = vmatpush.msra.mxu0 0.0
    %548 = vmatpush.msra.mxu0 0.0
    %549 = vmatpush.msra.mxu0 0.0
    %550 = vmatpush.msra.mxu0 %v532
    %551 = vmatpush.msra.mxu0 %v531
    %552 = vmatpush.msra.mxu0 %v530
    %553 = vmatpush.msra.mxu0 %v529
    %554 = vmatmul.f32.gmra.mxu0 %v281
    %v555 = vpop.f32.mrf.mxu0
    %v556 = vadd.f32 %v536, %v555
    %557 = vmatmul.f32.gmra.mxu0 %v284
    %v558 = vpop.f32.mrf.mxu0
    %v559 = vadd.f32 %v536, %v558
    %560 = vdwg.mxu0
    %s561 = scalar_lea.vmem %s25, 32
    %v562 = vld [vmem:[%s561] sm:$0xff]
    %v563 = vld [vmem:[%s561 + $0x8] sm:$0xff]
    %v564 = vld [vmem:[%s561 + $0x10] sm:$0xff]
    %v565 = vld [vmem:[%s561 + $0x18] sm:$0xff]
    %s566 = scalar_lea.vmem %s27, 1
    %v567 = vld [vmem:[%s566] sm:$0x1]
    %v569 = vperm.slane %v567, 0
    %571 = vmatpush.msra.mxu0 0.0
    %572 = vmatpush.msra.mxu0 0.0
    %573 = vmatpush.msra.mxu0 0.0
    %574 = vmatpush.msra.mxu0 0.0
    %575 = vmatpush.msra.mxu0 0.0
    %576 = vmatpush.msra.mxu0 0.0
    %577 = vmatpush.msra.mxu0 0.0
    %578 = vmatpush.msra.mxu0 0.0
    %579 = vmatpush.msra.mxu0 0.0
    %580 = vmatpush.msra.mxu0 0.0
    %581 = vmatpush.msra.mxu0 0.0
    %582 = vmatpush.msra.mxu0 0.0
    %583 = vmatpush.msra.mxu0 %v565
    %584 = vmatpush.msra.mxu0 %v564
    %585 = vmatpush.msra.mxu0 %v563
    %586 = vmatpush.msra.mxu0 %v562
    %587 = vmatmul.f32.gmra.mxu0 %v281
    %v588 = vpop.f32.mrf.mxu0
    %v589 = vadd.f32 %v569, %v588
    %590 = vmatmul.f32.gmra.mxu0 %v284
    %v591 = vpop.f32.mrf.mxu0
    %v592 = vadd.f32 %v569, %v591
    %593 = vdwg.mxu0
    %v595 = vsel %vm371, %v523, 0
    %v598 = vsel %vm371, %v556, 0
    %600 = vmatpush.xpose.msra.mxu0 0.0
    %601 = vmatpush.xpose.msra.mxu0 0.0
    %602 = vmatpush.xpose.msra.mxu0 0.0
    %603 = vmatpush.xpose.msra.mxu0 0.0
    %604 = vmatpush.xpose.msra.mxu0 0.0
    %605 = vmatpush.xpose.msra.mxu0 0.0
    %606 = vmatpush.xpose.msra.mxu0 0.0
    %607 = vmatpush.xpose.msra.mxu0 0.0
    %608 = vmatpush.xpose.msra.mxu0 0.0
    %609 = vmatpush.xpose.msra.mxu0 0.0
    %610 = vmatpush.xpose.msra.mxu0 0.0
    %611 = vmatpush.xpose.msra.mxu0 0.0
    %612 = vmatpush.xpose.msra.mxu0 0.0
    %613 = vmatpush.xpose.msra.mxu0 0.0
    %614 = vmatpush.xpose.msra.mxu0 0.0
    %615 = vmatpush.xpose.msra.mxu0 %v598
    %616 = vmatmul.f32.gmra.mxu0 %v595
    %v617 = vpop.f32.mrf.mxu0
    %v618 = vadd.f32 0.0, %v617
    %619 = vdwg.mxu0
    %v621 = vsel %vm371, %v526, 0
    %v624 = vsel %vm371, %v559, 0
    %626 = vmatpush.xpose.msra.mxu0 0.0
    %627 = vmatpush.xpose.msra.mxu0 0.0
    %628 = vmatpush.xpose.msra.mxu0 0.0
    %629 = vmatpush.xpose.msra.mxu0 0.0
    %630 = vmatpush.xpose.msra.mxu0 0.0
    %631 = vmatpush.xpose.msra.mxu0 0.0
    %632 = vmatpush.xpose.msra.mxu0 0.0
    %633 = vmatpush.xpose.msra.mxu0 0.0
    %634 = vmatpush.xpose.msra.mxu0 0.0
    %635 = vmatpush.xpose.msra.mxu0 0.0
    %636 = vmatpush.xpose.msra.mxu0 0.0
    %637 = vmatpush.xpose.msra.mxu0 0.0
    %638 = vmatpush.xpose.msra.mxu0 0.0
    %639 = vmatpush.xpose.msra.mxu0 0.0
    %640 = vmatpush.xpose.msra.mxu0 0.0
    %641 = vmatpush.xpose.msra.mxu0 %v624
    %642 = vmatmul.f32.gmra.mxu0 %v621
    %v643 = vpop.f32.mrf.mxu0
    %v644 = vadd.f32 0.0, %v643
    %645 = vdwg.mxu0
    %v646 = vmul.f32 %v618, 0.35355338
    %v647 = vmul.f32 %v644, 0.35355338
    %v648 = vsel %vm371, %v646, -inf
    %649 = vmax.xlane.f32.xlu0 %v648
    %v650 = vpop.xlane.xlu0 %649
    %v651 = vsel %vm371, %v647, -inf
    %652 = vmax.xlane.f32.xlu0 %v651
    %v653 = vpop.xlane.xlu0 %652
    %v654 = vsub.f32 %v646, %v650
    %v655 = vsub.f32 %v647, %v653
    %v656 = vmul.f32 %v654, 1.442695
    %v657 = vpow.pop %v656
    %v658 = vmul.f32 %v655, 1.442695
    %v659 = vpow.pop %v658
    %v660 = vsel %vm371, %v657, 0.0
    %661 = vadd.xlane.f32.xlu0 %v660
    %v662 = vpop.xlane.xlu0 %661
    %v663 = vsel %vm371, %v659, 0.0
    %664 = vadd.xlane.f32.xlu0 %v663
    %v665 = vpop.xlane.xlu0 %664
    %v666 = vrcp.pop %v662
    %v667 = vrcp.pop %v665
    %v668 = vmul.f32 %v657, %v666
    %v669 = vmul.f32 %v659, %v667
    %v671 = vsel %vm371, %v668, 0
    %673 = vmatpush.msra.mxu0 0.0
    %674 = vmatpush.msra.mxu0 0.0
    %675 = vmatpush.msra.mxu0 0.0
    %676 = vmatpush.msra.mxu0 0.0
    %677 = vmatpush.msra.mxu0 0.0
    %678 = vmatpush.msra.mxu0 0.0
    %679 = vmatpush.msra.mxu0 0.0
    %680 = vmatpush.msra.mxu0 0.0
    %681 = vmatpush.msra.mxu0 0.0
    %682 = vmatpush.msra.mxu0 0.0
    %683 = vmatpush.msra.mxu0 0.0
    %684 = vmatpush.msra.mxu0 0.0
    %685 = vmatpush.msra.mxu0 0.0
    %686 = vmatpush.msra.mxu0 0.0
    %687 = vmatpush.msra.mxu0 0.0
    %688 = vmatpush.msra.mxu0 %v589
    %689 = vmatmul.f32.gmra.mxu0 %v671
    %v690 = vpop.f32.mrf.mxu0
    %v691 = vadd.f32 0.0, %v690
    %692 = vdwg.mxu0
    %v694 = vsel %vm371, %v669, 0
    %696 = vmatpush.msra.mxu0 0.0
    %697 = vmatpush.msra.mxu0 0.0
    %698 = vmatpush.msra.mxu0 0.0
    %699 = vmatpush.msra.mxu0 0.0
    %700 = vmatpush.msra.mxu0 0.0
    %701 = vmatpush.msra.mxu0 0.0
    %702 = vmatpush.msra.mxu0 0.0
    %703 = vmatpush.msra.mxu0 0.0
    %704 = vmatpush.msra.mxu0 0.0
    %705 = vmatpush.msra.mxu0 0.0
    %706 = vmatpush.msra.mxu0 0.0
    %707 = vmatpush.msra.mxu0 0.0
    %708 = vmatpush.msra.mxu0 0.0
    %709 = vmatpush.msra.mxu0 0.0
    %710 = vmatpush.msra.mxu0 0.0
    %711 = vmatpush.msra.mxu0 %v592
    %712 = vmatmul.f32.gmra.mxu0 %v694
    %v713 = vpop.f32.mrf.mxu0
    %v714 = vadd.f32 0.0, %v713
    %715 = vdwg.mxu0
    %s716 = scalar_lea.vmem %s29, 8
    %v717 = vld [vmem:[%s716] sm:$0xff]
    %v719 = vsel %vm371, %v691, 0
    %v722 = vsel %vm371, %v714, 0
    %724 = vmatpush.msra.mxu0 0.0
    %725 = vmatpush.msra.mxu0 0.0
    %726 = vmatpush.msra.mxu0 0.0
    %727 = vmatpush.msra.mxu0 0.0
    %728 = vmatpush.msra.mxu0 0.0
    %729 = vmatpush.msra.mxu0 0.0
    %730 = vmatpush.msra.mxu0 0.0
    %731 = vmatpush.msra.mxu0 0.0
    %732 = vmatpush.msra.mxu0 0.0
    %733 = vmatpush.msra.mxu0 0.0
    %734 = vmatpush.msra.mxu0 0.0
    %735 = vmatpush.msra.mxu0 0.0
    %736 = vmatpush.msra.mxu0 0.0
    %737 = vmatpush.msra.mxu0 0.0
    %738 = vmatpush.msra.mxu0 0.0
    %739 = vmatpush.msra.mxu0 %v717
    %740 = vmatmul.f32.gmra.mxu0 %v719
    %v741 = vpop.f32.mrf.mxu0
    %v742 = vadd.f32 0.0, %v741
    %743 = vmatmul.f32.gmra.mxu0 %v722
    %v744 = vpop.f32.mrf.mxu0
    %v745 = vadd.f32 0.0, %v744
    %746 = vdwg.mxu0
    %v748 = vsel %vm371, %v469, 0
    %v751 = vsel %vm371, %v492, 0
    %753 = vmatpush.msra.mxu0 0.0
    %754 = vmatpush.msra.mxu0 0.0
    %755 = vmatpush.msra.mxu0 0.0
    %756 = vmatpush.msra.mxu0 0.0
    %757 = vmatpush.msra.mxu0 0.0
    %758 = vmatpush.msra.mxu0 0.0
    %759 = vmatpush.msra.mxu0 0.0
    %760 = vmatpush.msra.mxu0 0.0
    %761 = vmatpush.msra.mxu0 0.0
    %762 = vmatpush.msra.mxu0 0.0
    %763 = vmatpush.msra.mxu0 0.0
    %764 = vmatpush.msra.mxu0 0.0
    %765 = vmatpush.msra.mxu0 0.0
    %766 = vmatpush.msra.mxu0 0.0
    %767 = vmatpush.msra.mxu0 0.0
    %768 = vmatpush.msra.mxu0 %v494
    %769 = vmatmul.f32.gmra.mxu0 %v748
    %v770 = vpop.f32.mrf.mxu0
    %v771 = vadd.f32 %v742, %v770
    %772 = vmatmul.f32.gmra.mxu0 %v751
    %v773 = vpop.f32.mrf.mxu0
    %v774 = vadd.f32 %v745, %v773
    %775 = vdwg.mxu0
    %s776 = scalar_lea.vmem %s17, 64
    %v777 = vld [vmem:[%s776] sm:$0xff]
    %v778 = vld [vmem:[%s776 + $0x8] sm:$0xff]
    %v779 = vld [vmem:[%s776 + $0x10] sm:$0xff]
    %v780 = vld [vmem:[%s776 + $0x18] sm:$0xff]
    %s781 = scalar_lea.vmem %s19, 2
    %v782 = vld [vmem:[%s781] sm:$0x1]
    %v784 = vperm.slane %v782, 0
    %786 = vmatpush.msra.mxu0 0.0
    %787 = vmatpush.msra.mxu0 0.0
    %788 = vmatpush.msra.mxu0 0.0
    %789 = vmatpush.msra.mxu0 0.0
    %790 = vmatpush.msra.mxu0 0.0
    %791 = vmatpush.msra.mxu0 0.0
    %792 = vmatpush.msra.mxu0 0.0
    %793 = vmatpush.msra.mxu0 0.0
    %794 = vmatpush.msra.mxu0 0.0
    %795 = vmatpush.msra.mxu0 0.0
    %796 = vmatpush.msra.mxu0 0.0
    %797 = vmatpush.msra.mxu0 0.0
    %798 = vmatpush.msra.mxu0 %v780
    %799 = vmatpush.msra.mxu0 %v779
    %800 = vmatpush.msra.mxu0 %v778
    %801 = vmatpush.msra.mxu0 %v777
    %802 = vmatmul.f32.gmra.mxu0 %v281
    %v803 = vpop.f32.mrf.mxu0
    %v804 = vadd.f32 %v784, %v803
    %805 = vmatmul.f32.gmra.mxu0 %v284
    %v806 = vpop.f32.mrf.mxu0
    %v807 = vadd.f32 %v784, %v806
    %808 = vdwg.mxu0
    %s809 = scalar_lea.vmem %s21, 64
    %v810 = vld [vmem:[%s809] sm:$0xff]
    %v811 = vld [vmem:[%s809 + $0x8] sm:$0xff]
    %v812 = vld [vmem:[%s809 + $0x10] sm:$0xff]
    %v813 = vld [vmem:[%s809 + $0x18] sm:$0xff]
    %s814 = scalar_lea.vmem %s23, 2
    %v815 = vld [vmem:[%s814] sm:$0x1]
    %v817 = vperm.slane %v815, 0
    %819 = vmatpush.msra.mxu0 0.0
    %820 = vmatpush.msra.mxu0 0.0
    %821 = vmatpush.msra.mxu0 0.0
    %822 = vmatpush.msra.mxu0 0.0
    %823 = vmatpush.msra.mxu0 0.0
    %824 = vmatpush.msra.mxu0 0.0
    %825 = vmatpush.msra.mxu0 0.0
    %826 = vmatpush.msra.mxu0 0.0
    %827 = vmatpush.msra.mxu0 0.0
    %828 = vmatpush.msra.mxu0 0.0
    %829 = vmatpush.msra.mxu0 0.0
    %830 = vmatpush.msra.mxu0 0.0
    %831 = vmatpush.msra.mxu0 %v813
    %832 = vmatpush.msra.mxu0 %v812
    %833 = vmatpush.msra.mxu0 %v811
    %834 = vmatpush.msra.mxu0 %v810
    %835 = vmatmul.f32.gmra.mxu0 %v281
    %v836 = vpop.f32.mrf.mxu0
    %v837 = vadd.f32 %v817, %v836
    %838 = vmatmul.f32.gmra.mxu0 %v284
    %v839 = vpop.f32.mrf.mxu0
    %v840 = vadd.f32 %v817, %v839
    %841 = vdwg.mxu0
    %s842 = scalar_lea.vmem %s25, 64
    %v843 = vld [vmem:[%s842] sm:$0xff]
    %v844 = vld [vmem:[%s842 + $0x8] sm:$0xff]
    %v845 = vld [vmem:[%s842 + $0x10] sm:$0xff]
    %v846 = vld [vmem:[%s842 + $0x18] sm:$0xff]
    %s847 = scalar_lea.vmem %s27, 2
    %v848 = vld [vmem:[%s847] sm:$0x1]
    %v850 = vperm.slane %v848, 0
    %852 = vmatpush.msra.mxu0 0.0
    %853 = vmatpush.msra.mxu0 0.0
    %854 = vmatpush.msra.mxu0 0.0
    %855 = vmatpush.msra.mxu0 0.0
    %856 = vmatpush.msra.mxu0 0.0
    %857 = vmatpush.msra.mxu0 0.0
    %858 = vmatpush.msra.mxu0 0.0
    %859 = vmatpush.msra.mxu0 0.0
    %860 = vmatpush.msra.mxu0 0.0
    %861 = vmatpush.msra.mxu0 0.0
    %862 = vmatpush.msra.mxu0 0.0
    %863 = vmatpush.msra.mxu0 0.0
    %864 = vmatpush.msra.mxu0 %v846
    %865 = vmatpush.msra.mxu0 %v845
    %866 = vmatpush.msra.mxu0 %v844
    %867 = vmatpush.msra.mxu0 %v843
    %868 = vmatmul.f32.gmra.mxu0 %v281
    %v869 = vpop.f32.mrf.mxu0
    %v870 = vadd.f32 %v850, %v869
    %871 = vmatmul.f32.gmra.mxu0 %v284
    %v872 = vpop.f32.mrf.mxu0
    %v873 = vadd.f32 %v850, %v872
    %874 = vdwg.mxu0
    %v876 = vsel %vm371, %v804, 0
    %v879 = vsel %vm371, %v837, 0
    %881 = vmatpush.xpose.msra.mxu0 0.0
    %882 = vmatpush.xpose.msra.mxu0 0.0
    %883 = vmatpush.xpose.msra.mxu0 0.0
    %884 = vmatpush.xpose.msra.mxu0 0.0
    %885 = vmatpush.xpose.msra.mxu0 0.0
    %886 = vmatpush.xpose.msra.mxu0 0.0
    %887 = vmatpush.xpose.msra.mxu0 0.0
    %888 = vmatpush.xpose.msra.mxu0 0.0
    %889 = vmatpush.xpose.msra.mxu0 0.0
    %890 = vmatpush.xpose.msra.mxu0 0.0
    %891 = vmatpush.xpose.msra.mxu0 0.0
    %892 = vmatpush.xpose.msra.mxu0 0.0
    %893 = vmatpush.xpose.msra.mxu0 0.0
    %894 = vmatpush.xpose.msra.mxu0 0.0
    %895 = vmatpush.xpose.msra.mxu0 0.0
    %896 = vmatpush.xpose.msra.mxu0 %v879
    %897 = vmatmul.f32.gmra.mxu0 %v876
    %v898 = vpop.f32.mrf.mxu0
    %v899 = vadd.f32 0.0, %v898
    %900 = vdwg.mxu0
    %v902 = vsel %vm371, %v807, 0
    %v905 = vsel %vm371, %v840, 0
    %907 = vmatpush.xpose.msra.mxu0 0.0
    %908 = vmatpush.xpose.msra.mxu0 0.0
    %909 = vmatpush.xpose.msra.mxu0 0.0
    %910 = vmatpush.xpose.msra.mxu0 0.0
    %911 = vmatpush.xpose.msra.mxu0 0.0
    %912 = vmatpush.xpose.msra.mxu0 0.0
    %913 = vmatpush.xpose.msra.mxu0 0.0
    %914 = vmatpush.xpose.msra.mxu0 0.0
    %915 = vmatpush.xpose.msra.mxu0 0.0
    %916 = vmatpush.xpose.msra.mxu0 0.0
    %917 = vmatpush.xpose.msra.mxu0 0.0
    %918 = vmatpush.xpose.msra.mxu0 0.0
    %919 = vmatpush.xpose.msra.mxu0 0.0
    %920 = vmatpush.xpose.msra.mxu0 0.0
    %921 = vmatpush.xpose.msra.mxu0 0.0
    %922 = vmatpush.xpose.msra.mxu0 %v905
    %923 = vmatmul.f32.gmra.mxu0 %v902
    %v924 = vpop.f32.mrf.mxu0
    %v925 = vadd.f32 0.0, %v924
    %926 = vdwg.mxu0
    %v927 = vmul.f32 %v899, 0.35355338
    %v928 = vmul.f32 %v925, 0.35355338
    %v929 = vsel %vm371, %v927, -inf
    %930 = vmax.xlane.f32.xlu0 %v929
    %v931 = vpop.xlane.xlu0 %930
    %v932 = vsel %vm371, %v928, -inf
    %933 = vmax.xlane.f32.xlu0 %v932
    %v934 = vpop.xlane.xlu0 %933
    %v935 = vsub.f32 %v927, %v931
    %v936 = vsub.f32 %v928, %v934
    %v937 = vmul.f32 %v935, 1.442695
    %v938 = vpow.pop %v937
    %v939 = vmul.f32 %v936, 1.442695
    %v940 = vpow.pop %v939
    %v941 = vsel %vm371, %v938, 0.0
    %942 = vadd.xlane.f32.xlu0 %v941
    %v943 = vpop.xlane.xlu0 %942
    %v944 = vsel %vm371, %v940, 0.0
    %945 = vadd.xlane.f32.xlu0 %v944
    %v946 = vpop.xlane.xlu0 %945
    %v947 = vrcp.pop %v943
    %v948 = vrcp.pop %v946
    %v949 = vmul.f32 %v938, %v947
    %v950 = vmul.f32 %v940, %v948
    %v952 = vsel %vm371, %v949, 0
    %954 = vmatpush.msra.mxu0 0.0
    %955 = vmatpush.msra.mxu0 0.0
    %956 = vmatpush.msra.mxu0 0.0
    %957 = vmatpush.msra.mxu0 0.0
    %958 = vmatpush.msra.mxu0 0.0
    %959 = vmatpush.msra.mxu0 0.0
    %960 = vmatpush.msra.mxu0 0.0
    %961 = vmatpush.msra.mxu0 0.0
    %962 = vmatpush.msra.mxu0 0.0
    %963 = vmatpush.msra.mxu0 0.0
    %964 = vmatpush.msra.mxu0 0.0
    %965 = vmatpush.msra.mxu0 0.0
    %966 = vmatpush.msra.mxu0 0.0
    %967 = vmatpush.msra.mxu0 0.0
    %968 = vmatpush.msra.mxu0 0.0
    %969 = vmatpush.msra.mxu0 %v870
    %970 = vmatmul.f32.gmra.mxu0 %v952
    %v971 = vpop.f32.mrf.mxu0
    %v972 = vadd.f32 0.0, %v971
    %973 = vdwg.mxu0
    %v975 = vsel %vm371, %v950, 0
    %977 = vmatpush.msra.mxu0 0.0
    %978 = vmatpush.msra.mxu0 0.0
    %979 = vmatpush.msra.mxu0 0.0
    %980 = vmatpush.msra.mxu0 0.0
    %981 = vmatpush.msra.mxu0 0.0
    %982 = vmatpush.msra.mxu0 0.0
    %983 = vmatpush.msra.mxu0 0.0
    %984 = vmatpush.msra.mxu0 0.0
    %985 = vmatpush.msra.mxu0 0.0
    %986 = vmatpush.msra.mxu0 0.0
    %987 = vmatpush.msra.mxu0 0.0
    %988 = vmatpush.msra.mxu0 0.0
    %989 = vmatpush.msra.mxu0 0.0
    %990 = vmatpush.msra.mxu0 0.0
    %991 = vmatpush.msra.mxu0 0.0
    %992 = vmatpush.msra.mxu0 %v873
    %993 = vmatmul.f32.gmra.mxu0 %v975
    %v994 = vpop.f32.mrf.mxu0
    %v995 = vadd.f32 0.0, %v994
    %996 = vdwg.mxu0
    %s997 = scalar_lea.vmem %s29, 16
    %v998 = vld [vmem:[%s997] sm:$0xff]
    %v1000 = vsel %vm371, %v972, 0
    %v1003 = vsel %vm371, %v995, 0
    %1005 = vmatpush.msra.mxu0 0.0
    %1006 = vmatpush.msra.mxu0 0.0
    %1007 = vmatpush.msra.mxu0 0.0
    %1008 = vmatpush.msra.mxu0 0.0
    %1009 = vmatpush.msra.mxu0 0.0
    %1010 = vmatpush.msra.mxu0 0.0
    %1011 = vmatpush.msra.mxu0 0.0
    %1012 = vmatpush.msra.mxu0 0.0
    %1013 = vmatpush.msra.mxu0 0.0
    %1014 = vmatpush.msra.mxu0 0.0
    %1015 = vmatpush.msra.mxu0 0.0
    %1016 = vmatpush.msra.mxu0 0.0
    %1017 = vmatpush.msra.mxu0 0.0
    %1018 = vmatpush.msra.mxu0 0.0
    %1019 = vmatpush.msra.mxu0 0.0
    %1020 = vmatpush.msra.mxu0 %v998
    %1021 = vmatmul.f32.gmra.mxu0 %v1000
    %v1022 = vpop.f32.mrf.mxu0
    %v1023 = vadd.f32 0.0, %v1022
    %1024 = vmatmul.f32.gmra.mxu0 %v1003
    %v1025 = vpop.f32.mrf.mxu0
    %v1026 = vadd.f32 0.0, %v1025
    %1027 = vdwg.mxu0
    %v1028 = vadd.f32 %v771, %v1023
    %v1029 = vadd.f32 %v774, %v1026
    %s1030 = scalar_lea.vmem %s17, 96
    %v1031 = vld [vmem:[%s1030] sm:$0xff]
    %v1032 = vld [vmem:[%s1030 + $0x8] sm:$0xff]
    %v1033 = vld [vmem:[%s1030 + $0x10] sm:$0xff]
    %v1034 = vld [vmem:[%s1030 + $0x18] sm:$0xff]
    %s1035 = scalar_lea.vmem %s19, 3
    %v1036 = vld [vmem:[%s1035] sm:$0x1]
    %v1038 = vperm.slane %v1036, 0
    %1040 = vmatpush.msra.mxu0 0.0
    %1041 = vmatpush.msra.mxu0 0.0
    %1042 = vmatpush.msra.mxu0 0.0
    %1043 = vmatpush.msra.mxu0 0.0
    %1044 = vmatpush.msra.mxu0 0.0
    %1045 = vmatpush.msra.mxu0 0.0
    %1046 = vmatpush.msra.mxu0 0.0
    %1047 = vmatpush.msra.mxu0 0.0
    %1048 = vmatpush.msra.mxu0 0.0
    %1049 = vmatpush.msra.mxu0 0.0
    %1050 = vmatpush.msra.mxu0 0.0
    %1051 = vmatpush.msra.mxu0 0.0
    %1052 = vmatpush.msra.mxu0 %v1034
    %1053 = vmatpush.msra.mxu0 %v1033
    %1054 = vmatpush.msra.mxu0 %v1032
    %1055 = vmatpush.msra.mxu0 %v1031
    %1056 = vmatmul.f32.gmra.mxu0 %v281
    %v1057 = vpop.f32.mrf.mxu0
    %v1058 = vadd.f32 %v1038, %v1057
    %1059 = vmatmul.f32.gmra.mxu0 %v284
    %v1060 = vpop.f32.mrf.mxu0
    %v1061 = vadd.f32 %v1038, %v1060
    %1062 = vdwg.mxu0
    %s1063 = scalar_lea.vmem %s21, 96
    %v1064 = vld [vmem:[%s1063] sm:$0xff]
    %v1065 = vld [vmem:[%s1063 + $0x8] sm:$0xff]
    %v1066 = vld [vmem:[%s1063 + $0x10] sm:$0xff]
    %v1067 = vld [vmem:[%s1063 + $0x18] sm:$0xff]
    %s1068 = scalar_lea.vmem %s23, 3
    %v1069 = vld [vmem:[%s1068] sm:$0x1]
    %v1071 = vperm.slane %v1069, 0
    %1073 = vmatpush.msra.mxu0 0.0
    %1074 = vmatpush.msra.mxu0 0.0
    %1075 = vmatpush.msra.mxu0 0.0
    %1076 = vmatpush.msra.mxu0 0.0
    %1077 = vmatpush.msra.mxu0 0.0
    %1078 = vmatpush.msra.mxu0 0.0
    %1079 = vmatpush.msra.mxu0 0.0
    %1080 = vmatpush.msra.mxu0 0.0
    %1081 = vmatpush.msra.mxu0 0.0
    %1082 = vmatpush.msra.mxu0 0.0
    %1083 = vmatpush.msra.mxu0 0.0
    %1084 = vmatpush.msra.mxu0 0.0
    %1085 = vmatpush.msra.mxu0 %v1067
    %1086 = vmatpush.msra.mxu0 %v1066
    %1087 = vmatpush.msra.mxu0 %v1065
    %1088 = vmatpush.msra.mxu0 %v1064
    %1089 = vmatmul.f32.gmra.mxu0 %v281
    %v1090 = vpop.f32.mrf.mxu0
    %v1091 = vadd.f32 %v1071, %v1090
    %1092 = vmatmul.f32.gmra.mxu0 %v284
    %v1093 = vpop.f32.mrf.mxu0
    %v1094 = vadd.f32 %v1071, %v1093
    %1095 = vdwg.mxu0
    %s1096 = scalar_lea.vmem %s25, 96
    %v1097 = vld [vmem:[%s1096] sm:$0xff]
    %v1098 = vld [vmem:[%s1096 + $0x8] sm:$0xff]
    %v1099 = vld [vmem:[%s1096 + $0x10] sm:$0xff]
    %v1100 = vld [vmem:[%s1096 + $0x18] sm:$0xff]
    %s1101 = scalar_lea.vmem %s27, 3
    %v1102 = vld [vmem:[%s1101] sm:$0x1]
    %v1104 = vperm.slane %v1102, 0
    %1106 = vmatpush.msra.mxu0 0.0
    %1107 = vmatpush.msra.mxu0 0.0
    %1108 = vmatpush.msra.mxu0 0.0
    %1109 = vmatpush.msra.mxu0 0.0
    %1110 = vmatpush.msra.mxu0 0.0
    %1111 = vmatpush.msra.mxu0 0.0
    %1112 = vmatpush.msra.mxu0 0.0
    %1113 = vmatpush.msra.mxu0 0.0
    %1114 = vmatpush.msra.mxu0 0.0
    %1115 = vmatpush.msra.mxu0 0.0
    %1116 = vmatpush.msra.mxu0 0.0
    %1117 = vmatpush.msra.mxu0 0.0
    %1118 = vmatpush.msra.mxu0 %v1100
    %1119 = vmatpush.msra.mxu0 %v1099
    %1120 = vmatpush.msra.mxu0 %v1098
    %1121 = vmatpush.msra.mxu0 %v1097
    %1122 = vmatmul.f32.gmra.mxu0 %v281
    %v1123 = vpop.f32.mrf.mxu0
    %v1124 = vadd.f32 %v1104, %v1123
    %1125 = vmatmul.f32.gmra.mxu0 %v284
    %v1126 = vpop.f32.mrf.mxu0
    %v1127 = vadd.f32 %v1104, %v1126
    %1128 = vdwg.mxu0
    %v1130 = vsel %vm371, %v1058, 0
    %v1133 = vsel %vm371, %v1091, 0
    %1135 = vmatpush.xpose.msra.mxu0 0.0
    %1136 = vmatpush.xpose.msra.mxu0 0.0
    %1137 = vmatpush.xpose.msra.mxu0 0.0
    %1138 = vmatpush.xpose.msra.mxu0 0.0
    %1139 = vmatpush.xpose.msra.mxu0 0.0
    %1140 = vmatpush.xpose.msra.mxu0 0.0
    %1141 = vmatpush.xpose.msra.mxu0 0.0
    %1142 = vmatpush.xpose.msra.mxu0 0.0
    %1143 = vmatpush.xpose.msra.mxu0 0.0
    %1144 = vmatpush.xpose.msra.mxu0 0.0
    %1145 = vmatpush.xpose.msra.mxu0 0.0
    %1146 = vmatpush.xpose.msra.mxu0 0.0
    %1147 = vmatpush.xpose.msra.mxu0 0.0
    %1148 = vmatpush.xpose.msra.mxu0 0.0
    %1149 = vmatpush.xpose.msra.mxu0 0.0
    %1150 = vmatpush.xpose.msra.mxu0 %v1133
    %1151 = vmatmul.f32.gmra.mxu0 %v1130
    %v1152 = vpop.f32.mrf.mxu0
    %v1153 = vadd.f32 0.0, %v1152
    %1154 = vdwg.mxu0
    %v1156 = vsel %vm371, %v1061, 0
    %v1159 = vsel %vm371, %v1094, 0
    %1161 = vmatpush.xpose.msra.mxu0 0.0
    %1162 = vmatpush.xpose.msra.mxu0 0.0
    %1163 = vmatpush.xpose.msra.mxu0 0.0
    %1164 = vmatpush.xpose.msra.mxu0 0.0
    %1165 = vmatpush.xpose.msra.mxu0 0.0
    %1166 = vmatpush.xpose.msra.mxu0 0.0
    %1167 = vmatpush.xpose.msra.mxu0 0.0
    %1168 = vmatpush.xpose.msra.mxu0 0.0
    %1169 = vmatpush.xpose.msra.mxu0 0.0
    %1170 = vmatpush.xpose.msra.mxu0 0.0
    %1171 = vmatpush.xpose.msra.mxu0 0.0
    %1172 = vmatpush.xpose.msra.mxu0 0.0
    %1173 = vmatpush.xpose.msra.mxu0 0.0
    %1174 = vmatpush.xpose.msra.mxu0 0.0
    %1175 = vmatpush.xpose.msra.mxu0 0.0
    %1176 = vmatpush.xpose.msra.mxu0 %v1159
    %1177 = vmatmul.f32.gmra.mxu0 %v1156
    %v1178 = vpop.f32.mrf.mxu0
    %v1179 = vadd.f32 0.0, %v1178
    %1180 = vdwg.mxu0
    %v1181 = vmul.f32 %v1153, 0.35355338
    %v1182 = vmul.f32 %v1179, 0.35355338
    %v1183 = vsel %vm371, %v1181, -inf
    %1184 = vmax.xlane.f32.xlu0 %v1183
    %v1185 = vpop.xlane.xlu0 %1184
    %v1186 = vsel %vm371, %v1182, -inf
    %1187 = vmax.xlane.f32.xlu0 %v1186
    %v1188 = vpop.xlane.xlu0 %1187
    %v1189 = vsub.f32 %v1181, %v1185
    %v1190 = vsub.f32 %v1182, %v1188
    %v1191 = vmul.f32 %v1189, 1.442695
    %v1192 = vpow.pop %v1191
    %v1193 = vmul.f32 %v1190, 1.442695
    %v1194 = vpow.pop %v1193
    %v1195 = vsel %vm371, %v1192, 0.0
    %1196 = vadd.xlane.f32.xlu0 %v1195
    %v1197 = vpop.xlane.xlu0 %1196
    %v1198 = vsel %vm371, %v1194, 0.0
    %1199 = vadd.xlane.f32.xlu0 %v1198
    %v1200 = vpop.xlane.xlu0 %1199
    %v1201 = vrcp.pop %v1197
    %v1202 = vrcp.pop %v1200
    %v1203 = vmul.f32 %v1192, %v1201
    %v1204 = vmul.f32 %v1194, %v1202
    %v1206 = vsel %vm371, %v1203, 0
    %1208 = vmatpush.msra.mxu0 0.0
    %1209 = vmatpush.msra.mxu0 0.0
    %1210 = vmatpush.msra.mxu0 0.0
    %1211 = vmatpush.msra.mxu0 0.0
    %1212 = vmatpush.msra.mxu0 0.0
    %1213 = vmatpush.msra.mxu0 0.0
    %1214 = vmatpush.msra.mxu0 0.0
    %1215 = vmatpush.msra.mxu0 0.0
    %1216 = vmatpush.msra.mxu0 0.0
    %1217 = vmatpush.msra.mxu0 0.0
    %1218 = vmatpush.msra.mxu0 0.0
    %1219 = vmatpush.msra.mxu0 0.0
    %1220 = vmatpush.msra.mxu0 0.0
    %1221 = vmatpush.msra.mxu0 0.0
    %1222 = vmatpush.msra.mxu0 0.0
    %1223 = vmatpush.msra.mxu0 %v1124
    %1224 = vmatmul.f32.gmra.mxu0 %v1206
    %v1225 = vpop.f32.mrf.mxu0
    %v1226 = vadd.f32 0.0, %v1225
    %1227 = vdwg.mxu0
    %v1229 = vsel %vm371, %v1204, 0
    %1231 = vmatpush.msra.mxu0 0.0
    %1232 = vmatpush.msra.mxu0 0.0
    %1233 = vmatpush.msra.mxu0 0.0
    %1234 = vmatpush.msra.mxu0 0.0
    %1235 = vmatpush.msra.mxu0 0.0
    %1236 = vmatpush.msra.mxu0 0.0
    %1237 = vmatpush.msra.mxu0 0.0
    %1238 = vmatpush.msra.mxu0 0.0
    %1239 = vmatpush.msra.mxu0 0.0
    %1240 = vmatpush.msra.mxu0 0.0
    %1241 = vmatpush.msra.mxu0 0.0
    %1242 = vmatpush.msra.mxu0 0.0
    %1243 = vmatpush.msra.mxu0 0.0
    %1244 = vmatpush.msra.mxu0 0.0
    %1245 = vmatpush.msra.mxu0 0.0
    %1246 = vmatpush.msra.mxu0 %v1127
    %1247 = vmatmul.f32.gmra.mxu0 %v1229
    %v1248 = vpop.f32.mrf.mxu0
    %v1249 = vadd.f32 0.0, %v1248
    %1250 = vdwg.mxu0
    %s1251 = scalar_lea.vmem %s29, 24
    %v1252 = vld [vmem:[%s1251] sm:$0xff]
    %v1254 = vsel %vm371, %v1226, 0
    %v1257 = vsel %vm371, %v1249, 0
    %1259 = vmatpush.msra.mxu0 0.0
    %1260 = vmatpush.msra.mxu0 0.0
    %1261 = vmatpush.msra.mxu0 0.0
    %1262 = vmatpush.msra.mxu0 0.0
    %1263 = vmatpush.msra.mxu0 0.0
    %1264 = vmatpush.msra.mxu0 0.0
    %1265 = vmatpush.msra.mxu0 0.0
    %1266 = vmatpush.msra.mxu0 0.0
    %1267 = vmatpush.msra.mxu0 0.0
    %1268 = vmatpush.msra.mxu0 0.0
    %1269 = vmatpush.msra.mxu0 0.0
    %1270 = vmatpush.msra.mxu0 0.0
    %1271 = vmatpush.msra.mxu0 0.0
    %1272 = vmatpush.msra.mxu0 0.0
    %1273 = vmatpush.msra.mxu0 0.0
    %1274 = vmatpush.msra.mxu0 %v1252
    %1275 = vmatmul.f32.gmra.mxu0 %v1254
    %v1276 = vpop.f32.mrf.mxu0
    %v1277 = vadd.f32 0.0, %v1276
    %1278 = vmatmul.f32.gmra.mxu0 %v1257
    %v1279 = vpop.f32.mrf.mxu0
    %v1280 = vadd.f32 0.0, %v1279
    %1281 = vdwg.mxu0
    %v1282 = vadd.f32 %v1028, %v1277
    %v1283 = vadd.f32 %v1029, %v1280
    %v1284 = vadd.f32 %v203, %v1282
    %v1285 = vadd.f32 %v206, %v1283
    %v1286 = vld [vmem:[%s31] sm:$0x1]
    %v1288 = vperm.slane %v1286, 0
    %v1290 = vadd.f32 %v1284, %v1288
    %v1291 = vadd.f32 %v1285, %v1288
    %v1292 = vld [vmem:[%s33] sm:$0x1]
    %v1293 = vld [vmem:[%s35] sm:$0x1]
    %v1294 = vsel %vm210, %v1290, 0.0
    %1295 = vadd.xlane.f32.xlu0 %v1294
    %v1296 = vpop.xlane.xlu0 %1295
    %v1297 = vsel %vm210, %v1291, 0.0
    %1298 = vadd.xlane.f32.xlu0 %v1297
    %v1299 = vpop.xlane.xlu0 %1298
    %v1300 = vmul.f32 %v1296, %v223
    %v1301 = vmul.f32 %v1299, %v223
    %v1302 = vsub.f32 %v1290, %v1300
    %v1303 = vsub.f32 %v1291, %v1301
    %v1304 = vmul.f32 %v1302, %v1302
    %v1305 = vmul.f32 %v1303, %v1303
    %v1306 = vsel %vm210, %v1304, 0.0
    %1307 = vadd.xlane.f32.xlu0 %v1306
    %v1308 = vpop.xlane.xlu0 %1307
    %v1309 = vsel %vm210, %v1305, 0.0
    %1310 = vadd.xlane.f32.xlu0 %v1309
    %v1311 = vpop.xlane.xlu0 %1310
    %v1312 = vmul.f32 %v1308, %v223
    %v1313 = vmul.f32 %v1311, %v223
    %v1314 = vadd.f32 %v1312, 1e-05
    %v1315 = vadd.f32 %v1313, 1e-05
    %v1316 = vrsqrt.pop %v1314
    %v1317 = vmul.f32 %v1316, %v1314
    %v1318 = vmul.f32 %v1317, %v1316
    %v1319 = vmul.f32 0.5, %v1318
    %v1320 = vsub.f32 1.5, %v1319
    %v1321 = vmul.f32 %v1316, %v1320
    %vm1322 = vweird.f32 %v1314
    %vm1323 = vweird.f32 %v1316
    %vm1324 = vmor %vm1322, %vm1323
    %v1325 = vsel %vm1324, %v1316, %v1321
    %v1326 = vrsqrt.pop %v1315
    %v1327 = vmul.f32 %v1326, %v1315
    %v1328 = vmul.f32 %v1327, %v1326
    %v1329 = vmul.f32 0.5, %v1328
    %v1330 = vsub.f32 1.5, %v1329
    %v1331 = vmul.f32 %v1326, %v1330
    %vm1332 = vweird.f32 %v1315
    %vm1333 = vweird.f32 %v1326
    %vm1334 = vmor %vm1332, %vm1333
    %v1335 = vsel %vm1334, %v1326, %v1331
    %v1336 = vmul.f32 %v1302, %v1325
    %v1337 = vmul.f32 %v1303, %v1335
    %v1339 = vperm.slane %v1292, 0
    %v1341 = vmul.f32 %v1336, %v1339
    %v1342 = vmul.f32 %v1337, %v1339
    %v1344 = vperm.slane %v1293, 0
    %v1346 = vadd.f32 %v1341, %v1344
    %v1347 = vadd.f32 %v1342, %v1344
    %v1348 = vld [vmem:[%s37] sm:$0xff]
    %v1349 = vld [vmem:[%s37 + $0x8] sm:$0xff]
    %v1350 = vld [vmem:[%s37 + $0x10] sm:$0xff]
    %v1351 = vld [vmem:[%s37 + $0x18] sm:$0xff]
    %v1352 = vld [vmem:[%s39] sm:$0x1]
    %v1354 = vperm.slane %v1352, 0
    %v1357 = vsel %vm210, %v1346, 0
    %v1360 = vsel %vm210, %v1347, 0
    %1362 = vmatpush.msra.mxu0 0.0
    %1363 = vmatpush.msra.mxu0 0.0
    %1364 = vmatpush.msra.mxu0 0.0
    %1365 = vmatpush.msra.mxu0 0.0
    %1366 = vmatpush.msra.mxu0 0.0
    %1367 = vmatpush.msra.mxu0 0.0
    %1368 = vmatpush.msra.mxu0 0.0
    %1369 = vmatpush.msra.mxu0 0.0
    %1370 = vmatpush.msra.mxu0 0.0
    %1371 = vmatpush.msra.mxu0 0.0
    %1372 = vmatpush.msra.mxu0 0.0
    %1373 = vmatpush.msra.mxu0 0.0
    %1374 = vmatpush.msra.mxu0 %v1351
    %1375 = vmatpush.msra.mxu0 %v1350
    %1376 = vmatpush.msra.mxu0 %v1349
    %1377 = vmatpush.msra.mxu0 %v1348
    %1378 = vmatmul.f32.gmra.mxu0 %v1357
    %v1379 = vpop.f32.mrf.mxu0
    %v1380 = vadd.f32 %v1354, %v1379
    %1381 = vmatmul.f32.gmra.mxu0 %v1360
    %v1382 = vpop.f32.mrf.mxu0
    %v1383 = vadd.f32 %v1354, %v1382
    %1384 = vdwg.mxu0
    %v1385 = vmul.f32 %v1380, 0.5
    %v1386 = vmul.f32 %v1383, 0.5
    %v1387 = vmul.f32 %v1380, 0.044715
    %v1388 = vmul.f32 %v1383, 0.044715
    %v1389 = vmul.f32 %v1387, %v1380
    %v1390 = vmul.f32 %v1388, %v1383
    %v1391 = vmul.f32 %v1389, %v1380
    %v1392 = vmul.f32 %v1390, %v1383
    %v1393 = vadd.f32 %v1380, %v1391
    %v1394 = vadd.f32 %v1383, %v1392
    %v1395 = vmul.f32 %v1393, 0.7978846
    %v1396 = vmul.f32 %v1394, 0.7978846
    %v1397 = vtanh.pop %v1395
    %v1398 = vtanh.pop %v1396
    %v1399 = vadd.f32 %v1397, 1.0
    %v1400 = vadd.f32 %v1398, 1.0
    %v1401 = vmul.f32 %v1385, %v1399
    %v1402 = vmul.f32 %v1386, %v1400
    %v1403 = vld [vmem:[%s41] sm:$0xff]
    %v1404 = vld [vmem:[%s41 + $0x8] sm:$0xff]
    %v1405 = vld [vmem:[%s41 + $0x10] sm:$0xff]
    %v1406 = vld [vmem:[%s41 + $0x18] sm:$0xff]
    %v1407 = vld [vmem:[%s41 + $0x20] sm:$0xff]
    %v1408 = vld [vmem:[%s41 + $0x28] sm:$0xff]
    %v1409 = vld [vmem:[%s41 + $0x30] sm:$0xff]
    %v1410 = vld [vmem:[%s41 + $0x38] sm:$0xff]
    %vm1411 = vcmask 523264
    %v1413 = vsel %vm1411, %v1401, 0
    %v1416 = vsel %vm1411, %v1402, 0
    %1418 = vmatpush.msra.mxu0 0.0
    %1419 = vmatpush.msra.mxu0 0.0
    %1420 = vmatpush.msra.mxu0 0.0
    %1421 = vmatpush.msra.mxu0 0.0
    %1422 = vmatpush.msra.mxu0 0.0
    %1423 = vmatpush.msra.mxu0 0.0
    %1424 = vmatpush.msra.mxu0 0.0
    %1425 = vmatpush.msra.mxu0 0.0
    %1426 = vmatpush.msra.mxu0 %v1410
    %1427 = vmatpush.msra.mxu0 %v1409
    %1428 = vmatpush.msra.mxu0 %v1408
    %1429 = vmatpush.msra.mxu0 %v1407
    %1430 = vmatpush.msra.mxu0 %v1406
    %1431 = vmatpush.msra.mxu0 %v1405
    %1432 = vmatpush.msra.mxu0 %v1404
    %1433 = vmatpush.msra.mxu0 %v1403
    %1434 = vmatmul.f32.gmra.mxu0 %v1413
    %v1435 = vpop.f32.mrf.mxu0
    %v1436 = vadd.f32 0.0, %v1435
    %1437 = vmatmul.f32.gmra.mxu0 %v1416
    %v1438 = vpop.f32.mrf.mxu0
    %v1439 = vadd.f32 0.0, %v1438
    %1440 = vdwg.mxu0
    %v1441 = vadd.f32 %v1290, %v1436
    %v1442 = vadd.f32 %v1291, %v1439
    %v1443 = vld [vmem:[%s43] sm:$0x1]
    %v1445 = vperm.slane %v1443, 0
    %v1447 = vadd.f32 %v1441, %v1445
    %v1448 = vadd.f32 %v1442, %v1445
    %s1449 = scalar_lea.vmem %s13, 1
    %v1450 = vld [vmem:[%s1449] sm:$0x1]
    %s1451 = scalar_lea.vmem %s15, 1
    %v1452 = vld [vmem:[%s1451] sm:$0x1]
    %v1453 = vsel %vm210, %v1447, 0.0
    %1454 = vadd.xlane.f32.xlu0 %v1453
    %v1455 = vpop.xlane.xlu0 %1454
    %v1456 = vsel %vm210, %v1448, 0.0
    %1457 = vadd.xlane.f32.xlu0 %v1456
    %v1458 = vpop.xlane.xlu0 %1457
    %v1459 = vmul.f32 %v1455, %v223
    %v1460 = vmul.f32 %v1458, %v223
    %v1461 = vsub.f32 %v1447, %v1459
    %v1462 = vsub.f32 %v1448, %v1460
    %v1463 = vmul.f32 %v1461, %v1461
    %v1464 = vmul.f32 %v1462, %v1462
    %v1465 = vsel %vm210, %v1463, 0.0
    %1466 = vadd.xlane.f32.xlu0 %v1465
    %v1467 = vpop.xlane.xlu0 %1466
    %v1468 = vsel %vm210, %v1464, 0.0
    %1469 = vadd.xlane.f32.xlu0 %v1468
    %v1470 = vpop.xlane.xlu0 %1469
    %v1471 = vmul.f32 %v1467, %v223
    %v1472 = vmul.f32 %v1470, %v223
    %v1473 = vadd.f32 %v1471, 1e-05
    %v1474 = vadd.f32 %v1472, 1e-05
    %v1475 = vrsqrt.pop %v1473
    %v1476 = vmul.f32 %v1475, %v1473
    %v1477 = vmul.f32 %v1476, %v1475
    %v1478 = vmul.f32 0.5, %v1477
    %v1479 = vsub.f32 1.5, %v1478
    %v1480 = vmul.f32 %v1475, %v1479
    %vm1481 = vweird.f32 %v1473
    %vm1482 = vweird.f32 %v1475
    %vm1483 = vmor %vm1481, %vm1482
    %v1484 = vsel %vm1483, %v1475, %v1480
    %v1485 = vrsqrt.pop %v1474
    %v1486 = vmul.f32 %v1485, %v1474
    %v1487 = vmul.f32 %v1486, %v1485
    %v1488 = vmul.f32 0.5, %v1487
    %v1489 = vsub.f32 1.5, %v1488
    %v1490 = vmul.f32 %v1485, %v1489
    %vm1491 = vweird.f32 %v1474
    %vm1492 = vweird.f32 %v1485
    %vm1493 = vmor %vm1491, %vm1492
    %v1494 = vsel %vm1493, %v1485, %v1490
    %v1495 = vmul.f32 %v1461, %v1484
    %v1496 = vmul.f32 %v1462, %v1494
    %v1498 = vperm.slane %v1450, 0
    %v1500 = vmul.f32 %v1495, %v1498
    %v1501 = vmul.f32 %v1496, %v1498
    %v1503 = vperm.slane %v1452, 0
    %v1505 = vadd.f32 %v1500, %v1503
    %v1506 = vadd.f32 %v1501, %v1503
    %s1507 = scalar_lea.vmem %s17, 128
    %v1508 = vld [vmem:[%s1507] sm:$0xff]
    %v1509 = vld [vmem:[%s1507 + $0x8] sm:$0xff]
    %v1510 = vld [vmem:[%s1507 + $0x10] sm:$0xff]
    %v1511 = vld [vmem:[%s1507 + $0x18] sm:$0xff]
    %s1512 = scalar_lea.vmem %s19, 4
    %v1513 = vld [vmem:[%s1512] sm:$0x1]
    %v1515 = vperm.slane %v1513, 0
    %v1518 = vsel %vm210, %v1505, 0
    %v1521 = vsel %vm210, %v1506, 0
    %1523 = vmatpush.msra.mxu0 0.0
    %1524 = vmatpush.msra.mxu0 0.0
    %1525 = vmatpush.msra.mxu0 0.0
    %1526 = vmatpush.msra.mxu0 0.0
    %1527 = vmatpush.msra.mxu0 0.0
    %1528 = vmatpush.msra.mxu0 0.0
    %1529 = vmatpush.msra.mxu0 0.0
    %1530 = vmatpush.msra.mxu0 0.0
    %1531 = vmatpush.msra.mxu0 0.0
    %1532 = vmatpush.msra.mxu0 0.0
    %1533 = vmatpush.msra.mxu0 0.0
    %1534 = vmatpush.msra.mxu0 0.0
    %1535 = vmatpush.msra.mxu0 %v1511
    %1536 = vmatpush.msra.mxu0 %v1510
    %1537 = vmatpush.msra.mxu0 %v1509
    %1538 = vmatpush.msra.mxu0 %v1508
    %1539 = vmatmul.f32.gmra.mxu0 %v1518
    %v1540 = vpop.f32.mrf.mxu0
    %v1541 = vadd.f32 %v1515, %v1540
    %1542 = vmatmul.f32.gmra.mxu0 %v1521
    %v1543 = vpop.f32.mrf.mxu0
    %v1544 = vadd.f32 %v1515, %v1543
    %1545 = vdwg.mxu0
    %s1546 = scalar_lea.vmem %s21, 128
    %v1547 = vld [vmem:[%s1546] sm:$0xff]
    %v1548 = vld [vmem:[%s1546 + $0x8] sm:$0xff]
    %v1549 = vld [vmem:[%s1546 + $0x10] sm:$0xff]
    %v1550 = vld [vmem:[%s1546 + $0x18] sm:$0xff]
    %s1551 = scalar_lea.vmem %s23, 4
    %v1552 = vld [vmem:[%s1551] sm:$0x1]
    %v1554 = vperm.slane %v1552, 0
    %1556 = vmatpush.msra.mxu0 0.0
    %1557 = vmatpush.msra.mxu0 0.0
    %1558 = vmatpush.msra.mxu0 0.0
    %1559 = vmatpush.msra.mxu0 0.0
    %1560 = vmatpush.msra.mxu0 0.0
    %1561 = vmatpush.msra.mxu0 0.0
    %1562 = vmatpush.msra.mxu0 0.0
    %1563 = vmatpush.msra.mxu0 0.0
    %1564 = vmatpush.msra.mxu0 0.0
    %1565 = vmatpush.msra.mxu0 0.0
    %1566 = vmatpush.msra.mxu0 0.0
    %1567 = vmatpush.msra.mxu0 0.0
    %1568 = vmatpush.msra.mxu0 %v1550
    %1569 = vmatpush.msra.mxu0 %v1549
    %1570 = vmatpush.msra.mxu0 %v1548
    %1571 = vmatpush.msra.mxu0 %v1547
    %1572 = vmatmul.f32.gmra.mxu0 %v1518
    %v1573 = vpop.f32.mrf.mxu0
    %v1574 = vadd.f32 %v1554, %v1573
    %1575 = vmatmul.f32.gmra.mxu0 %v1521
    %v1576 = vpop.f32.mrf.mxu0
    %v1577 = vadd.f32 %v1554, %v1576
    %1578 = vdwg.mxu0
    %s1579 = scalar_lea.vmem %s25, 128
    %v1580 = vld [vmem:[%s1579] sm:$0xff]
    %v1581 = vld [vmem:[%s1579 + $0x8] sm:$0xff]
    %v1582 = vld [vmem:[%s1579 + $0x10] sm:$0xff]
    %v1583 = vld [vmem:[%s1579 + $0x18] sm:$0xff]
    %s1584 = scalar_lea.vmem %s27, 4
    %v1585 = vld [vmem:[%s1584] sm:$0x1]
    %v1587 = vperm.slane %v1585, 0
    %1589 = vmatpush.msra.mxu0 0.0
    %1590 = vmatpush.msra.mxu0 0.0
    %1591 = vmatpush.msra.mxu0 0.0
    %1592 = vmatpush.msra.mxu0 0.0
    %1593 = vmatpush.msra.mxu0 0.0
    %1594 = vmatpush.msra.mxu0 0.0
    %1595 = vmatpush.msra.mxu0 0.0
    %1596 = vmatpush.msra.mxu0 0.0
    %1597 = vmatpush.msra.mxu0 0.0
    %1598 = vmatpush.msra.mxu0 0.0
    %1599 = vmatpush.msra.mxu0 0.0
    %1600 = vmatpush.msra.mxu0 0.0
    %1601 = vmatpush.msra.mxu0 %v1583
    %1602 = vmatpush.msra.mxu0 %v1582
    %1603 = vmatpush.msra.mxu0 %v1581
    %1604 = vmatpush.msra.mxu0 %v1580
    %1605 = vmatmul.f32.gmra.mxu0 %v1518
    %v1606 = vpop.f32.mrf.mxu0
    %v1607 = vadd.f32 %v1587, %v1606
    %1608 = vmatmul.f32.gmra.mxu0 %v1521
    %v1609 = vpop.f32.mrf.mxu0
    %v1610 = vadd.f32 %v1587, %v1609
    %1611 = vdwg.mxu0
    %v1613 = vsel %vm371, %v1541, 0
    %v1616 = vsel %vm371, %v1574, 0
    %1618 = vmatpush.xpose.msra.mxu0 0.0
    %1619 = vmatpush.xpose.msra.mxu0 0.0
    %1620 = vmatpush.xpose.msra.mxu0 0.0
    %1621 = vmatpush.xpose.msra.mxu0 0.0
    %1622 = vmatpush.xpose.msra.mxu0 0.0
    %1623 = vmatpush.xpose.msra.mxu0 0.0
    %1624 = vmatpush.xpose.msra.mxu0 0.0
    %1625 = vmatpush.xpose.msra.mxu0 0.0
    %1626 = vmatpush.xpose.msra.mxu0 0.0
    %1627 = vmatpush.xpose.msra.mxu0 0.0
    %1628 = vmatpush.xpose.msra.mxu0 0.0
    %1629 = vmatpush.xpose.msra.mxu0 0.0
    %1630 = vmatpush.xpose.msra.mxu0 0.0
    %1631 = vmatpush.xpose.msra.mxu0 0.0
    %1632 = vmatpush.xpose.msra.mxu0 0.0
    %1633 = vmatpush.xpose.msra.mxu0 %v1616
    %1634 = vmatmul.f32.gmra.mxu0 %v1613
    %v1635 = vpop.f32.mrf.mxu0
    %v1636 = vadd.f32 0.0, %v1635
    %1637 = vdwg.mxu0
    %v1639 = vsel %vm371, %v1544, 0
    %v1642 = vsel %vm371, %v1577, 0
    %1644 = vmatpush.xpose.msra.mxu0 0.0
    %1645 = vmatpush.xpose.msra.mxu0 0.0
    %1646 = vmatpush.xpose.msra.mxu0 0.0
    %1647 = vmatpush.xpose.msra.mxu0 0.0
    %1648 = vmatpush.xpose.msra.mxu0 0.0
    %1649 = vmatpush.xpose.msra.mxu0 0.0
    %1650 = vmatpush.xpose.msra.mxu0 0.0
    %1651 = vmatpush.xpose.msra.mxu0 0.0
    %1652 = vmatpush.xpose.msra.mxu0 0.0
    %1653 = vmatpush.xpose.msra.mxu0 0.0
    %1654 = vmatpush.xpose.msra.mxu0 0.0
    %1655 = vmatpush.xpose.msra.mxu0 0.0
    %1656 = vmatpush.xpose.msra.mxu0 0.0
    %1657 = vmatpush.xpose.msra.mxu0 0.0
    %1658 = vmatpush.xpose.msra.mxu0 0.0
    %1659 = vmatpush.xpose.msra.mxu0 %v1642
    %1660 = vmatmul.f32.gmra.mxu0 %v1639
    %v1661 = vpop.f32.mrf.mxu0
    %v1662 = vadd.f32 0.0, %v1661
    %1663 = vdwg.mxu0
    %v1664 = vmul.f32 %v1636, 0.35355338
    %v1665 = vmul.f32 %v1662, 0.35355338
    %v1666 = vsel %vm371, %v1664, -inf
    %1667 = vmax.xlane.f32.xlu0 %v1666
    %v1668 = vpop.xlane.xlu0 %1667
    %v1669 = vsel %vm371, %v1665, -inf
    %1670 = vmax.xlane.f32.xlu0 %v1669
    %v1671 = vpop.xlane.xlu0 %1670
    %v1672 = vsub.f32 %v1664, %v1668
    %v1673 = vsub.f32 %v1665, %v1671
    %v1674 = vmul.f32 %v1672, 1.442695
    %v1675 = vpow.pop %v1674
    %v1676 = vmul.f32 %v1673, 1.442695
    %v1677 = vpow.pop %v1676
    %v1678 = vsel %vm371, %v1675, 0.0
    %1679 = vadd.xlane.f32.xlu0 %v1678
    %v1680 = vpop.xlane.xlu0 %1679
    %v1681 = vsel %vm371, %v1677, 0.0
    %1682 = vadd.xlane.f32.xlu0 %v1681
    %v1683 = vpop.xlane.xlu0 %1682
    %v1684 = vrcp.pop %v1680
    %v1685 = vrcp.pop %v1683
    %v1686 = vmul.f32 %v1675, %v1684
    %v1687 = vmul.f32 %v1677, %v1685
    %v1689 = vsel %vm371, %v1686, 0
    %1691 = vmatpush.msra.mxu0 0.0
    %1692 = vmatpush.msra.mxu0 0.0
    %1693 = vmatpush.msra.mxu0 0.0
    %1694 = vmatpush.msra.mxu0 0.0
    %1695 = vmatpush.msra.mxu0 0.0
    %1696 = vmatpush.msra.mxu0 0.0
    %1697 = vmatpush.msra.mxu0 0.0
    %1698 = vmatpush.msra.mxu0 0.0
    %1699 = vmatpush.msra.mxu0 0.0
    %1700 = vmatpush.msra.mxu0 0.0
    %1701 = vmatpush.msra.mxu0 0.0
    %1702 = vmatpush.msra.mxu0 0.0
    %1703 = vmatpush.msra.mxu0 0.0
    %1704 = vmatpush.msra.mxu0 0.0
    %1705 = vmatpush.msra.mxu0 0.0
    %1706 = vmatpush.msra.mxu0 %v1607
    %1707 = vmatmul.f32.gmra.mxu0 %v1689
    %v1708 = vpop.f32.mrf.mxu0
    %v1709 = vadd.f32 0.0, %v1708
    %1710 = vdwg.mxu0
    %v1712 = vsel %vm371, %v1687, 0
    %1714 = vmatpush.msra.mxu0 0.0
    %1715 = vmatpush.msra.mxu0 0.0
    %1716 = vmatpush.msra.mxu0 0.0
    %1717 = vmatpush.msra.mxu0 0.0
    %1718 = vmatpush.msra.mxu0 0.0
    %1719 = vmatpush.msra.mxu0 0.0
    %1720 = vmatpush.msra.mxu0 0.0
    %1721 = vmatpush.msra.mxu0 0.0
    %1722 = vmatpush.msra.mxu0 0.0
    %1723 = vmatpush.msra.mxu0 0.0
    %1724 = vmatpush.msra.mxu0 0.0
    %1725 = vmatpush.msra.mxu0 0.0
    %1726 = vmatpush.msra.mxu0 0.0
    %1727 = vmatpush.msra.mxu0 0.0
    %1728 = vmatpush.msra.mxu0 0.0
    %1729 = vmatpush.msra.mxu0 %v1610
    %1730 = vmatmul.f32.gmra.mxu0 %v1712
    %v1731 = vpop.f32.mrf.mxu0
    %v1732 = vadd.f32 0.0, %v1731
    %1733 = vdwg.mxu0
    %s1734 = scalar_lea.vmem %s29, 32
    %v1735 = vld [vmem:[%s1734] sm:$0xff]
    %s1736 = scalar_lea.vmem %s17, 160
    %v1737 = vld [vmem:[%s1736] sm:$0xff]
    %v1738 = vld [vmem:[%s1736 + $0x8] sm:$0xff]
    %v1739 = vld [vmem:[%s1736 + $0x10] sm:$0xff]
    %v1740 = vld [vmem:[%s1736 + $0x18] sm:$0xff]
    %s1741 = scalar_lea.vmem %s19, 5
    %v1742 = vld [vmem:[%s1741] sm:$0x1]
    %v1744 = vperm.slane %v1742, 0
    %1746 = vmatpush.msra.mxu0 0.0
    %1747 = vmatpush.msra.mxu0 0.0
    %1748 = vmatpush.msra.mxu0 0.0
    %1749 = vmatpush.msra.mxu0 0.0
    %1750 = vmatpush.msra.mxu0 0.0
    %1751 = vmatpush.msra.mxu0 0.0
    %1752 = vmatpush.msra.mxu0 0.0
    %1753 = vmatpush.msra.mxu0 0.0
    %1754 = vmatpush.msra.mxu0 0.0
    %1755 = vmatpush.msra.mxu0 0.0
    %1756 = vmatpush.msra.mxu0 0.0
    %1757 = vmatpush.msra.mxu0 0.0
    %1758 = vmatpush.msra.mxu0 %v1740
    %1759 = vmatpush.msra.mxu0 %v1739
    %1760 = vmatpush.msra.mxu0 %v1738
    %1761 = vmatpush.msra.mxu0 %v1737
    %1762 = vmatmul.f32.gmra.mxu0 %v1518
    %v1763 = vpop.f32.mrf.mxu0
    %v1764 = vadd.f32 %v1744, %v1763
    %1765 = vmatmul.f32.gmra.mxu0 %v1521
    %v1766 = vpop.f32.mrf.mxu0
    %v1767 = vadd.f32 %v1744, %v1766
    %1768 = vdwg.mxu0
    %s1769 = scalar_lea.vmem %s21, 160
    %v1770 = vld [vmem:[%s1769] sm:$0xff]
    %v1771 = vld [vmem:[%s1769 + $0x8] sm:$0xff]
    %v1772 = vld [vmem:[%s1769 + $0x10] sm:$0xff]
    %v1773 = vld [vmem:[%s1769 + $0x18] sm:$0xff]
    %s1774 = scalar_lea.vmem %s23, 5
    %v1775 = vld [vmem:[%s1774] sm:$0x1]
    %v1777 = vperm.slane %v1775, 0
    %1779 = vmatpush.msra.mxu0 0.0
    %1780 = vmatpush.msra.mxu0 0.0
    %1781 = vmatpush.msra.mxu0 0.0
    %1782 = vmatpush.msra.mxu0 0.0
    %1783 = vmatpush.msra.mxu0 0.0
    %1784 = vmatpush.msra.mxu0 0.0
    %1785 = vmatpush.msra.mxu0 0.0
    %1786 = vmatpush.msra.mxu0 0.0
    %1787 = vmatpush.msra.mxu0 0.0
    %1788 = vmatpush.msra.mxu0 0.0
    %1789 = vmatpush.msra.mxu0 0.0
    %1790 = vmatpush.msra.mxu0 0.0
    %1791 = vmatpush.msra.mxu0 %v1773
    %1792 = vmatpush.msra.mxu0 %v1772
    %1793 = vmatpush.msra.mxu0 %v1771
    %1794 = vmatpush.msra.mxu0 %v1770
    %1795 = vmatmul.f32.gmra.mxu0 %v1518
    %v1796 = vpop.f32.mrf.mxu0
    %v1797 = vadd.f32 %v1777, %v1796
    %1798 = vmatmul.f32.gmra.mxu0 %v1521
    %v1799 = vpop.f32.mrf.mxu0
    %v1800 = vadd.f32 %v1777, %v1799
    %1801 = vdwg.mxu0
    %s1802 = scalar_lea.vmem %s25, 160
    %v1803 = vld [vmem:[%s1802] sm:$0xff]
    %v1804 = vld [vmem:[%s1802 + $0x8] sm:$0xff]
    %v1805 = vld [vmem:[%s1802 + $0x10] sm:$0xff]
    %v1806 = vld [vmem:[%s1802 + $0x18] sm:$0xff]
    %s1807 = scalar_lea.vmem %s27, 5
    %v1808 = vld [vmem:[%s1807] sm:$0x1]
    %v1810 = vperm.slane %v1808, 0
    %1812 = vmatpush.msra.mxu0 0.0
    %1813 = vmatpush.msra.mxu0 0.0
    %1814 = vmatpush.msra.mxu0 0.0
    %1815 = vmatpush.msra.mxu0 0.0
    %1816 = vmatpush.msra.mxu0 0.0
    %1817 = vmatpush.msra.mxu0 0.0
    %1818 = vmatpush.msra.mxu0 0.0
    %1819 = vmatpush.msra.mxu0 0.0
    %1820 = vmatpush.msra.mxu0 0.0
    %1821 = vmatpush.msra.mxu0 0.0
    %1822 = vmatpush.msra.mxu0 0.0
    %1823 = vmatpush.msra.mxu0 0.0
    %1824 = vmatpush.msra.mxu0 %v1806
    %1825 = vmatpush.msra.mxu0 %v1805
    %1826 = vmatpush.msra.mxu0 %v1804
    %1827 = vmatpush.msra.mxu0 %v1803
    %1828 = vmatmul.f32.gmra.mxu0 %v1518
    %v1829 = vpop.f32.mrf.mxu0
    %v1830 = vadd.f32 %v1810, %v1829
    %1831 = vmatmul.f32.gmra.mxu0 %v1521
    %v1832 = vpop.f32.mrf.mxu0
    %v1833 = vadd.f32 %v1810, %v1832
    %1834 = vdwg.mxu0
    %v1836 = vsel %vm371, %v1764, 0
    %v1839 = vsel %vm371, %v1797, 0
    %1841 = vmatpush.xpose.msra.mxu0 0.0
    %1842 = vmatpush.xpose.msra.mxu0 0.0
    %1843 = vmatpush.xpose.msra.mxu0 0.0
    %1844 = vmatpush.xpose.msra.mxu0 0.0
    %1845 = vmatpush.xpose.msra.mxu0 0.0
    %1846 = vmatpush.xpose.msra.mxu0 0.0
    %1847 = vmatpush.xpose.msra.mxu0 0.0
    %1848 = vmatpush.xpose.msra.mxu0 0.0
    %1849 = vmatpush.xpose.msra.mxu0 0.0
    %1850 = vmatpush.xpose.msra.mxu0 0.0
    %1851 = vmatpush.xpose.msra.mxu0 0.0
    %1852 = vmatpush.xpose.msra.mxu0 0.0
    %1853 = vmatpush.xpose.msra.mxu0 0.0
    %1854 = vmatpush.xpose.msra.mxu0 0.0
    %1855 = vmatpush.xpose.msra.mxu0 0.0
    %1856 = vmatpush.xpose.msra.mxu0 %v1839
    %1857 = vmatmul.f32.gmra.mxu0 %v1836
    %v1858 = vpop.f32.mrf.mxu0
    %v1859 = vadd.f32 0.0, %v1858
    %1860 = vdwg.mxu0
    %v1862 = vsel %vm371, %v1767, 0
    %v1865 = vsel %vm371, %v1800, 0
    %1867 = vmatpush.xpose.msra.mxu0 0.0
    %1868 = vmatpush.xpose.msra.mxu0 0.0
    %1869 = vmatpush.xpose.msra.mxu0 0.0
    %1870 = vmatpush.xpose.msra.mxu0 0.0
    %1871 = vmatpush.xpose.msra.mxu0 0.0
    %1872 = vmatpush.xpose.msra.mxu0 0.0
    %1873 = vmatpush.xpose.msra.mxu0 0.0
    %1874 = vmatpush.xpose.msra.mxu0 0.0
    %1875 = vmatpush.xpose.msra.mxu0 0.0
    %1876 = vmatpush.xpose.msra.mxu0 0.0
    %1877 = vmatpush.xpose.msra.mxu0 0.0
    %1878 = vmatpush.xpose.msra.mxu0 0.0
    %1879 = vmatpush.xpose.msra.mxu0 0.0
    %1880 = vmatpush.xpose.msra.mxu0 0.0
    %1881 = vmatpush.xpose.msra.mxu0 0.0
    %1882 = vmatpush.xpose.msra.mxu0 %v1865
    %1883 = vmatmul.f32.gmra.mxu0 %v1862
    %v1884 = vpop.f32.mrf.mxu0
    %v1885 = vadd.f32 0.0, %v1884
    %1886 = vdwg.mxu0
    %v1887 = vmul.f32 %v1859, 0.35355338
    %v1888 = vmul.f32 %v1885, 0.35355338
    %v1889 = vsel %vm371, %v1887, -inf
    %1890 = vmax.xlane.f32.xlu0 %v1889
    %v1891 = vpop.xlane.xlu0 %1890
    %v1892 = vsel %vm371, %v1888, -inf
    %1893 = vmax.xlane.f32.xlu0 %v1892
    %v1894 = vpop.xlane.xlu0 %1893
    %v1895 = vsub.f32 %v1887, %v1891
    %v1896 = vsub.f32 %v1888, %v1894
    %v1897 = vmul.f32 %v1895, 1.442695
    %v1898 = vpow.pop %v1897
    %v1899 = vmul.f32 %v1896, 1.442695
    %v1900 = vpow.pop %v1899
    %v1901 = vsel %vm371, %v1898, 0.0
    %1902 = vadd.xlane.f32.xlu0 %v1901
    %v1903 = vpop.xlane.xlu0 %1902
    %v1904 = vsel %vm371, %v1900, 0.0
    %1905 = vadd.xlane.f32.xlu0 %v1904
    %v1906 = vpop.xlane.xlu0 %1905
    %v1907 = vrcp.pop %v1903
    %v1908 = vrcp.pop %v1906
    %v1909 = vmul.f32 %v1898, %v1907
    %v1910 = vmul.f32 %v1900, %v1908
    %v1912 = vsel %vm371, %v1909, 0
    %1914 = vmatpush.msra.mxu0 0.0
    %1915 = vmatpush.msra.mxu0 0.0
    %1916 = vmatpush.msra.mxu0 0.0
    %1917 = vmatpush.msra.mxu0 0.0
    %1918 = vmatpush.msra.mxu0 0.0
    %1919 = vmatpush.msra.mxu0 0.0
    %1920 = vmatpush.msra.mxu0 0.0
    %1921 = vmatpush.msra.mxu0 0.0
    %1922 = vmatpush.msra.mxu0 0.0
    %1923 = vmatpush.msra.mxu0 0.0
    %1924 = vmatpush.msra.mxu0 0.0
    %1925 = vmatpush.msra.mxu0 0.0
    %1926 = vmatpush.msra.mxu0 0.0
    %1927 = vmatpush.msra.mxu0 0.0
    %1928 = vmatpush.msra.mxu0 0.0
    %1929 = vmatpush.msra.mxu0 %v1830
    %1930 = vmatmul.f32.gmra.mxu0 %v1912
    %v1931 = vpop.f32.mrf.mxu0
    %v1932 = vadd.f32 0.0, %v1931
    %1933 = vdwg.mxu0
    %v1935 = vsel %vm371, %v1910, 0
    %1937 = vmatpush.msra.mxu0 0.0
    %1938 = vmatpush.msra.mxu0 0.0
    %1939 = vmatpush.msra.mxu0 0.0
    %1940 = vmatpush.msra.mxu0 0.0
    %1941 = vmatpush.msra.mxu0 0.0
    %1942 = vmatpush.msra.mxu0 0.0
    %1943 = vmatpush.msra.mxu0 0.0
    %1944 = vmatpush.msra.mxu0 0.0
    %1945 = vmatpush.msra.mxu0 0.0
    %1946 = vmatpush.msra.mxu0 0.0
    %1947 = vmatpush.msra.mxu0 0.0
    %1948 = vmatpush.msra.mxu0 0.0
    %1949 = vmatpush.msra.mxu0 0.0
    %1950 = vmatpush.msra.mxu0 0.0
    %1951 = vmatpush.msra.mxu0 0.0
    %1952 = vmatpush.msra.mxu0 %v1833
    %1953 = vmatmul.f32.gmra.mxu0 %v1935
    %v1954 = vpop.f32.mrf.mxu0
    %v1955 = vadd.f32 0.0, %v1954
    %1956 = vdwg.mxu0
    %s1957 = scalar_lea.vmem %s29, 40
    %v1958 = vld [vmem:[%s1957] sm:$0xff]
    %v1960 = vsel %vm371, %v1932, 0
    %v1963 = vsel %vm371, %v1955, 0
    %1965 = vmatpush.msra.mxu0 0.0
    %1966 = vmatpush.msra.mxu0 0.0
    %1967 = vmatpush.msra.mxu0 0.0
    %1968 = vmatpush.msra.mxu0 0.0
    %1969 = vmatpush.msra.mxu0 0.0
    %1970 = vmatpush.msra.mxu0 0.0
    %1971 = vmatpush.msra.mxu0 0.0
    %1972 = vmatpush.msra.mxu0 0.0
    %1973 = vmatpush.msra.mxu0 0.0
    %1974 = vmatpush.msra.mxu0 0.0
    %1975 = vmatpush.msra.mxu0 0.0
    %1976 = vmatpush.msra.mxu0 0.0
    %1977 = vmatpush.msra.mxu0 0.0
    %1978 = vmatpush.msra.mxu0 0.0
    %1979 = vmatpush.msra.mxu0 0.0
    %1980 = vmatpush.msra.mxu0 %v1958
    %1981 = vmatmul.f32.gmra.mxu0 %v1960
    %v1982 = vpop.f32.mrf.mxu0
    %v1983 = vadd.f32 0.0, %v1982
    %1984 = vmatmul.f32.gmra.mxu0 %v1963
    %v1985 = vpop.f32.mrf.mxu0
    %v1986 = vadd.f32 0.0, %v1985
    %1987 = vdwg.mxu0
    %v1989 = vsel %vm371, %v1709, 0
    %v1992 = vsel %vm371, %v1732, 0
    %1994 = vmatpush.msra.mxu0 0.0
    %1995 = vmatpush.msra.mxu0 0.0
    %1996 = vmatpush.msra.mxu0 0.0
    %1997 = vmatpush.msra.mxu0 0.0
    %1998 = vmatpush.msra.mxu0 0.0
    %1999 = vmatpush.msra.mxu0 0.0
    %2000 = vmatpush.msra.mxu0 0.0
    %2001 = vmatpush.msra.mxu0 0.0
    %2002 = vmatpush.msra.mxu0 0.0
    %2003 = vmatpush.msra.mxu0 0.0
    %2004 = vmatpush.msra.mxu0 0.0
    %2005 = vmatpush.msra.mxu0 0.0
    %2006 = vmatpush.msra.mxu0 0.0
    %2007 = vmatpush.msra.mxu0 0.0
    %2008 = vmatpush.msra.mxu0 0.0
    %2009 = vmatpush.msra.mxu0 %v1735
    %2010 = vmatmul.f32.gmra.mxu0 %v1989
    %v2011 = vpop.f32.mrf.mxu0
    %v2012 = vadd.f32 %v1983, %v2011
    %2013 = vmatmul.f32.gmra.mxu0 %v1992
    %v2014 = vpop.f32.mrf.mxu0
    %v2015 = vadd.f32 %v1986, %v2014
    %2016 = vdwg.mxu0
    %s2017 = scalar_lea.vmem %s17, 192
    %v2018 = vld [vmem:[%s2017] sm:$0xff]
    %v2019 = vld [vmem:[%s2017 + $0x8] sm:$0xff]
    %v2020 = vld [vmem:[%s2017 + $0x10] sm:$0xff]
    %v2021 = vld [vmem:[%s2017 + $0x18] sm:$0xff]
    %s2022 = scalar_lea.vmem %s19, 6
    %v2023 = vld [vmem:[%s2022] sm:$0x1]
    %v2025 = vperm.slane %v2023, 0
    %2027 = vmatpush.msra.mxu0 0.0
    %2028 = vmatpush.msra.mxu0 0.0
    %2029 = vmatpush.msra.mxu0 0.0
    %2030 = vmatpush.msra.mxu0 0.0
    %2031 = vmatpush.msra.mxu0 0.0
    %2032 = vmatpush.msra.mxu0 0.0
    %2033 = vmatpush.msra.mxu0 0.0
    %2034 = vmatpush.msra.mxu0 0.0
    %2035 = vmatpush.msra.mxu0 0.0
    %2036 = vmatpush.msra.mxu0 0.0
    %2037 = vmatpush.msra.mxu0 0.0
    %2038 = vmatpush.msra.mxu0 0.0
    %2039 = vmatpush.msra.mxu0 %v2021
    %2040 = vmatpush.msra.mxu0 %v2020
    %2041 = vmatpush.msra.mxu0 %v2019
    %2042 = vmatpush.msra.mxu0 %v2018
    %2043 = vmatmul.f32.gmra.mxu0 %v1518
    %v2044 = vpop.f32.mrf.mxu0
    %v2045 = vadd.f32 %v2025, %v2044
    %2046 = vmatmul.f32.gmra.mxu0 %v1521
    %v2047 = vpop.f32.mrf.mxu0
    %v2048 = vadd.f32 %v2025, %v2047
    %2049 = vdwg.mxu0
    %s2050 = scalar_lea.vmem %s21, 192
    %v2051 = vld [vmem:[%s2050] sm:$0xff]
    %v2052 = vld [vmem:[%s2050 + $0x8] sm:$0xff]
    %v2053 = vld [vmem:[%s2050 + $0x10] sm:$0xff]
    %v2054 = vld [vmem:[%s2050 + $0x18] sm:$0xff]
    %s2055 = scalar_lea.vmem %s23, 6
    %v2056 = vld [vmem:[%s2055] sm:$0x1]
    %v2058 = vperm.slane %v2056, 0
    %2060 = vmatpush.msra.mxu0 0.0
    %2061 = vmatpush.msra.mxu0 0.0
    %2062 = vmatpush.msra.mxu0 0.0
    %2063 = vmatpush.msra.mxu0 0.0
    %2064 = vmatpush.msra.mxu0 0.0
    %2065 = vmatpush.msra.mxu0 0.0
    %2066 = vmatpush.msra.mxu0 0.0
    %2067 = vmatpush.msra.mxu0 0.0
    %2068 = vmatpush.msra.mxu0 0.0
    %2069 = vmatpush.msra.mxu0 0.0
    %2070 = vmatpush.msra.mxu0 0.0
    %2071 = vmatpush.msra.mxu0 0.0
    %2072 = vmatpush.msra.mxu0 %v2054
    %2073 = vmatpush.msra.mxu0 %v2053
    %2074 = vmatpush.msra.mxu0 %v2052
    %2075 = vmatpush.msra.mxu0 %v2051
    %2076 = vmatmul.f32.gmra.mxu0 %v1518
    %v2077 = vpop.f32.mrf.mxu0
    %v2078 = vadd.f32 %v2058, %v2077
    %2079 = vmatmul.f32.gmra.mxu0 %v1521
    %v2080 = vpop.f32.mrf.mxu0
    %v2081 = vadd.f32 %v2058, %v2080
    %2082 = vdwg.mxu0
    %s2083 = scalar_lea.vmem %s25, 192
    %v2084 = vld [vmem:[%s2083] sm:$0xff]
    %v2085 = vld [vmem:[%s2083 + $0x8] sm:$0xff]
    %v2086 = vld [vmem:[%s2083 + $0x10] sm:$0xff]
    %v2087 = vld [vmem:[%s2083 + $0x18] sm:$0xff]
    %s2088 = scalar_lea.vmem %s27, 6
    %v2089 = vld [vmem:[%s2088] sm:$0x1]
    %v2091 = vperm.slane %v2089, 0
    %2093 = vmatpush.msra.mxu0 0.0
    %2094 = vmatpush.msra.mxu0 0.0
    %2095 = vmatpush.msra.mxu0 0.0
    %2096 = vmatpush.msra.mxu0 0.0
    %2097 = vmatpush.msra.mxu0 0.0
    %2098 = vmatpush.msra.mxu0 0.0
    %2099 = vmatpush.msra.mxu0 0.0
    %2100 = vmatpush.msra.mxu0 0.0
    %2101 = vmatpush.msra.mxu0 0.0
    %2102 = vmatpush.msra.mxu0 0.0
    %2103 = vmatpush.msra.mxu0 0.0
    %2104 = vmatpush.msra.mxu0 0.0
    %2105 = vmatpush.msra.mxu0 %v2087
    %2106 = vmatpush.msra.mxu0 %v2086
    %2107 = vmatpush.msra.mxu0 %v2085
    %2108 = vmatpush.msra.mxu0 %v2084
    %2109 = vmatmul.f32.gmra.mxu0 %v1518
    %v2110 = vpop.f32.mrf.mxu0
    %v2111 = vadd.f32 %v2091, %v2110
    %2112 = vmatmul.f32.gmra.mxu0 %v1521
    %v2113 = vpop.f32.mrf.mxu0
    %v2114 = vadd.f32 %v2091, %v2113
    %2115 = vdwg.mxu0
    %v2117 = vsel %vm371, %v2045, 0
    %v2120 = vsel %vm371, %v2078, 0
    %2122 = vmatpush.xpose.msra.mxu0 0.0
    %2123 = vmatpush.xpose.msra.mxu0 0.0
    %2124 = vmatpush.xpose.msra.mxu0 0.0
    %2125 = vmatpush.xpose.msra.mxu0 0.0
    %2126 = vmatpush.xpose.msra.mxu0 0.0
    %2127 = vmatpush.xpose.msra.mxu0 0.0
    %2128 = vmatpush.xpose.msra.mxu0 0.0
    %2129 = vmatpush.xpose.msra.mxu0 0.0
    %2130 = vmatpush.xpose.msra.mxu0 0.0
    %2131 = vmatpush.xpose.msra.mxu0 0.0
    %2132 = vmatpush.xpose.msra.mxu0 0.0
    %2133 = vmatpush.xpose.msra.mxu0 0.0
    %2134 = vmatpush.xpose.msra.mxu0 0.0
    %2135 = vmatpush.xpose.msra.mxu0 0.0
    %2136 = vmatpush.xpose.msra.mxu0 0.0
    %2137 = vmatpush.xpose.msra.mxu0 %v2120
    %2138 = vmatmul.f32.gmra.mxu0 %v2117
    %v2139 = vpop.f32.mrf.mxu0
    %v2140 = vadd.f32 0.0, %v2139
    %2141 = vdwg.mxu0
    %v2143 = vsel %vm371, %v2048, 0
    %v2146 = vsel %vm371, %v2081, 0
    %2148 = vmatpush.xpose.msra.mxu0 0.0
    %2149 = vmatpush.xpose.msra.mxu0 0.0
    %2150 = vmatpush.xpose.msra.mxu0 0.0
    %2151 = vmatpush.xpose.msra.mxu0 0.0
    %2152 = vmatpush.xpose.msra.mxu0 0.0
    %2153 = vmatpush.xpose.msra.mxu0 0.0
    %2154 = vmatpush.xpose.msra.mxu0 0.0
    %2155 = vmatpush.xpose.msra.mxu0 0.0
    %2156 = vmatpush.xpose.msra.mxu0 0.0
    %2157 = vmatpush.xpose.msra.mxu0 0.0
    %2158 = vmatpush.xpose.msra.mxu0 0.0
    %2159 = vmatpush.xpose.msra.mxu0 0.0
    %2160 = vmatpush.xpose.msra.mxu0 0.0
    %2161 = vmatpush.xpose.msra.mxu0 0.0
    %2162 = vmatpush.xpose.msra.mxu0 0.0
    %2163 = vmatpush.xpose.msra.mxu0 %v2146
    %2164 = vmatmul.f32.gmra.mxu0 %v2143
    %v2165 = vpop.f32.mrf.mxu0
    %v2166 = vadd.f32 0.0, %v2165
    %2167 = vdwg.mxu0
    %v2168 = vmul.f32 %v2140, 0.35355338
    %v2169 = vmul.f32 %v2166, 0.35355338
    %v2170 = vsel %vm371, %v2168, -inf
    %2171 = vmax.xlane.f32.xlu0 %v2170
    %v2172 = vpop.xlane.xlu0 %2171
    %v2173 = vsel %vm371, %v2169, -inf
    %2174 = vmax.xlane.f32.xlu0 %v2173
    %v2175 = vpop.xlane.xlu0 %2174
    %v2176 = vsub.f32 %v2168, %v2172
    %v2177 = vsub.f32 %v2169, %v2175
    %v2178 = vmul.f32 %v2176, 1.442695
    %v2179 = vpow.pop %v2178
    %v2180 = vmul.f32 %v2177, 1.442695
    %v2181 = vpow.pop %v2180
    %v2182 = vsel %vm371, %v2179, 0.0
    %2183 = vadd.xlane.f32.xlu0 %v2182
    %v2184 = vpop.xlane.xlu0 %2183
    %v2185 = vsel %vm371, %v2181, 0.0
    %2186 = vadd.xlane.f32.xlu0 %v2185
    %v2187 = vpop.xlane.xlu0 %2186
    %v2188 = vrcp.pop %v2184
    %v2189 = vrcp.pop %v2187
    %v2190 = vmul.f32 %v2179, %v2188
    %v2191 = vmul.f32 %v2181, %v2189
    %v2193 = vsel %vm371, %v2190, 0
    %2195 = vmatpush.msra.mxu0 0.0
    %2196 = vmatpush.msra.mxu0 0.0
    %2197 = vmatpush.msra.mxu0 0.0
    %2198 = vmatpush.msra.mxu0 0.0
    %2199 = vmatpush.msra.mxu0 0.0
    %2200 = vmatpush.msra.mxu0 0.0
    %2201 = vmatpush.msra.mxu0 0.0
    %2202 = vmatpush.msra.mxu0 0.0
    %2203 = vmatpush.msra.mxu0 0.0
    %2204 = vmatpush.msra.mxu0 0.0
    %2205 = vmatpush.msra.mxu0 0.0
    %2206 = vmatpush.msra.mxu0 0.0
    %2207 = vmatpush.msra.mxu0 0.0
    %2208 = vmatpush.msra.mxu0 0.0
    %2209 = vmatpush.msra.mxu0 0.0
    %2210 = vmatpush.msra.mxu0 %v2111
    %2211 = vmatmul.f32.gmra.mxu0 %v2193
    %v2212 = vpop.f32.mrf.mxu0
    %v2213 = vadd.f32 0.0, %v2212
    %2214 = vdwg.mxu0
    %v2216 = vsel %vm371, %v2191, 0
    %2218 = vmatpush.msra.mxu0 0.0
    %2219 = vmatpush.msra.mxu0 0.0
    %2220 = vmatpush.msra.mxu0 0.0
    %2221 = vmatpush.msra.mxu0 0.0
    %2222 = vmatpush.msra.mxu0 0.0
    %2223 = vmatpush.msra.mxu0 0.0
    %2224 = vmatpush.msra.mxu0 0.0
    %2225 = vmatpush.msra.mxu0 0.0
    %2226 = vmatpush.msra.mxu0 0.0
    %2227 = vmatpush.msra.mxu0 0.0
    %2228 = vmatpush.msra.mxu0 0.0
    %2229 = vmatpush.msra.mxu0 0.0
    %2230 = vmatpush.msra.mxu0 0.0
    %2231 = vmatpush.msra.mxu0 0.0
    %2232 = vmatpush.msra.mxu0 0.0
    %2233 = vmatpush.msra.mxu0 %v2114
    %2234 = vmatmul.f32.gmra.mxu0 %v2216
    %v2235 = vpop.f32.mrf.mxu0
    %v2236 = vadd.f32 0.0, %v2235
    %2237 = vdwg.mxu0
    %s2238 = scalar_lea.vmem %s29, 48
    %v2239 = vld [vmem:[%s2238] sm:$0xff]
    %v2241 = vsel %vm371, %v2213, 0
    %v2244 = vsel %vm371, %v2236, 0
    %2246 = vmatpush.msra.mxu0 0.0
    %2247 = vmatpush.msra.mxu0 0.0
    %2248 = vmatpush.msra.mxu0 0.0
    %2249 = vmatpush.msra.mxu0 0.0
    %2250 = vmatpush.msra.mxu0 0.0
    %2251 = vmatpush.msra.mxu0 0.0
    %2252 = vmatpush.msra.mxu0 0.0
    %2253 = vmatpush.msra.mxu0 0.0
    %2254 = vmatpush.msra.mxu0 0.0
    %2255 = vmatpush.msra.mxu0 0.0
    %2256 = vmatpush.msra.mxu0 0.0
    %2257 = vmatpush.msra.mxu0 0.0
    %2258 = vmatpush.msra.mxu0 0.0
    %2259 = vmatpush.msra.mxu0 0.0
    %2260 = vmatpush.msra.mxu0 0.0
    %2261 = vmatpush.msra.mxu0 %v2239
    %2262 = vmatmul.f32.gmra.mxu0 %v2241
    %v2263 = vpop.f32.mrf.mxu0
    %v2264 = vadd.f32 0.0, %v2263
    %2265 = vmatmul.f32.gmra.mxu0 %v2244
    %v2266 = vpop.f32.mrf.mxu0
    %v2267 = vadd.f32 0.0, %v2266
    %2268 = vdwg.mxu0
    %v2269 = vadd.f32 %v2012, %v2264
    %v2270 = vadd.f32 %v2015, %v2267
    %s2271 = scalar_lea.vmem %s17, 224
    %v2272 = vld [vmem:[%s2271] sm:$0xff]
    %v2273 = vld [vmem:[%s2271 + $0x8] sm:$0xff]
    %v2274 = vld [vmem:[%s2271 + $0x10] sm:$0xff]
    %v2275 = vld [vmem:[%s2271 + $0x18] sm:$0xff]
    %s2276 = scalar_lea.vmem %s19, 7
    %v2277 = vld [vmem:[%s2276] sm:$0x1]
    %v2279 = vperm.slane %v2277, 0
    %2281 = vmatpush.msra.mxu0 0.0
    %2282 = vmatpush.msra.mxu0 0.0
    %2283 = vmatpush.msra.mxu0 0.0
    %2284 = vmatpush.msra.mxu0 0.0
    %2285 = vmatpush.msra.mxu0 0.0
    %2286 = vmatpush.msra.mxu0 0.0
    %2287 = vmatpush.msra.mxu0 0.0
    %2288 = vmatpush.msra.mxu0 0.0
    %2289 = vmatpush.msra.mxu0 0.0
    %2290 = vmatpush.msra.mxu0 0.0
    %2291 = vmatpush.msra.mxu0 0.0
    %2292 = vmatpush.msra.mxu0 0.0
    %2293 = vmatpush.msra.mxu0 %v2275
    %2294 = vmatpush.msra.mxu0 %v2274
    %2295 = vmatpush.msra.mxu0 %v2273
    %2296 = vmatpush.msra.mxu0 %v2272
    %2297 = vmatmul.f32.gmra.mxu0 %v1518
    %v2298 = vpop.f32.mrf.mxu0
    %v2299 = vadd.f32 %v2279, %v2298
    %2300 = vmatmul.f32.gmra.mxu0 %v1521
    %v2301 = vpop.f32.mrf.mxu0
    %v2302 = vadd.f32 %v2279, %v2301
    %2303 = vdwg.mxu0
    %s2304 = scalar_lea.vmem %s21, 224
    %v2305 = vld [vmem:[%s2304] sm:$0xff]
    %v2306 = vld [vmem:[%s2304 + $0x8] sm:$0xff]
    %v2307 = vld [vmem:[%s2304 + $0x10] sm:$0xff]
    %v2308 = vld [vmem:[%s2304 + $0x18] sm:$0xff]
    %s2309 = scalar_lea.vmem %s23, 7
    %v2310 = vld [vmem:[%s2309] sm:$0x1]
    %v2312 = vperm.slane %v2310, 0
    %2314 = vmatpush.msra.mxu0 0.0
    %2315 = vmatpush.msra.mxu0 0.0
    %2316 = vmatpush.msra.mxu0 0.0
    %2317 = vmatpush.msra.mxu0 0.0
    %2318 = vmatpush.msra.mxu0 0.0
    %2319 = vmatpush.msra.mxu0 0.0
    %2320 = vmatpush.msra.mxu0 0.0
    %2321 = vmatpush.msra.mxu0 0.0
    %2322 = vmatpush.msra.mxu0 0.0
    %2323 = vmatpush.msra.mxu0 0.0
    %2324 = vmatpush.msra.mxu0 0.0
    %2325 = vmatpush.msra.mxu0 0.0
    %2326 = vmatpush.msra.mxu0 %v2308
    %2327 = vmatpush.msra.mxu0 %v2307
    %2328 = vmatpush.msra.mxu0 %v2306
    %2329 = vmatpush.msra.mxu0 %v2305
    %2330 = vmatmul.f32.gmra.mxu0 %v1518
    %v2331 = vpop.f32.mrf.mxu0
    %v2332 = vadd.f32 %v2312, %v2331
    %2333 = vmatmul.f32.gmra.mxu0 %v1521
    %v2334 = vpop.f32.mrf.mxu0
    %v2335 = vadd.f32 %v2312, %v2334
    %2336 = vdwg.mxu0
    %s2337 = scalar_lea.vmem %s25, 224
    %v2338 = vld [vmem:[%s2337] sm:$0xff]
    %v2339 = vld [vmem:[%s2337 + $0x8] sm:$0xff]
    %v2340 = vld [vmem:[%s2337 + $0x10] sm:$0xff]
    %v2341 = vld [vmem:[%s2337 + $0x18] sm:$0xff]
    %s2342 = scalar_lea.vmem %s27, 7
    %v2343 = vld [vmem:[%s2342] sm:$0x1]
    %v2345 = vperm.slane %v2343, 0
    %2347 = vmatpush.msra.mxu0 0.0
    %2348 = vmatpush.msra.mxu0 0.0
    %2349 = vmatpush.msra.mxu0 0.0
    %2350 = vmatpush.msra.mxu0 0.0
    %2351 = vmatpush.msra.mxu0 0.0
    %2352 = vmatpush.msra.mxu0 0.0
    %2353 = vmatpush.msra.mxu0 0.0
    %2354 = vmatpush.msra.mxu0 0.0
    %2355 = vmatpush.msra.mxu0 0.0
    %2356 = vmatpush.msra.mxu0 0.0
    %2357 = vmatpush.msra.mxu0 0.0
    %2358 = vmatpush.msra.mxu0 0.0
    %2359 = vmatpush.msra.mxu0 %v2341
    %2360 = vmatpush.msra.mxu0 %v2340
    %2361 = vmatpush.msra.mxu0 %v2339
    %2362 = vmatpush.msra.mxu0 %v2338
    %2363 = vmatmul.f32.gmra.mxu0 %v1518
    %v2364 = vpop.f32.mrf.mxu0
    %v2365 = vadd.f32 %v2345, %v2364
    %2366 = vmatmul.f32.gmra.mxu0 %v1521
    %v2367 = vpop.f32.mrf.mxu0
    %v2368 = vadd.f32 %v2345, %v2367
    %2369 = vdwg.mxu0
    %v2371 = vsel %vm371, %v2299, 0
    %v2374 = vsel %vm371, %v2332, 0
    %2376 = vmatpush.xpose.msra.mxu0 0.0
    %2377 = vmatpush.xpose.msra.mxu0 0.0
    %2378 = vmatpush.xpose.msra.mxu0 0.0
    %2379 = vmatpush.xpose.msra.mxu0 0.0
    %2380 = vmatpush.xpose.msra.mxu0 0.0
    %2381 = vmatpush.xpose.msra.mxu0 0.0
    %2382 = vmatpush.xpose.msra.mxu0 0.0
    %2383 = vmatpush.xpose.msra.mxu0 0.0
    %2384 = vmatpush.xpose.msra.mxu0 0.0
    %2385 = vmatpush.xpose.msra.mxu0 0.0
    %2386 = vmatpush.xpose.msra.mxu0 0.0
    %2387 = vmatpush.xpose.msra.mxu0 0.0
    %2388 = vmatpush.xpose.msra.mxu0 0.0
    %2389 = vmatpush.xpose.msra.mxu0 0.0
    %2390 = vmatpush.xpose.msra.mxu0 0.0
    %2391 = vmatpush.xpose.msra.mxu0 %v2374
    %2392 = vmatmul.f32.gmra.mxu0 %v2371
    %v2393 = vpop.f32.mrf.mxu0
    %v2394 = vadd.f32 0.0, %v2393
    %2395 = vdwg.mxu0
    %v2397 = vsel %vm371, %v2302, 0
    %v2400 = vsel %vm371, %v2335, 0
    %2402 = vmatpush.xpose.msra.mxu0 0.0
    %2403 = vmatpush.xpose.msra.mxu0 0.0
    %2404 = vmatpush.xpose.msra.mxu0 0.0
    %2405 = vmatpush.xpose.msra.mxu0 0.0
    %2406 = vmatpush.xpose.msra.mxu0 0.0
    %2407 = vmatpush.xpose.msra.mxu0 0.0
    %2408 = vmatpush.xpose.msra.mxu0 0.0
    %2409 = vmatpush.xpose.msra.mxu0 0.0
    %2410 = vmatpush.xpose.msra.mxu0 0.0
    %2411 = vmatpush.xpose.msra.mxu0 0.0
    %2412 = vmatpush.xpose.msra.mxu0 0.0
    %2413 = vmatpush.xpose.msra.mxu0 0.0
    %2414 = vmatpush.xpose.msra.mxu0 0.0
    %2415 = vmatpush.xpose.msra.mxu0 0.0
    %2416 = vmatpush.xpose.msra.mxu0 0.0
    %2417 = vmatpush.xpose.msra.mxu0 %v2400
    %2418 = vmatmul.f32.gmra.mxu0 %v2397
    %v2419 = vpop.f32.mrf.mxu0
    %v2420 = vadd.f32 0.0, %v2419
    %2421 = vdwg.mxu0
    %v2422 = vmul.f32 %v2394, 0.35355338
    %v2423 = vmul.f32 %v2420, 0.35355338
    %v2424 = vsel %vm371, %v2422, -inf
    %2425 = vmax.xlane.f32.xlu0 %v2424
    %v2426 = vpop.xlane.xlu0 %2425
    %v2427 = vsel %vm371, %v2423, -inf
    %2428 = vmax.xlane.f32.xlu0 %v2427
    %v2429 = vpop.xlane.xlu0 %2428
    %v2430 = vsub.f32 %v2422, %v2426
    %v2431 = vsub.f32 %v2423, %v2429
    %v2432 = vmul.f32 %v2430, 1.442695
    %v2433 = vpow.pop %v2432
    %v2434 = vmul.f32 %v2431, 1.442695
    %v2435 = vpow.pop %v2434
    %v2436 = vsel %vm371, %v2433, 0.0
    %2437 = vadd.xlane.f32.xlu0 %v2436
    %v2438 = vpop.xlane.xlu0 %2437
    %v2439 = vsel %vm371, %v2435, 0.0
    %2440 = vadd.xlane.f32.xlu0 %v2439
    %v2441 = vpop.xlane.xlu0 %2440
    %v2442 = vrcp.pop %v2438
    %v2443 = vrcp.pop %v2441
    %v2444 = vmul.f32 %v2433, %v2442
    %v2445 = vmul.f32 %v2435, %v2443
    %v2447 = vsel %vm371, %v2444, 0
    %2449 = vmatpush.msra.mxu0 0.0
    %2450 = vmatpush.msra.mxu0 0.0
    %2451 = vmatpush.msra.mxu0 0.0
    %2452 = vmatpush.msra.mxu0 0.0
    %2453 = vmatpush.msra.mxu0 0.0
    %2454 = vmatpush.msra.mxu0 0.0
    %2455 = vmatpush.msra.mxu0 0.0
    %2456 = vmatpush.msra.mxu0 0.0
    %2457 = vmatpush.msra.mxu0 0.0
    %2458 = vmatpush.msra.mxu0 0.0
    %2459 = vmatpush.msra.mxu0 0.0
    %2460 = vmatpush.msra.mxu0 0.0
    %2461 = vmatpush.msra.mxu0 0.0
    %2462 = vmatpush.msra.mxu0 0.0
    %2463 = vmatpush.msra.mxu0 0.0
    %2464 = vmatpush.msra.mxu0 %v2365
    %2465 = vmatmul.f32.gmra.mxu0 %v2447
    %v2466 = vpop.f32.mrf.mxu0
    %v2467 = vadd.f32 0.0, %v2466
    %2468 = vdwg.mxu0
    %v2470 = vsel %vm371, %v2445, 0
    %2472 = vmatpush.msra.mxu0 0.0
    %2473 = vmatpush.msra.mxu0 0.0
    %2474 = vmatpush.msra.mxu0 0.0
    %2475 = vmatpush.msra.mxu0 0.0
    %2476 = vmatpush.msra.mxu0 0.0
    %2477 = vmatpush.msra.mxu0 0.0
    %2478 = vmatpush.msra.mxu0 0.0
    %2479 = vmatpush.msra.mxu0 0.0
    %2480 = vmatpush.msra.mxu0 0.0
    %2481 = vmatpush.msra.mxu0 0.0
    %2482 = vmatpush.msra.mxu0 0.0
    %2483 = vmatpush.msra.mxu0 0.0
    %2484 = vmatpush.msra.mxu0 0.0
    %2485 = vmatpush.msra.mxu0 0.0
    %2486 = vmatpush.msra.mxu0 0.0
    %2487 = vmatpush.msra.mxu0 %v2368
    %2488 = vmatmul.f32.gmra.mxu0 %v2470
    %v2489 = vpop.f32.mrf.mxu0
    %v2490 = vadd.f32 0.0, %v2489
    %2491 = vdwg.mxu0
    %s2492 = scalar_lea.vmem %s29, 56
    %v2493 = vld [vmem:[%s2492] sm:$0xff]
    %v2495 = vsel %vm371, %v2467, 0
    %v2498 = vsel %vm371, %v2490, 0
    %2500 = vmatpush.msra.mxu0 0.0
    %2501 = vmatpush.msra.mxu0 0.0
    %2502 = vmatpush.msra.mxu0 0.0
    %2503 = vmatpush.msra.mxu0 0.0
    %2504 = vmatpush.msra.mxu0 0.0
    %2505 = vmatpush.msra.mxu0 0.0
    %2506 = vmatpush.msra.mxu0 0.0
    %2507 = vmatpush.msra.mxu0 0.0
    %2508 = vmatpush.msra.mxu0 0.0
    %2509 = vmatpush.msra.mxu0 0.0
    %2510 = vmatpush.msra.mxu0 0.0
    %2511 = vmatpush.msra.mxu0 0.0
    %2512 = vmatpush.msra.mxu0 0.0
    %2513 = vmatpush.msra.mxu0 0.0
    %2514 = vmatpush.msra.mxu0 0.0
    %2515 = vmatpush.msra.mxu0 %v2493
    %2516 = vmatmul.f32.gmra.mxu0 %v2495
    %v2517 = vpop.f32.mrf.mxu0
    %v2518 = vadd.f32 0.0, %v2517
    %2519 = vmatmul.f32.gmra.mxu0 %v2498
    %v2520 = vpop.f32.mrf.mxu0
    %v2521 = vadd.f32 0.0, %v2520
    %2522 = vdwg.mxu0
    %v2523 = vadd.f32 %v2269, %v2518
    %v2524 = vadd.f32 %v2270, %v2521
    %v2525 = vadd.f32 %v1447, %v2523
    %v2526 = vadd.f32 %v1448, %v2524
    %s2527 = scalar_lea.vmem %s31, 1
    %v2528 = vld [vmem:[%s2527] sm:$0x1]
    %v2530 = vperm.slane %v2528, 0
    %v2532 = vadd.f32 %v2525, %v2530
    %v2533 = vadd.f32 %v2526, %v2530
    %s2534 = scalar_lea.vmem %s33, 1
    %v2535 = vld [vmem:[%s2534] sm:$0x1]
    %s2536 = scalar_lea.vmem %s35, 1
    %v2537 = vld [vmem:[%s2536] sm:$0x1]
    %v2538 = vsel %vm210, %v2532, 0.0
    %2539 = vadd.xlane.f32.xlu0 %v2538
    %v2540 = vpop.xlane.xlu0 %2539
    %v2541 = vsel %vm210, %v2533, 0.0
    %2542 = vadd.xlane.f32.xlu0 %v2541
    %v2543 = vpop.xlane.xlu0 %2542
    %v2544 = vmul.f32 %v2540, %v223
    %v2545 = vmul.f32 %v2543, %v223
    %v2546 = vsub.f32 %v2532, %v2544
    %v2547 = vsub.f32 %v2533, %v2545
    %v2548 = vmul.f32 %v2546, %v2546
    %v2549 = vmul.f32 %v2547, %v2547
    %v2550 = vsel %vm210, %v2548, 0.0
    %2551 = vadd.xlane.f32.xlu0 %v2550
    %v2552 = vpop.xlane.xlu0 %2551
    %v2553 = vsel %vm210, %v2549, 0.0
    %2554 = vadd.xlane.f32.xlu0 %v2553
    %v2555 = vpop.xlane.xlu0 %2554
    %v2556 = vmul.f32 %v2552, %v223
    %v2557 = vmul.f32 %v2555, %v223
    %v2558 = vadd.f32 %v2556, 1e-05
    %v2559 = vadd.f32 %v2557, 1e-05
    %v2560 = vrsqrt.pop %v2558
    %v2561 = vmul.f32 %v2560, %v2558
    %v2562 = vmul.f32 %v2561, %v2560
    %v2563 = vmul.f32 0.5, %v2562
    %v2564 = vsub.f32 1.5, %v2563
    %v2565 = vmul.f32 %v2560, %v2564
    %vm2566 = vweird.f32 %v2558
    %vm2567 = vweird.f32 %v2560
    %vm2568 = vmor %vm2566, %vm2567
    %v2569 = vsel %vm2568, %v2560, %v2565
    %v2570 = vrsqrt.pop %v2559
    %v2571 = vmul.f32 %v2570, %v2559
    %v2572 = vmul.f32 %v2571, %v2570
    %v2573 = vmul.f32 0.5, %v2572
    %v2574 = vsub.f32 1.5, %v2573
    %v2575 = vmul.f32 %v2570, %v2574
    %vm2576 = vweird.f32 %v2559
    %vm2577 = vweird.f32 %v2570
    %vm2578 = vmor %vm2576, %vm2577
    %v2579 = vsel %vm2578, %v2570, %v2575
    %v2580 = vmul.f32 %v2546, %v2569
    %v2581 = vmul.f32 %v2547, %v2579
    %v2583 = vperm.slane %v2535, 0
    %v2585 = vmul.f32 %v2580, %v2583
    %v2586 = vmul.f32 %v2581, %v2583
    %v2588 = vperm.slane %v2537, 0
    %v2590 = vadd.f32 %v2585, %v2588
    %v2591 = vadd.f32 %v2586, %v2588
    %s2592 = scalar_lea.vmem %s37, 32
    %v2593 = vld [vmem:[%s2592] sm:$0xff]
    %v2594 = vld [vmem:[%s2592 + $0x8] sm:$0xff]
    %v2595 = vld [vmem:[%s2592 + $0x10] sm:$0xff]
    %v2596 = vld [vmem:[%s2592 + $0x18] sm:$0xff]
    %s2597 = scalar_lea.vmem %s39, 1
    %v2598 = vld [vmem:[%s2597] sm:$0x1]
    %v2600 = vperm.slane %v2598, 0
    %v2603 = vsel %vm210, %v2590, 0
    %v2606 = vsel %vm210, %v2591, 0
    %2608 = vmatpush.msra.mxu0 0.0
    %2609 = vmatpush.msra.mxu0 0.0
    %2610 = vmatpush.msra.mxu0 0.0
    %2611 = vmatpush.msra.mxu0 0.0
    %2612 = vmatpush.msra.mxu0 0.0
    %2613 = vmatpush.msra.mxu0 0.0
    %2614 = vmatpush.msra.mxu0 0.0
    %2615 = vmatpush.msra.mxu0 0.0
    %2616 = vmatpush.msra.mxu0 0.0
    %2617 = vmatpush.msra.mxu0 0.0
    %2618 = vmatpush.msra.mxu0 0.0
    %2619 = vmatpush.msra.mxu0 0.0
    %2620 = vmatpush.msra.mxu0 %v2596
    %2621 = vmatpush.msra.mxu0 %v2595
    %2622 = vmatpush.msra.mxu0 %v2594
    %2623 = vmatpush.msra.mxu0 %v2593
    %2624 = vmatmul.f32.gmra.mxu0 %v2603
    %v2625 = vpop.f32.mrf.mxu0
    %v2626 = vadd.f32 %v2600, %v2625
    %2627 = vmatmul.f32.gmra.mxu0 %v2606
    %v2628 = vpop.f32.mrf.mxu0
    %v2629 = vadd.f32 %v2600, %v2628
    %2630 = vdwg.mxu0
    %v2631 = vmul.f32 %v2626, 0.5
    %v2632 = vmul.f32 %v2629, 0.5
    %v2633 = vmul.f32 %v2626, 0.044715
    %v2634 = vmul.f32 %v2629, 0.044715
    %v2635 = vmul.f32 %v2633, %v2626
    %v2636 = vmul.f32 %v2634, %v2629
    %v2637 = vmul.f32 %v2635, %v2626
    %v2638 = vmul.f32 %v2636, %v2629
    %v2639 = vadd.f32 %v2626, %v2637
    %v2640 = vadd.f32 %v2629, %v2638
    %v2641 = vmul.f32 %v2639, 0.7978846
    %v2642 = vmul.f32 %v2640, 0.7978846
    %v2643 = vtanh.pop %v2641
    %v2644 = vtanh.pop %v2642
    %v2645 = vadd.f32 %v2643, 1.0
    %v2646 = vadd.f32 %v2644, 1.0
    %v2647 = vmul.f32 %v2631, %v2645
    %v2648 = vmul.f32 %v2632, %v2646
    %s2649 = scalar_lea.vmem %s41, 64
    %v2650 = vld [vmem:[%s2649] sm:$0xff]
    %v2651 = vld [vmem:[%s2649 + $0x8] sm:$0xff]
    %v2652 = vld [vmem:[%s2649 + $0x10] sm:$0xff]
    %v2653 = vld [vmem:[%s2649 + $0x18] sm:$0xff]
    %v2654 = vld [vmem:[%s2649 + $0x20] sm:$0xff]
    %v2655 = vld [vmem:[%s2649 + $0x28] sm:$0xff]
    %v2656 = vld [vmem:[%s2649 + $0x30] sm:$0xff]
    %v2657 = vld [vmem:[%s2649 + $0x38] sm:$0xff]
    %v2659 = vsel %vm1411, %v2647, 0
    %v2662 = vsel %vm1411, %v2648, 0
    %2664 = vmatpush.msra.mxu0 0.0
    %2665 = vmatpush.msra.mxu0 0.0
    %2666 = vmatpush.msra.mxu0 0.0
    %2667 = vmatpush.msra.mxu0 0.0
    %2668 = vmatpush.msra.mxu0 0.0
    %2669 = vmatpush.msra.mxu0 0.0
    %2670 = vmatpush.msra.mxu0 0.0
    %2671 = vmatpush.msra.mxu0 0.0
    %2672 = vmatpush.msra.mxu0 %v2657
    %2673 = vmatpush.msra.mxu0 %v2656
    %2674 = vmatpush.msra.mxu0 %v2655
    %2675 = vmatpush.msra.mxu0 %v2654
    %2676 = vmatpush.msra.mxu0 %v2653
    %2677 = vmatpush.msra.mxu0 %v2652
    %2678 = vmatpush.msra.mxu0 %v2651
    %2679 = vmatpush.msra.mxu0 %v2650
    %2680 = vmatmul.f32.gmra.mxu0 %v2659
    %v2681 = vpop.f32.mrf.mxu0
    %v2682 = vadd.f32 0.0, %v2681
    %2683 = vmatmul.f32.gmra.mxu0 %v2662
    %v2684 = vpop.f32.mrf.mxu0
    %v2685 = vadd.f32 0.0, %v2684
    %2686 = vdwg.mxu0
    %v2687 = vadd.f32 %v2532, %v2682
    %v2688 = vadd.f32 %v2533, %v2685
    %s2689 = scalar_lea.vmem %s43, 1
    %v2690 = vld [vmem:[%s2689] sm:$0x1]
    %v2692 = vperm.slane %v2690, 0
    %v2694 = vadd.f32 %v2687, %v2692
    %v2695 = vadd.f32 %v2688, %v2692
    %v2697 = vsel %vm178, %v173, 0
    %2699 = vmatpush.msra.mxu0 0.0
    %2700 = vmatpush.msra.mxu0 0.0
    %2701 = vmatpush.msra.mxu0 0.0
    %2702 = vmatpush.msra.mxu0 0.0
    %2703 = vmatpush.msra.mxu0 0.0
    %2704 = vmatpush.msra.mxu0 0.0
    %2705 = vmatpush.msra.mxu0 0.0
    %2706 = vmatpush.msra.mxu0 0.0
    %2707 = vmatpush.msra.mxu0 0.0
    %2708 = vmatpush.msra.mxu0 0.0
    %2709 = vmatpush.msra.mxu0 0.0
    %2710 = vmatpush.msra.mxu0 0.0
    %2711 = vmatpush.msra.mxu0 0.0
    %2712 = vmatpush.msra.mxu0 0.0
    %2713 = vmatpush.msra.mxu0 %v2695
    %2714 = vmatpush.msra.mxu0 %v2694
    %2715 = vmatmul.f32.gmra.mxu0 %v2697
    %v2716 = vpop.f32.mrf.mxu0
    %v2717 = vadd.f32 0.0, %v2716
    %2718 = vdwg.mxu0
    %v2719 = vld [vmem:[%s5] sm:$0xff]
    %v2720 = vld [vmem:[%s5 + $0x8] sm:$0xff]
    %v2721 = vld [vmem:[%s7] sm:$0xff]
    %v2722 = vld [vmem:[%s7 + $0x8] sm:$0xff]
    %v2723 = vrot.slane %v172, 7
    %vm2725 = vcmask 1040384
    %v2726 = vrot.slane %v171, 7
    %v2727 = vsel %vm2725, %v2726, %v2723
    %v2730 = vsel %vm2725, %v2723, %v2726
    %2732 = vset.pattern.permute.xlu0 0
    %2733 = vperm.xlu0 %2732, %v2719
    %v2734 = vpop.permute.xlu0 %2733
    %2737 = vset.pattern.permute.xlu0 0
    %2738 = vperm.xlu0 %2737, %v2720
    %v2739 = vpop.permute.xlu0 %2738
    %v2741 = vmul.f32 %v2730, %v2734
    %v2742 = vmul.f32 %v2727, %v2739
    %vm2743 = vcmask 1046528
    %v2744 = vrot.slane %v171, 1
    %v2745 = vrot.slane %v172, 1
    %v2746 = vsel %vm2743, %v2744, %v2745
    %v2750 = vsel %vm2743, %v2745, %v2744
    %2752 = vset.pattern.permute.xlu0 0
    %2753 = vperm.xlu0 %2752, %v2721
    %v2754 = vpop.permute.xlu0 %2753
    %2757 = vset.pattern.permute.xlu0 0
    %2758 = vperm.xlu0 %2757, %v2722
    %v2759 = vpop.permute.xlu0 %2758
    %v2761 = vmul.f32 %v2746, %v2754
    %v2762 = vmul.f32 %v2750, %v2759
    %v2763 = vld [vmem:[%s45] sm:$0xff]
    %v2764 = vld [vmem:[%s45 + $0x8] sm:$0xff]
    %s2765 = scalar_lea.vmem %s45, 16
    %v2766 = vld [vmem:[%s2765] sm:$0xff]
    %v2767 = vld [vmem:[%s2765 + $0x8] sm:$0xff]
    %2768 = vmatpush.msra.mxu0 0.0
    %2769 = vmatpush.msra.mxu0 0.0
    %2770 = vmatpush.msra.mxu0 0.0
    %2771 = vmatpush.msra.mxu0 0.0
    %2772 = vmatpush.msra.mxu0 0.0
    %2773 = vmatpush.msra.mxu0 0.0
    %2774 = vmatpush.msra.mxu0 0.0
    %2775 = vmatpush.msra.mxu0 0.0
    %2776 = vmatpush.msra.mxu0 0.0
    %2777 = vmatpush.msra.mxu0 0.0
    %2778 = vmatpush.msra.mxu0 0.0
    %2779 = vmatpush.msra.mxu0 0.0
    %2780 = vmatpush.msra.mxu0 0.0
    %2781 = vmatpush.msra.mxu0 0.0
    %2782 = vmatpush.msra.mxu0 %v2767
    %2783 = vmatpush.msra.mxu0 %v2766
    %2784 = vmatmul.f32.gmra.mxu0 %v180
    %v2785 = vpop.f32.mrf.mxu0
    %v2786 = vadd.f32 0.0, %v2785
    %2787 = vmatmul.f32.gmra.mxu0 %v183
    %v2788 = vpop.f32.mrf.mxu0
    %v2789 = vadd.f32 0.0, %v2788
    %2790 = vdwg.mxu0
    %v2792 = vsel %vm178, %v2741, 0
    %v2795 = vsel %vm178, %v2742, 0
    %2797 = vmatpush.msra.mxu0 0.0
    %2798 = vmatpush.msra.mxu0 0.0
    %2799 = vmatpush.msra.mxu0 0.0
    %2800 = vmatpush.msra.mxu0 0.0
    %2801 = vmatpush.msra.mxu0 0.0
    %2802 = vmatpush.msra.mxu0 0.0
    %2803 = vmatpush.msra.mxu0 0.0
    %2804 = vmatpush.msra.mxu0 0.0
    %2805 = vmatpush.msra.mxu0 0.0
    %2806 = vmatpush.msra.mxu0 0.0
    %2807 = vmatpush.msra.mxu0 0.0
    %2808 = vmatpush.msra.mxu0 0.0
    %2809 = vmatpush.msra.mxu0 0.0
    %2810 = vmatpush.msra.mxu0 0.0
    %2811 = vmatpush.msra.mxu0 %v2764
    %2812 = vmatpush.msra.mxu0 %v2763
    %2813 = vmatmul.f32.gmra.mxu0 %v2792
    %v2814 = vpop.f32.mrf.mxu0
    %v2815 = vadd.f32 %v2786, %v2814
    %2816 = vmatmul.f32.gmra.mxu0 %v2795
    %v2817 = vpop.f32.mrf.mxu0
    %v2818 = vadd.f32 %v2789, %v2817
    %2819 = vdwg.mxu0
    %s2820 = scalar_lea.vmem %s45, 32
    %v2821 = vld [vmem:[%s2820] sm:$0xff]
    %v2822 = vld [vmem:[%s2820 + $0x8] sm:$0xff]
    %v2824 = vsel %vm178, %v2761, 0
    %v2827 = vsel %vm178, %v2762, 0
    %2829 = vmatpush.msra.mxu0 0.0
    %2830 = vmatpush.msra.mxu0 0.0
    %2831 = vmatpush.msra.mxu0 0.0
    %2832 = vmatpush.msra.mxu0 0.0
    %2833 = vmatpush.msra.mxu0 0.0
    %2834 = vmatpush.msra.mxu0 0.0
    %2835 = vmatpush.msra.mxu0 0.0
    %2836 = vmatpush.msra.mxu0 0.0
    %2837 = vmatpush.msra.mxu0 0.0
    %2838 = vmatpush.msra.mxu0 0.0
    %2839 = vmatpush.msra.mxu0 0.0
    %2840 = vmatpush.msra.mxu0 0.0
    %2841 = vmatpush.msra.mxu0 0.0
    %2842 = vmatpush.msra.mxu0 0.0
    %2843 = vmatpush.msra.mxu0 %v2822
    %2844 = vmatpush.msra.mxu0 %v2821
    %2845 = vmatmul.f32.gmra.mxu0 %v2824
    %v2846 = vpop.f32.mrf.mxu0
    %v2847 = vadd.f32 0.0, %v2846
    %2848 = vmatmul.f32.gmra.mxu0 %v2827
    %v2849 = vpop.f32.mrf.mxu0
    %v2850 = vadd.f32 0.0, %v2849
    %2851 = vdwg.mxu0
    %v2852 = vadd.f32 %v2815, %v2847
    %v2853 = vadd.f32 %v2818, %v2850
    %v2854 = vld [vmem:[%s47] sm:$0x1]
    %v2856 = vperm.slane %v2854, 0
    %v2858 = vadd.f32 %v2852, %v2856
    %v2859 = vadd.f32 %v2853, %v2856
    %v2860 = vmax.f32 %v2858, 0.0
    %v2861 = vmax.f32 %v2859, 0.0
    %v2863 = vrot.slane %v2861, 7
    %v2866 = vrot.slane %v2860, 7
    %v2867 = vsel %vm2725, %v2866, %v2863
    %v2870 = vsel %vm2725, %v2863, %v2866
    %v2871 = vmul.f32 %v2870, %v2734
    %v2872 = vmul.f32 %v2867, %v2739
    %v2873 = vrot.slane %v2860, 1
    %v2874 = vrot.slane %v2861, 1
    %v2875 = vsel %vm2743, %v2873, %v2874
    %v2879 = vsel %vm2743, %v2874, %v2873
    %v2880 = vmul.f32 %v2875, %v2754
    %v2881 = vmul.f32 %v2879, %v2759
    %v2882 = vld [vmem:[%s49] sm:$0xff]
    %v2883 = vld [vmem:[%s49 + $0x8] sm:$0xff]
    %v2884 = vld [vmem:[%s49 + $0x10] sm:$0xff]
    %v2885 = vld [vmem:[%s49 + $0x18] sm:$0xff]
    %v2886 = vld [vmem:[%s49 + $0x20] sm:$0xff]
    %v2887 = vld [vmem:[%s49 + $0x28] sm:$0xff]
    %v2888 = vld [vmem:[%s49 + $0x30] sm:$0xff]
    %v2889 = vld [vmem:[%s49 + $0x38] sm:$0xff]
    %s2890 = scalar_lea.vmem %s49, 64
    %v2891 = vld [vmem:[%s2890] sm:$0xff]
    %v2892 = vld [vmem:[%s2890 + $0x8] sm:$0xff]
    %v2893 = vld [vmem:[%s2890 + $0x10] sm:$0xff]
    %v2894 = vld [vmem:[%s2890 + $0x18] sm:$0xff]
    %v2895 = vld [vmem:[%s2890 + $0x20] sm:$0xff]
    %v2896 = vld [vmem:[%s2890 + $0x28] sm:$0xff]
    %v2897 = vld [vmem:[%s2890 + $0x30] sm:$0xff]
    %v2898 = vld [vmem:[%s2890 + $0x38] sm:$0xff]
    %v2899 = vsel %vm1411, %v2860, 0
    %v2901 = vsel %vm1411, %v2861, 0
    %2903 = vmatpush.msra.mxu0 0.0
    %2904 = vmatpush.msra.mxu0 0.0
    %2905 = vmatpush.msra.mxu0 0.0
    %2906 = vmatpush.msra.mxu0 0.0
    %2907 = vmatpush.msra.mxu0 0.0
    %2908 = vmatpush.msra.mxu0 0.0
    %2909 = vmatpush.msra.mxu0 0.0
    %2910 = vmatpush.msra.mxu0 0.0
    %2911 = vmatpush.msra.mxu0 %v2898
    %2912 = vmatpush.msra.mxu0 %v2897
    %2913 = vmatpush.msra.mxu0 %v2896
    %2914 = vmatpush.msra.mxu0 %v2895
    %2915 = vmatpush.msra.mxu0 %v2894
    %2916 = vmatpush.msra.mxu0 %v2893
    %2917 = vmatpush.msra.mxu0 %v2892
    %2918 = vmatpush.msra.mxu0 %v2891
    %2919 = vmatmul.f32.gmra.mxu0 %v2899
    %v2920 = vpop.f32.mrf.mxu0
    %v2921 = vadd.f32 0.0, %v2920
    %2922 = vmatmul.f32.gmra.mxu0 %v2901
    %v2923 = vpop.f32.mrf.mxu0
    %v2924 = vadd.f32 0.0, %v2923
    %2925 = vdwg.mxu0
    %v2927 = vsel %vm1411, %v2871, 0
    %v2930 = vsel %vm1411, %v2872, 0
    %2932 = vmatpush.msra.mxu0 0.0
    %2933 = vmatpush.msra.mxu0 0.0
    %2934 = vmatpush.msra.mxu0 0.0
    %2935 = vmatpush.msra.mxu0 0.0
    %2936 = vmatpush.msra.mxu0 0.0
    %2937 = vmatpush.msra.mxu0 0.0
    %2938 = vmatpush.msra.mxu0 0.0
    %2939 = vmatpush.msra.mxu0 0.0
    %2940 = vmatpush.msra.mxu0 %v2889
    %2941 = vmatpush.msra.mxu0 %v2888
    %2942 = vmatpush.msra.mxu0 %v2887
    %2943 = vmatpush.msra.mxu0 %v2886
    %2944 = vmatpush.msra.mxu0 %v2885
    %2945 = vmatpush.msra.mxu0 %v2884
    %2946 = vmatpush.msra.mxu0 %v2883
    %2947 = vmatpush.msra.mxu0 %v2882
    %2948 = vmatmul.f32.gmra.mxu0 %v2927
    %v2949 = vpop.f32.mrf.mxu0
    %v2950 = vadd.f32 %v2921, %v2949
    %2951 = vmatmul.f32.gmra.mxu0 %v2930
    %v2952 = vpop.f32.mrf.mxu0
    %v2953 = vadd.f32 %v2924, %v2952
    %2954 = vdwg.mxu0
    %s2955 = scalar_lea.vmem %s49, 128
    %v2956 = vld [vmem:[%s2955] sm:$0xff]
    %v2957 = vld [vmem:[%s2955 + $0x8] sm:$0xff]
    %v2958 = vld [vmem:[%s2955 + $0x10] sm:$0xff]
    %v2959 = vld [vmem:[%s2955 + $0x18] sm:$0xff]
    %v2960 = vld [vmem:[%s2955 + $0x20] sm:$0xff]
    %v2961 = vld [vmem:[%s2955 + $0x28] sm:$0xff]
    %v2962 = vld [vmem:[%s2955 + $0x30] sm:$0xff]
    %v2963 = vld [vmem:[%s2955 + $0x38] sm:$0xff]
    %v2965 = vsel %vm1411, %v2880, 0
    %v2968 = vsel %vm1411, %v2881, 0
    %2970 = vmatpush.msra.mxu0 0.0
    %2971 = vmatpush.msra.mxu0 0.0
    %2972 = vmatpush.msra.mxu0 0.0
    %2973 = vmatpush.msra.mxu0 0.0
    %2974 = vmatpush.msra.mxu0 0.0
    %2975 = vmatpush.msra.mxu0 0.0
    %2976 = vmatpush.msra.mxu0 0.0
    %2977 = vmatpush.msra.mxu0 0.0
    %2978 = vmatpush.msra.mxu0 %v2963
    %2979 = vmatpush.msra.mxu0 %v2962
    %2980 = vmatpush.msra.mxu0 %v2961
    %2981 = vmatpush.msra.mxu0 %v2960
    %2982 = vmatpush.msra.mxu0 %v2959
    %2983 = vmatpush.msra.mxu0 %v2958
    %2984 = vmatpush.msra.mxu0 %v2957
    %2985 = vmatpush.msra.mxu0 %v2956
    %2986 = vmatmul.f32.gmra.mxu0 %v2965
    %v2987 = vpop.f32.mrf.mxu0
    %v2988 = vadd.f32 0.0, %v2987
    %2989 = vmatmul.f32.gmra.mxu0 %v2968
    %v2990 = vpop.f32.mrf.mxu0
    %v2991 = vadd.f32 0.0, %v2990
    %2992 = vdwg.mxu0
    %v2993 = vadd.f32 %v2950, %v2988
    %v2994 = vadd.f32 %v2953, %v2991
    %v2995 = vld [vmem:[%s51] sm:$0x1]
    %v2997 = vperm.slane %v2995, 0
    %v2999 = vadd.f32 %v2993, %v2997
    %v3000 = vadd.f32 %v2994, %v2997
    %v3001 = vmax.f32 %v2999, 0.0
    %v3002 = vmax.f32 %v3000, 0.0
    %v3004 = vrot.slane %v3002, 7
    %v3007 = vrot.slane %v3001, 7
    %v3008 = vsel %vm2725, %v3007, %v3004
    %v3011 = vsel %vm2725, %v3004, %v3007
    %v3012 = vmul.f32 %v3011, %v2734
    %v3013 = vmul.f32 %v3008, %v2739
    %v3014 = vrot.slane %v3001, 1
    %v3015 = vrot.slane %v3002, 1
    %v3016 = vsel %vm2743, %v3014, %v3015
    %v3020 = vsel %vm2743, %v3015, %v3014
    %v3021 = vmul.f32 %v3016, %v2754
    %v3022 = vmul.f32 %v3020, %v2759
    %v3023 = vld [vmem:[%s53] sm:$0xff]
    %v3024 = vld [vmem:[%s53 + $0x8] sm:$0xff]
    %v3025 = vld [vmem:[%s53 + $0x10] sm:$0xff]
    %v3026 = vld [vmem:[%s53 + $0x18] sm:$0xff]
    %v3027 = vld [vmem:[%s53 + $0x20] sm:$0xff]
    %v3028 = vld [vmem:[%s53 + $0x28] sm:$0xff]
    %v3029 = vld [vmem:[%s53 + $0x30] sm:$0xff]
    %v3030 = vld [vmem:[%s53 + $0x38] sm:$0xff]
    %v3031 = vld [vmem:[%s53 + $0x40] sm:$0xff]
    %v3032 = vld [vmem:[%s53 + $0x48] sm:$0xff]
    %v3033 = vld [vmem:[%s53 + $0x50] sm:$0xff]
    %v3034 = vld [vmem:[%s53 + $0x58] sm:$0xff]
    %v3035 = vld [vmem:[%s53 + $0x60] sm:$0xff]
    %v3036 = vld [vmem:[%s53 + $0x68] sm:$0xff]
    %v3037 = vld [vmem:[%s53 + $0x70] sm:$0xff]
    %v3038 = vld [vmem:[%s53 + $0x78] sm:$0xff]
    %s3039 = scalar_lea.vmem %s53, 128
    %v3040 = vld [vmem:[%s3039] sm:$0xff]
    %v3041 = vld [vmem:[%s3039 + $0x8] sm:$0xff]
    %v3042 = vld [vmem:[%s3039 + $0x10] sm:$0xff]
    %v3043 = vld [vmem:[%s3039 + $0x18] sm:$0xff]
    %v3044 = vld [vmem:[%s3039 + $0x20] sm:$0xff]
    %v3045 = vld [vmem:[%s3039 + $0x28] sm:$0xff]
    %v3046 = vld [vmem:[%s3039 + $0x30] sm:$0xff]
    %v3047 = vld [vmem:[%s3039 + $0x38] sm:$0xff]
    %v3048 = vld [vmem:[%s3039 + $0x40] sm:$0xff]
    %v3049 = vld [vmem:[%s3039 + $0x48] sm:$0xff]
    %v3050 = vld [vmem:[%s3039 + $0x50] sm:$0xff]
    %v3051 = vld [vmem:[%s3039 + $0x58] sm:$0xff]
    %v3052 = vld [vmem:[%s3039 + $0x60] sm:$0xff]
    %v3053 = vld [vmem:[%s3039 + $0x68] sm:$0xff]
    %v3054 = vld [vmem:[%s3039 + $0x70] sm:$0xff]
    %v3055 = vld [vmem:[%s3039 + $0x78] sm:$0xff]
    %3056 = vmatpush.msra.mxu0 %v3055
    %3057 = vmatpush.msra.mxu0 %v3054
    %3058 = vmatpush.msra.mxu0 %v3053
    %3059 = vmatpush.msra.mxu0 %v3052
    %3060 = vmatpush.msra.mxu0 %v3051
    %3061 = vmatpush.msra.mxu0 %v3050
    %3062 = vmatpush.msra.mxu0 %v3049
    %3063 = vmatpush.msra.mxu0 %v3048
    %3064 = vmatpush.msra.mxu0 %v3047
    %3065 = vmatpush.msra.mxu0 %v3046
    %3066 = vmatpush.msra.mxu0 %v3045
    %3067 = vmatpush.msra.mxu0 %v3044
    %3068 = vmatpush.msra.mxu0 %v3043
    %3069 = vmatpush.msra.mxu0 %v3042
    %3070 = vmatpush.msra.mxu0 %v3041
    %3071 = vmatpush.msra.mxu0 %v3040
    %3072 = vmatmul.f32.gmra.mxu0 %v3001
    %v3073 = vpop.f32.mrf.mxu0
    %v3074 = vadd.f32 0.0, %v3073
    %3075 = vmatmul.f32.gmra.mxu0 %v3002
    %v3076 = vpop.f32.mrf.mxu0
    %v3077 = vadd.f32 0.0, %v3076
    %3078 = vdwg.mxu0
    %3079 = vmatpush.msra.mxu0 %v3038
    %3080 = vmatpush.msra.mxu0 %v3037
    %3081 = vmatpush.msra.mxu0 %v3036
    %3082 = vmatpush.msra.mxu0 %v3035
    %3083 = vmatpush.msra.mxu0 %v3034
    %3084 = vmatpush.msra.mxu0 %v3033
    %3085 = vmatpush.msra.mxu0 %v3032
    %3086 = vmatpush.msra.mxu0 %v3031
    %3087 = vmatpush.msra.mxu0 %v3030
    %3088 = vmatpush.msra.mxu0 %v3029
    %3089 = vmatpush.msra.mxu0 %v3028
    %3090 = vmatpush.msra.mxu0 %v3027
    %3091 = vmatpush.msra.mxu0 %v3026
    %3092 = vmatpush.msra.mxu0 %v3025
    %3093 = vmatpush.msra.mxu0 %v3024
    %3094 = vmatpush.msra.mxu0 %v3023
    %3095 = vmatmul.f32.gmra.mxu0 %v3012
    %v3096 = vpop.f32.mrf.mxu0
    %v3097 = vadd.f32 %v3074, %v3096
    %3098 = vmatmul.f32.gmra.mxu0 %v3013
    %v3099 = vpop.f32.mrf.mxu0
    %v3100 = vadd.f32 %v3077, %v3099
    %3101 = vdwg.mxu0
    %s3102 = scalar_lea.vmem %s53, 256
    %v3103 = vld [vmem:[%s3102] sm:$0xff]
    %v3104 = vld [vmem:[%s3102 + $0x8] sm:$0xff]
    %v3105 = vld [vmem:[%s3102 + $0x10] sm:$0xff]
    %v3106 = vld [vmem:[%s3102 + $0x18] sm:$0xff]
    %v3107 = vld [vmem:[%s3102 + $0x20] sm:$0xff]
    %v3108 = vld [vmem:[%s3102 + $0x28] sm:$0xff]
    %v3109 = vld [vmem:[%s3102 + $0x30] sm:$0xff]
    %v3110 = vld [vmem:[%s3102 + $0x38] sm:$0xff]
    %v3111 = vld [vmem:[%s3102 + $0x40] sm:$0xff]
    %v3112 = vld [vmem:[%s3102 + $0x48] sm:$0xff]
    %v3113 = vld [vmem:[%s3102 + $0x50] sm:$0xff]
    %v3114 = vld [vmem:[%s3102 + $0x58] sm:$0xff]
    %v3115 = vld [vmem:[%s3102 + $0x60] sm:$0xff]
    %v3116 = vld [vmem:[%s3102 + $0x68] sm:$0xff]
    %v3117 = vld [vmem:[%s3102 + $0x70] sm:$0xff]
    %v3118 = vld [vmem:[%s3102 + $0x78] sm:$0xff]
    %3119 = vmatpush.msra.mxu0 %v3118
    %3120 = vmatpush.msra.mxu0 %v3117
    %3121 = vmatpush.msra.mxu0 %v3116
    %3122 = vmatpush.msra.mxu0 %v3115
    %3123 = vmatpush.msra.mxu0 %v3114
    %3124 = vmatpush.msra.mxu0 %v3113
    %3125 = vmatpush.msra.mxu0 %v3112
    %3126 = vmatpush.msra.mxu0 %v3111
    %3127 = vmatpush.msra.mxu0 %v3110
    %3128 = vmatpush.msra.mxu0 %v3109
    %3129 = vmatpush.msra.mxu0 %v3108
    %3130 = vmatpush.msra.mxu0 %v3107
    %3131 = vmatpush.msra.mxu0 %v3106
    %3132 = vmatpush.msra.mxu0 %v3105
    %3133 = vmatpush.msra.mxu0 %v3104
    %3134 = vmatpush.msra.mxu0 %v3103
    %3135 = vmatmul.f32.gmra.mxu0 %v3021
    %v3136 = vpop.f32.mrf.mxu0
    %v3137 = vadd.f32 0.0, %v3136
    %3138 = vmatmul.f32.gmra.mxu0 %v3022
    %v3139 = vpop.f32.mrf.mxu0
    %v3140 = vadd.f32 0.0, %v3139
    %3141 = vdwg.mxu0
    %v3142 = vadd.f32 %v3097, %v3137
    %v3143 = vadd.f32 %v3100, %v3140
    %v3144 = vld [vmem:[%s55] sm:$0x1]
    %v3146 = vperm.slane %v3144, 0
    %v3148 = vadd.f32 %v3142, %v3146
    %v3149 = vadd.f32 %v3143, %v3146
    %v3150 = vmax.f32 %v3148, 0.0
    %v3151 = vmax.f32 %v3149, 0.0
    %3152 = vmatpush.msra.mxu0 0.0
    %3153 = vmatpush.msra.mxu0 0.0
    %3154 = vmatpush.msra.mxu0 0.0
    %3155 = vmatpush.msra.mxu0 0.0
    %3156 = vmatpush.msra.mxu0 0.0
    %3157 = vmatpush.msra.mxu0 0.0
    %3158 = vmatpush.msra.mxu0 0.0
    %3159 = vmatpush.msra.mxu0 0.0
    %3160 = vmatpush.msra.mxu0 0.0
    %3161 = vmatpush.msra.mxu0 0.0
    %3162 = vmatpush.msra.mxu0 0.0
    %3163 = vmatpush.msra.mxu0 0.0
    %3164 = vmatpush.msra.mxu0 0.0
    %3165 = vmatpush.msra.mxu0 0.0
    %3166 = vmatpush.msra.mxu0 %v3151
    %3167 = vmatpush.msra.mxu0 %v3150
    %3168 = vmatmul.f32.gmra.mxu0 %v2697
    %v3169 = vpop.f32.mrf.mxu0
    %v3170 = vadd.f32 0.0, %v3169
    %3171 = vdwg.mxu0
    %v3172 = vld [vmem:[%s57] sm:$0xff]
    %v3173 = vld [vmem:[%s57 + $0x8] sm:$0xff]
    %v3174 = vld [vmem:[%s57 + $0x10] sm:$0xff]
    %v3175 = vld [vmem:[%s57 + $0x18] sm:$0xff]
    %v3176 = vld [vmem:[%s59] sm:$0xff]
    %v3177 = vld [vmem:[%s59 + $0x8] sm:$0xff]
    %v3178 = vld [vmem:[%s59 + $0x10] sm:$0xff]
    %v3179 = vld [vmem:[%s59 + $0x18] sm:$0xff]
    %v3181 = vsel %vm210, %v3170, 0
    %3183 = vmatpush.msra.mxu0 0.0
    %3184 = vmatpush.msra.mxu0 0.0
    %3185 = vmatpush.msra.mxu0 0.0
    %3186 = vmatpush.msra.mxu0 0.0
    %3187 = vmatpush.msra.mxu0 0.0
    %3188 = vmatpush.msra.mxu0 0.0
    %3189 = vmatpush.msra.mxu0 0.0
    %3190 = vmatpush.msra.mxu0 0.0
    %3191 = vmatpush.msra.mxu0 0.0
    %3192 = vmatpush.msra.mxu0 0.0
    %3193 = vmatpush.msra.mxu0 0.0
    %3194 = vmatpush.msra.mxu0 0.0
    %3195 = vmatpush.msra.mxu0 %v3179
    %3196 = vmatpush.msra.mxu0 %v3178
    %3197 = vmatpush.msra.mxu0 %v3177
    %3198 = vmatpush.msra.mxu0 %v3176
    %3199 = vmatmul.f32.gmra.mxu0 %v3181
    %v3200 = vpop.f32.mrf.mxu0
    %v3201 = vadd.f32 0.0, %v3200
    %3202 = vdwg.mxu0
    %v3204 = vsel %vm210, %v2717, 0
    %3206 = vmatpush.msra.mxu0 0.0
    %3207 = vmatpush.msra.mxu0 0.0
    %3208 = vmatpush.msra.mxu0 0.0
    %3209 = vmatpush.msra.mxu0 0.0
    %3210 = vmatpush.msra.mxu0 0.0
    %3211 = vmatpush.msra.mxu0 0.0
    %3212 = vmatpush.msra.mxu0 0.0
    %3213 = vmatpush.msra.mxu0 0.0
    %3214 = vmatpush.msra.mxu0 0.0
    %3215 = vmatpush.msra.mxu0 0.0
    %3216 = vmatpush.msra.mxu0 0.0
    %3217 = vmatpush.msra.mxu0 0.0
    %3218 = vmatpush.msra.mxu0 %v3175
    %3219 = vmatpush.msra.mxu0 %v3174
    %3220 = vmatpush.msra.mxu0 %v3173
    %3221 = vmatpush.msra.mxu0 %v3172
    %3222 = vmatmul.f32.gmra.mxu0 %v3204
    %v3223 = vpop.f32.mrf.mxu0
    %v3224 = vadd.f32 %v3201, %v3223
    %3225 = vdwg.mxu0
    %v3226 = vld [vmem:[%s61] sm:$0x1]
    %v3228 = vperm.slane %v3226, 0
    %v3230 = vadd.f32 %v3224, %v3228
    %v3231 = vld [vmem:[%s63] sm:$0x1]
    %v3232 = vld [vmem:[%s65] sm:$0x1]
    %vm3233 = vcmask 254976
    %v3234 = vsel %vm3233, %v3230, 0.0
    %3235 = vadd.xlane.f32.xlu0 %v3234
    %v3236 = vpop.xlane.xlu0 %3235
    %v3237 = vmul.f32 %v3236, %v223
    %v3238 = vsub.f32 %v3230, %v3237
    %v3239 = vmul.f32 %v3238, %v3238
    %v3240 = vsel %vm3233, %v3239, 0.0
    %3241 = vadd.xlane.f32.xlu0 %v3240
    %v3242 = vpop.xlane.xlu0 %3241
    %v3243 = vmul.f32 %v3242, %v223
    %v3244 = vadd.f32 %v3243, 1e-05
    %v3245 = vrsqrt.pop %v3244
    %v3246 = vmul.f32 %v3245, %v3244
    %v3247 = vmul.f32 %v3246, %v3245
    %v3248 = vmul.f32 0.5, %v3247
    %v3249 = vsub.f32 1.5, %v3248
    %v3250 = vmul.f32 %v3245, %v3249
    %vm3251 = vweird.f32 %v3244
    %vm3252 = vweird.f32 %v3245
    %vm3253 = vmor %vm3251, %vm3252
    %v3254 = vsel %vm3253, %v3245, %v3250
    %v3255 = vmul.f32 %v3238, %v3254
    %v3257 = vperm.slane %v3231, 0
    %v3259 = vmul.f32 %v3255, %v3257
    %v3261 = vperm.slane %v3232, 0
    %v3263 = vadd.f32 %v3259, %v3261
    %v3264 = vmax.f32 %v3263, 0.0
    %v3265 = vld [vmem:[%s67] sm:$0xff]
    %v3266 = vld [vmem:[%s67 + $0x8] sm:$0xff]
    %v3267 = vld [vmem:[%s67 + $0x10] sm:$0xff]
    %v3268 = vld [vmem:[%s67 + $0x18] sm:$0xff]
    %v3269 = vld [vmem:[%s69] sm:$0x1]
    %v3271 = vperm.slane %v3269, 0
    %v3274 = vsel %vm210, %v3264, 0
    %3276 = vmatpush.msra.mxu0 0.0
    %3277 = vmatpush.msra.mxu0 0.0
    %3278 = vmatpush.msra.mxu0 0.0
    %3279 = vmatpush.msra.mxu0 0.0
    %3280 = vmatpush.msra.mxu0 0.0
    %3281 = vmatpush.msra.mxu0 0.0
    %3282 = vmatpush.msra.mxu0 0.0
    %3283 = vmatpush.msra.mxu0 0.0
    %3284 = vmatpush.msra.mxu0 0.0
    %3285 = vmatpush.msra.mxu0 0.0
    %3286 = vmatpush.msra.mxu0 0.0
    %3287 = vmatpush.msra.mxu0 0.0
    %3288 = vmatpush.msra.mxu0 %v3268
    %3289 = vmatpush.msra.mxu0 %v3267
    %3290 = vmatpush.msra.mxu0 %v3266
    %3291 = vmatpush.msra.mxu0 %v3265
    %3292 = vmatmul.f32.gmra.mxu0 %v3274
    %v3293 = vpop.f32.mrf.mxu0
    %v3294 = vadd.f32 %v3271, %v3293
    %3295 = vdwg.mxu0
    %v3296 = vmax.f32 %v3294, 0.0
    %v3297 = vld [vmem:[%s71] sm:$0xff]
    %v3298 = vld [vmem:[%s71 + $0x8] sm:$0xff]
    %v3299 = vld [vmem:[%s71 + $0x10] sm:$0xff]
    %v3300 = vld [vmem:[%s71 + $0x18] sm:$0xff]
    %v3301 = vld [vmem:[%s71 + $0x20] sm:$0xff]
    %v3302 = vld [vmem:[%s71 + $0x28] sm:$0xff]
    %v3303 = vld [vmem:[%s71 + $0x30] sm:$0xff]
    %v3304 = vld [vmem:[%s71 + $0x38] sm:$0xff]
    %v3305 = vld [vmem:[%s73] sm:$0x1]
    %v3307 = vperm.slane %v3305, 0
    %v3310 = vsel %vm1411, %v3296, 0
    %3312 = vmatpush.msra.mxu0 0.0
    %3313 = vmatpush.msra.mxu0 0.0
    %3314 = vmatpush.msra.mxu0 0.0
    %3315 = vmatpush.msra.mxu0 0.0
    %3316 = vmatpush.msra.mxu0 0.0
    %3317 = vmatpush.msra.mxu0 0.0
    %3318 = vmatpush.msra.mxu0 0.0
    %3319 = vmatpush.msra.mxu0 0.0
    %3320 = vmatpush.msra.mxu0 %v3304
    %3321 = vmatpush.msra.mxu0 %v3303
    %3322 = vmatpush.msra.mxu0 %v3302
    %3323 = vmatpush.msra.mxu0 %v3301
    %3324 = vmatpush.msra.mxu0 %v3300
    %3325 = vmatpush.msra.mxu0 %v3299
    %3326 = vmatpush.msra.mxu0 %v3298
    %3327 = vmatpush.msra.mxu0 %v3297
    %3328 = vmatmul.f32.gmra.mxu0 %v3310
    %v3329 = vpop.f32.mrf.mxu0
    %v3330 = vadd.f32 %v3307, %v3329
    %3331 = vdwg.mxu0
    %vm3332 = vcmask 17408
    %v3333 = vsel %vm3332, %v3330, -inf
    %3334 = vmax.xlane.f32.xlu0 %v3333
    %v3335 = vpop.xlane.xlu0 %3334
    %v3336 = vsub.f32 %v3330, %v3335
    %v3337 = vmul.f32 %v3336, 1.442695
    %v3338 = vpow.pop %v3337
    %v3339 = vsel %vm3332, %v3338, 0.0
    %3340 = vadd.xlane.f32.xlu0 %v3339
    %v3341 = vpop.xlane.xlu0 %3340
    %v3342 = vrcp.pop %v3341
    %v3343 = vmul.f32 %v3341, %v3342
    %v3344 = vsub.f32 1.0, %v3343
    %v3345 = vmul.f32 %v3342, %v3344
    %v3346 = vadd.f32 %v3342, %v3345
    %vm3347 = vweird.f32 %v3341
    %vm3348 = vweird.f32 %v3342
    %vm3349 = vmor %vm3347, %vm3348
    %v3350 = vsel %vm3349, %v3342, %v3346
    %v3351 = vand.u32 2147483647, %v3341
    %vm3352 = vcmp.eq.f32.partialorder %v3351, 8.507059e+37
    %v3353 = vand.u32 %v3341, 2147483648
    %v3354 = vor.u32 1.1754944e-38, %v3353
    %v3355 = vsel %vm3352, %v3354, %v3350
    %v3356 = vmul.f32 %v3338, %v3355
    %v3357 = vld [vmem:[%s75] sm:$0xff]
    %v3358 = vld [vmem:[%s75 + $0x8] sm:$0xff]
    %v3359 = vld [vmem:[%s75 + $0x10] sm:$0xff]
    %v3360 = vld [vmem:[%s75 + $0x18] sm:$0xff]
    %v3361 = vld [vmem:[%s77] sm:$0x1]
    %v3363 = vperm.slane %v3361, 0
    %3365 = vmatpush.msra.mxu0 0.0
    %3366 = vmatpush.msra.mxu0 0.0
    %3367 = vmatpush.msra.mxu0 0.0
    %3368 = vmatpush.msra.mxu0 0.0
    %3369 = vmatpush.msra.mxu0 0.0
    %3370 = vmatpush.msra.mxu0 0.0
    %3371 = vmatpush.msra.mxu0 0.0
    %3372 = vmatpush.msra.mxu0 0.0
    %3373 = vmatpush.msra.mxu0 0.0
    %3374 = vmatpush.msra.mxu0 0.0
    %3375 = vmatpush.msra.mxu0 0.0
    %3376 = vmatpush.msra.mxu0 0.0
    %3377 = vmatpush.msra.mxu0 %v3360
    %3378 = vmatpush.msra.mxu0 %v3359
    %3379 = vmatpush.msra.mxu0 %v3358
    %3380 = vmatpush.msra.mxu0 %v3357
    %3381 = vmatmul.f32.gmra.mxu0 %v3274
    %v3382 = vpop.f32.mrf.mxu0
    %v3383 = vadd.f32 %v3363, %v3382
    %3384 = vdwg.mxu0
    %3386 = vset.pattern.permute.xlu0 0
    %3387 = vperm.xlu0 %3386, %v3356
    %v3388 = vpop.permute.xlu0 %3387
    %v3390 = vmul.f32 %v3383, %v3388
    %s3391 = scalar_lea.vmem %s75, 32
    %v3392 = vld [vmem:[%s3391] sm:$0xff]
    %v3393 = vld [vmem:[%s3391 + $0x8] sm:$0xff]
    %v3394 = vld [vmem:[%s3391 + $0x10] sm:$0xff]
    %v3395 = vld [vmem:[%s3391 + $0x18] sm:$0xff]
    %s3396 = scalar_lea.vmem %s77, 1
    %v3397 = vld [vmem:[%s3396] sm:$0x1]
    %v3399 = vperm.slane %v3397, 0
    %3401 = vmatpush.msra.mxu0 0.0
    %3402 = vmatpush.msra.mxu0 0.0
    %3403 = vmatpush.msra.mxu0 0.0
    %3404 = vmatpush.msra.mxu0 0.0
    %3405 = vmatpush.msra.mxu0 0.0
    %3406 = vmatpush.msra.mxu0 0.0
    %3407 = vmatpush.msra.mxu0 0.0
    %3408 = vmatpush.msra.mxu0 0.0
    %3409 = vmatpush.msra.mxu0 0.0
    %3410 = vmatpush.msra.mxu0 0.0
    %3411 = vmatpush.msra.mxu0 0.0
    %3412 = vmatpush.msra.mxu0 0.0
    %3413 = vmatpush.msra.mxu0 %v3395
    %3414 = vmatpush.msra.mxu0 %v3394
    %3415 = vmatpush.msra.mxu0 %v3393
    %3416 = vmatpush.msra.mxu0 %v3392
    %3417 = vmatmul.f32.gmra.mxu0 %v3274
    %v3418 = vpop.f32.mrf.mxu0
    %v3419 = vadd.f32 %v3399, %v3418
    %3420 = vdwg.mxu0
    %3421 = vset.pattern.permute.xlu0 1
    %3422 = vperm.xlu0 %3421, %v3356
    %v3423 = vpop.permute.xlu0 %3422
    %v3425 = vmul.f32 %v3419, %v3423
    %v3426 = vadd.f32 %v3390, %v3425
    %s3427 = scalar_lea.vmem %s75, 64
    %v3428 = vld [vmem:[%s3427] sm:$0xff]
    %v3429 = vld [vmem:[%s3427 + $0x8] sm:$0xff]
    %v3430 = vld [vmem:[%s3427 + $0x10] sm:$0xff]
    %v3431 = vld [vmem:[%s3427 + $0x18] sm:$0xff]
    %s3432 = scalar_lea.vmem %s77, 2
    %v3433 = vld [vmem:[%s3432] sm:$0x1]
    %v3435 = vperm.slane %v3433, 0
    %3437 = vmatpush.msra.mxu0 0.0
    %3438 = vmatpush.msra.mxu0 0.0
    %3439 = vmatpush.msra.mxu0 0.0
    %3440 = vmatpush.msra.mxu0 0.0
    %3441 = vmatpush.msra.mxu0 0.0
    %3442 = vmatpush.msra.mxu0 0.0
    %3443 = vmatpush.msra.mxu0 0.0
    %3444 = vmatpush.msra.mxu0 0.0
    %3445 = vmatpush.msra.mxu0 0.0
    %3446 = vmatpush.msra.mxu0 0.0
    %3447 = vmatpush.msra.mxu0 0.0
    %3448 = vmatpush.msra.mxu0 0.0
    %3449 = vmatpush.msra.mxu0 %v3431
    %3450 = vmatpush.msra.mxu0 %v3430
    %3451 = vmatpush.msra.mxu0 %v3429
    %3452 = vmatpush.msra.mxu0 %v3428
    %3453 = vmatmul.f32.gmra.mxu0 %v3274
    %v3454 = vpop.f32.mrf.mxu0
    %v3455 = vadd.f32 %v3435, %v3454
    %3456 = vdwg.mxu0
    %3457 = vset.pattern.permute.xlu0 2
    %3458 = vperm.xlu0 %3457, %v3356
    %v3459 = vpop.permute.xlu0 %3458
    %v3461 = vmul.f32 %v3455, %v3459
    %v3462 = vadd.f32 %v3426, %v3461
    %v3463 = vld [vmem:[%s79] sm:$0xff]
    %v3464 = vld [vmem:[%s79 + $0x8] sm:$0xff]
    %v3465 = vld [vmem:[%s79 + $0x10] sm:$0xff]
    %v3466 = vld [vmem:[%s79 + $0x18] sm:$0xff]
    %v3467 = vld [vmem:[%s81] sm:$0x1]
    %v3469 = vperm.slane %v3467, 0
    %v3472 = vsel %vm210, %v3462, 0
    %3474 = vmatpush.msra.mxu0 0.0
    %3475 = vmatpush.msra.mxu0 0.0
    %3476 = vmatpush.msra.mxu0 0.0
    %3477 = vmatpush.msra.mxu0 0.0
    %3478 = vmatpush.msra.mxu0 0.0
    %3479 = vmatpush.msra.mxu0 0.0
    %3480 = vmatpush.msra.mxu0 0.0
    %3481 = vmatpush.msra.mxu0 0.0
    %3482 = vmatpush.msra.mxu0 0.0
    %3483 = vmatpush.msra.mxu0 0.0
    %3484 = vmatpush.msra.mxu0 0.0
    %3485 = vmatpush.msra.mxu0 0.0
    %3486 = vmatpush.msra.mxu0 %v3466
    %3487 = vmatpush.msra.mxu0 %v3465
    %3488 = vmatpush.msra.mxu0 %v3464
    %3489 = vmatpush.msra.mxu0 %v3463
    %3490 = vmatmul.f32.gmra.mxu0 %v3472
    %v3491 = vpop.f32.mrf.mxu0
    %v3492 = vadd.f32 %v3469, %v3491
    %3493 = vdwg.mxu0
    %3494 = vst.msk [vmem:[#allocation2] sm:$0x3] %vm3233, %v3492
    // Predicated region
    $region166: #{tpu_custom_call.1} parent=1 // pred_check
      _
    $region167: #{tpu_custom_call.1} parent=1 // pred_check_branch
      %3496 = sbr.rel (0) target = $region169
    $region168: #{tpu_custom_call.1} parent=1 // pred_region
      %3498 = vsyncadd [#allocation3], 0
      %s3500 = sshll.u32 [#allocation2], 4
      %s3501 = int_to_ptr.vmem [resolvable:$true] %s3500
      %s3502 = sshll.u32 %s83, 4
      %s3503 = int_to_ptr.hbm [resolvable:$true] %s3502
      %3505 = dma.vmem_to_hbm [thread:$0]  %s3501, 32, %s3503, [#allocation3]
    $region169: #{tpu_custom_call.1} parent=1 // pred_fallthru
      _
    // Predicated region
    $region170: #{tpu_custom_call.1} parent=1 // pred_check
      _
    $region171: #{tpu_custom_call.1} parent=1 // pred_check_branch
      %3507 = sbr.rel (0) target = $region173
    $region172: #{tpu_custom_call.1} parent=1 // pred_region
      %3509 = dma.done [#allocation3], 32
    $region173: #{tpu_custom_call.1} parent=1 // pred_fallthru
      _
    %3510 = vsyncpa [#allocation3], 1

</llo_original>
